<compile_context>
chip_gen: v7x
topology: tpu7x:2x2x1
jax: 0.10.0
libtpu: 0.0.40
codegen_flags: <defaults>
</compile_context>

<pallas_src>
import math

import jax
import jax.numpy as jnp
from jax.experimental import pallas as pl
from jax.experimental.pallas import tpu as pltpu

# ---- small-but-consistent model config -------------------------------------
D = 128            # dim_feedforward (model/embedding dim)
FF = 2048          # fc hidden size (hard-coded to 2048 in the PyTorch module)
FF_CHUNK = 512     # FF is processed in 4 chunks of 512 inside the kernel
NHEAD = 4
HEAD_DIM = D // NHEAD
L = 8              # sequence length
N = 2              # batch size
ROWS = N * L
EPS = 1e-5         # nn.LayerNorm default eps
APPROX_RECIPROCAL = True   # debug switch: False => exact softmax divide


def _transformer_layer_kernel(
    x_ref,        # (ROWS, D)  f32
    w1_ref,       # (D, FF)    bf16
    w2_ref,       # (FF, D)    bf16
    wqkv_ref,     # (D, 3D)    bf16  (q columns pre-scaled by 1/sqrt(HEAD_DIM))
    wo_ref,       # (D, D)     bf16
    b1_ref,       # (1, FF)    f32
    small_ref,    # (9, D)     f32: [b2, bo, g1, be1, g2, be2, bq*s, bk, bv]
    o_ref,        # (ROWS, D)  f32
):
    x = x_ref[...]

    b2 = small_ref[0:1, :]
    bo = small_ref[1:2, :]
    g1 = small_ref[2:3, :]
    be1 = small_ref[3:4, :]
    g2 = small_ref[4:5, :]
    be2 = small_ref[5:6, :]
    bq = small_ref[6:7, :]
    bk = small_ref[7:8, :]
    bv = small_ref[8:9, :]

    def fc(z):
        # Chunk the FF dim so the (ROWS, FF) hidden activation is never fully
        # live; w1/w2 chunk loads stay inside the loop (static slices on refs).
        zb = z.astype(jnp.bfloat16)
        acc = jnp.zeros((ROWS, D), jnp.float32)
        for c in range(FF // FF_CHUNK):
            lo = c * FF_CHUNK
            h = jnp.dot(zb, w1_ref[:, lo:lo + FF_CHUNK],
                        preferred_element_type=jnp.float32)
            h = jnp.maximum(h + b1_ref[:, lo:lo + FF_CHUNK], 0.0)  # ReLU
            # Dropout inside fc is identity in eval mode.
            acc = acc + jnp.dot(h.astype(jnp.bfloat16),
                                w2_ref[lo:lo + FF_CHUNK, :],
                                preferred_element_type=jnp.float32)
        return acc + b2

    def layer_norm(z, g, b):
        mu = jnp.mean(z, axis=-1, keepdims=True)
        d = z - mu
        var = jnp.mean(d * d, axis=-1, keepdims=True)
        return d * jax.lax.rsqrt(var + EPS) * g + b

    # src = self.fc(src)
    h = fc(x)                                                         # (ROWS, D)

    # src2, _ = self.self_attn(h, h, h)   (attention dropout = identity)
    qkv = jnp.dot(h.astype(jnp.bfloat16), wqkv_ref[...],
                  preferred_element_type=jnp.float32)                 # (ROWS, 3D)
    q = qkv[:, 0:D] + bq            # already scaled by 1/sqrt(HEAD_DIM)
    k = qkv[:, D:2 * D] + bk
    v = qkv[:, 2 * D:3 * D] + bv

    head_outs = []
    for hd in range(NHEAD):         # 4 iterations; batched over N inside
        lo = hd * HEAD_DIM
        qh = q[:, lo:lo + HEAD_DIM].reshape(N, L, HEAD_DIM).astype(jnp.bfloat16)
        kh = k[:, lo:lo + HEAD_DIM].reshape(N, L, HEAD_DIM).astype(jnp.bfloat16)
        vh = v[:, lo:lo + HEAD_DIM].reshape(N, L, HEAD_DIM).astype(jnp.bfloat16)
        # scores[b, i, j] = qh[b, i, :] . kh[b, j, :]
        s = jax.lax.dot_general(qh, kh, (((2,), (2,)), ((0,), (0,))),
                                preferred_element_type=jnp.float32)   # (N, L, L)
        s = s - jnp.max(s, axis=-1, keepdims=True)
        p = jnp.exp(s)
        denom = jnp.sum(p, axis=-1, keepdims=True)
        if APPROX_RECIPROCAL:
            p = p * pl.reciprocal(denom, approx=True)
        else:
            p = p / denom
        o_h = jax.lax.dot_general(p.astype(jnp.bfloat16), vh,
                                  (((2,), (1,)), ((0,), (0,))),
                                  preferred_element_type=jnp.float32)  # (N, L, hd)
        head_outs.append(o_h.reshape(ROWS, HEAD_DIM))
    attn = jnp.concatenate(head_outs, axis=-1)                        # (ROWS, D)

    src2 = jnp.dot(attn.astype(jnp.bfloat16), wo_ref[...],
                   preferred_element_type=jnp.float32) + bo           # (ROWS, D)

    # src = norm1(src + dropout(src2))
    src = layer_norm(h + src2, g1, be1)
    # src = norm2(src + fc(src))
    src = layer_norm(src + fc(src), g2, be2)

    o_ref[...] = src.astype(o_ref.dtype)


def prepare_params(params):
    """One-time weight preparation (bf16 casts, fusion, bias packing)."""
    bf16 = jnp.bfloat16
    scale = 1.0 / math.sqrt(HEAD_DIM)
    wqkv = jnp.concatenate(
        [params["wq"] * scale, params["wk"], params["wv"]], axis=1)    # (D, 3D)
    small = jnp.concatenate(
        [params["b2"], params["bo"], params["g1"], params["be1"],
         params["g2"], params["be2"],
         params["bq"] * scale, params["bk"], params["bv"]],
        axis=0).astype(jnp.float32)                                     # (9, D)
    return {
        "w1": params["w1"].astype(bf16),
        "w2": params["w2"].astype(bf16),
        "wqkv": wqkv.astype(bf16),
        "wo": params["wo"].astype(bf16),
        "b1": params["b1"].astype(jnp.float32),
        "small": small,
    }


@jax.jit
def transformer_layer(src_lnd, prep):
    """src_lnd: (L, N, D) float32  ->  (L, N, D) float32."""
    # (L, N, D) -> (N, L, D) -> (N*L, D); batch rows stay contiguous.
    x = jnp.transpose(src_lnd, (1, 0, 2)).reshape(ROWS, D)

    def full(shape):
        return pl.BlockSpec(shape, lambda i: (0, 0))

    out = pl.pallas_call(
        _transformer_layer_kernel,
        out_shape=jax.ShapeDtypeStruct((ROWS, D), jnp.float32),
        grid_spec=pltpu.PrefetchScalarGridSpec(
            num_scalar_prefetch=0,
            grid=(1,),                                   # single invocation
            in_specs=[
                full((ROWS, D)),       # x
                full((D, FF)),         # w1  (bf16)
                full((FF, D)),         # w2  (bf16)
                full((D, 3 * D)),      # wqkv (bf16)
                full((D, D)),          # wo  (bf16)
                full((1, FF)),         # b1
                full((9, D)),          # packed small params
            ],
            out_specs=pl.BlockSpec((ROWS, D), lambda i: (0, 0)),
        ),
        compiler_params=pltpu.CompilerParams(
            dimension_semantics=("arbitrary",)),
    )(x, prep["w1"], prep["w2"], prep["wqkv"], prep["wo"],
      prep["b1"], prep["small"])

    return jnp.transpose(out.reshape(N, L, D), (1, 0, 2))  # back to (L, N, D)


# ---- pure-JAX reference (same math, f32 weights) for correctness check ------
def transformer_layer_ref(src_lnd, p):
    x = src_lnd.astype(jnp.float32)           # (L, N, D)

    def fc(z):
        h = jnp.maximum(z @ p["w1"] + p["b1"][0], 0.0)
        return h @ p["w2"] + p["b2"][0]

    def layer_norm(z, g, b):
        mu = jnp.mean(z, axis=-1, keepdims=True)
        var = jnp.mean((z - mu) ** 2, axis=-1, keepdims=True)
        return (z - mu) / jnp.sqrt(var + EPS) * g[0] + b[0]

    h = fc(x)                                 # (L, N, D)
    q = h @ p["wq"] + p["bq"][0]
    k = h @ p["wk"] + p["bk"][0]
    v = h @ p["wv"] + p["bv"][0]
    qh = q.reshape(L, N, NHEAD, HEAD_DIM) / math.sqrt(HEAD_DIM)
    kh = k.reshape(L, N, NHEAD, HEAD_DIM)
    vh = v.reshape(L, N, NHEAD, HEAD_DIM)
    s = jnp.einsum("lnhd,mnhd->nhlm", qh, kh)
    pw = jax.nn.softmax(s, axis=-1)
    a = jnp.einsum("nhlm,mnhd->lnhd", pw, vh).reshape(L, N, D)
    a = a @ p["wo"] + p["bo"][0]
    src = layer_norm(h + a, p["g1"], p["be1"])
    src = layer_norm(src + fc(src), p["g2"], p["be2"])
    return src


def init_params(key):
    ks = jax.random.split(key, 12)
    sc = 0.05
    f32 = jnp.float32
    return {
        "w1": jax.random.normal(ks[0], (D, FF), f32) * sc,
        "b1": jax.random.normal(ks[1], (1, FF), f32) * sc,
        "w2": jax.random.normal(ks[2], (FF, D), f32) * sc,
        "b2": jax.random.normal(ks[3], (1, D), f32) * sc,
        "wq": jax.random.normal(ks[4], (D, D), f32) * sc,
        "bq": jax.random.normal(ks[5], (1, D), f32) * sc,
        "wk": jax.random.normal(ks[6], (D, D), f32) * sc,
        "bk": jax.random.normal(ks[7], (1, D), f32) * sc,
        "wv": jax.random.normal(ks[8], (D, D), f32) * sc,
        "bv": jax.random.normal(ks[9], (1, D), f32) * sc,
        "wo": jax.random.normal(ks[10], (D, D), f32) * sc,
        "bo": jax.random.normal(ks[11], (1, D), f32) * sc,
        "g1": jnp.ones((1, D), f32),
        "be1": jnp.zeros((1, D), f32),
        "g2": jnp.ones((1, D), f32),
        "be2": jnp.zeros((1, D), f32),
    }


if __name__ == "__main__":
    key = jax.random.PRNGKey(0)
    k_param, k_in = jax.random.split(key)
    params = init_params(k_param)
    src = jax.random.normal(k_in, (L, N, D), jnp.float32)   # (seq, batch, embed)

    # One-time weight prep (bf16 / fusion / packing) — outside the hot path.
    prep = prepare_params(params)
    jax.block_until_ready(prep)

    out = transformer_layer(src, prep)
    jax.block_until_ready(out)

    ref = transformer_layer_ref(src, params)
    assert out.shape == (L, N, D)
    assert bool(jnp.all(jnp.isfinite(out)))
    # Slightly loose tolerance: matmul weights/activations are bf16 in the
    # kernel (f32 accumulation), reference is pure f32.
    assert jnp.allclose(out, ref, rtol=5e-2, atol=5e-2)

    print("KERNEL_OK")
</pallas_src>

<mosaic_0001>
module attributes {stable_mosaic.version = 11 : i64} {
  func.func @_transformer_layer_kernel(%arg0: i32, %arg1: memref<16x128xf32, #tpu.memory_space<vmem>>, %arg2: memref<128x2048xbf16, #tpu.memory_space<vmem>>, %arg3: memref<2048x128xbf16, #tpu.memory_space<vmem>>, %arg4: memref<128x384xbf16, #tpu.memory_space<vmem>>, %arg5: memref<128x128xbf16, #tpu.memory_space<vmem>>, %arg6: memref<1x2048xf32, #tpu.memory_space<vmem>>, %arg7: memref<9x128xf32, #tpu.memory_space<vmem>>, %arg8: memref<16x128xf32, #tpu.memory_space<vmem>>) attributes {dimension_semantics = [#tpu.dimension_semantics<arbitrary>], iteration_bounds = array<i64: 1>, scalar_prefetch = 0 : i64, scratch_operands = 0 : i64, tpu.core_type = #tpu.core_type<tc>, window_params = [{pipeline_mode = #tpu.pipeline_mode<synchronous>, transform_indices = @transform_0, window_bounds = array<i64: 16, 128>}, {pipeline_mode = #tpu.pipeline_mode<synchronous>, transform_indices = @transform_1, window_bounds = array<i64: 128, 2048>}, {pipeline_mode = #tpu.pipeline_mode<synchronous>, transform_indices = @transform_2, window_bounds = array<i64: 2048, 128>}, {pipeline_mode = #tpu.pipeline_mode<synchronous>, transform_indices = @transform_3, window_bounds = array<i64: 128, 384>}, {pipeline_mode = #tpu.pipeline_mode<synchronous>, transform_indices = @transform_4, window_bounds = array<i64: 128, 128>}, {pipeline_mode = #tpu.pipeline_mode<synchronous>, transform_indices = @transform_5, window_bounds = array<i64: 1, 2048>}, {pipeline_mode = #tpu.pipeline_mode<synchronous>, transform_indices = @transform_6, window_bounds = array<i64: 9, 128>}, {pipeline_mode = #tpu.pipeline_mode<synchronous>, transform_indices = @transform_7, window_bounds = array<i64: 16, 128>}]} {
    %c0 = arith.constant 0 : index
    %c0_0 = arith.constant 0 : index
    %0 = vector.load %arg1[%c0, %c0_0] : memref<16x128xf32, #tpu.memory_space<vmem>>, vector<16x128xf32>
    %c0_1 = arith.constant 0 : index
    %c0_2 = arith.constant 0 : index
    %1 = vector.load %arg7[%c0_1, %c0_2] : memref<9x128xf32, #tpu.memory_space<vmem>>, vector<1x128xf32>
    %c1 = arith.constant 1 : index
    %c0_3 = arith.constant 0 : index
    %2 = vector.load %arg7[%c1, %c0_3] : memref<9x128xf32, #tpu.memory_space<vmem>>, vector<1x128xf32>
    %c2 = arith.constant 2 : index
    %c0_4 = arith.constant 0 : index
    %3 = vector.load %arg7[%c2, %c0_4] : memref<9x128xf32, #tpu.memory_space<vmem>>, vector<1x128xf32>
    %c3 = arith.constant 3 : index
    %c0_5 = arith.constant 0 : index
    %4 = vector.load %arg7[%c3, %c0_5] : memref<9x128xf32, #tpu.memory_space<vmem>>, vector<1x128xf32>
    %c4 = arith.constant 4 : index
    %c0_6 = arith.constant 0 : index
    %5 = vector.load %arg7[%c4, %c0_6] : memref<9x128xf32, #tpu.memory_space<vmem>>, vector<1x128xf32>
    %c5 = arith.constant 5 : index
    %c0_7 = arith.constant 0 : index
    %6 = vector.load %arg7[%c5, %c0_7] : memref<9x128xf32, #tpu.memory_space<vmem>>, vector<1x128xf32>
    %c6 = arith.constant 6 : index
    %c0_8 = arith.constant 0 : index
    %7 = vector.load %arg7[%c6, %c0_8] : memref<9x128xf32, #tpu.memory_space<vmem>>, vector<1x128xf32>
    %c7 = arith.constant 7 : index
    %c0_9 = arith.constant 0 : index
    %8 = vector.load %arg7[%c7, %c0_9] : memref<9x128xf32, #tpu.memory_space<vmem>>, vector<1x128xf32>
    %c8 = arith.constant 8 : index
    %c0_10 = arith.constant 0 : index
    %9 = vector.load %arg7[%c8, %c0_10] : memref<9x128xf32, #tpu.memory_space<vmem>>, vector<1x128xf32>
    %10 = arith.truncf %0 : vector<16x128xf32> to vector<16x128xbf16>
    %cst = arith.constant 0.000000e+00 : f32
    %11 = vector.broadcast %cst : f32 to vector<16x128xf32>
    %c0_11 = arith.constant 0 : index
    %c0_12 = arith.constant 0 : index
    %12 = vector.load %arg2[%c0_11, %c0_12] : memref<128x2048xbf16, #tpu.memory_space<vmem>>, vector<128x512xbf16>
    %cst_13 = arith.constant dense<0.000000e+00> : vector<16x512xf32>
    %13 = tpu.matmul %10, %12, %cst_13 {dimension_numbers = #tpu.dot_dimension_numbers<[1], [0], [0], [1], [0, 0, 1, 1], [], []>} : vector<16x128xbf16>, vector<128x512xbf16>, vector<16x512xf32> -> vector<16x512xf32>
    %c0_14 = arith.constant 0 : index
    %c0_15 = arith.constant 0 : index
    %14 = vector.load %arg6[%c0_14, %c0_15] : memref<1x2048xf32, #tpu.memory_space<vmem>>, vector<1x512xf32>
    %15 = vector.broadcast %14 : vector<1x512xf32> to vector<16x512xf32>
    %16 = arith.addf %13, %15 : vector<16x512xf32>
    %cst_16 = arith.constant 0.000000e+00 : f32
    %17 = vector.broadcast %cst_16 : f32 to vector<16x512xf32>
    %18 = arith.maximumf %16, %17 : vector<16x512xf32>
    %19 = arith.truncf %18 : vector<16x512xf32> to vector<16x512xbf16>
    %c0_17 = arith.constant 0 : index
    %c0_18 = arith.constant 0 : index
    %20 = vector.load %arg3[%c0_17, %c0_18] : memref<2048x128xbf16, #tpu.memory_space<vmem>>, vector<512x128xbf16>
    %cst_19 = arith.constant dense<0.000000e+00> : vector<16x128xf32>
    %21 = tpu.matmul %19, %20, %cst_19 {dimension_numbers = #tpu.dot_dimension_numbers<[1], [0], [0], [1], [0, 0, 1, 1], [], []>} : vector<16x512xbf16>, vector<512x128xbf16>, vector<16x128xf32> -> vector<16x128xf32>
    %22 = arith.addf %11, %21 : vector<16x128xf32>
    %c0_20 = arith.constant 0 : index
    %c512 = arith.constant 512 : index
    %23 = vector.load %arg2[%c0_20, %c512] : memref<128x2048xbf16, #tpu.memory_space<vmem>>, vector<128x512xbf16>
    %cst_21 = arith.constant dense<0.000000e+00> : vector<16x512xf32>
    %24 = tpu.matmul %10, %23, %cst_21 {dimension_numbers = #tpu.dot_dimension_numbers<[1], [0], [0], [1], [0, 0, 1, 1], [], []>} : vector<16x128xbf16>, vector<128x512xbf16>, vector<16x512xf32> -> vector<16x512xf32>
    %c0_22 = arith.constant 0 : index
    %c512_23 = arith.constant 512 : index
    %25 = vector.load %arg6[%c0_22, %c512_23] : memref<1x2048xf32, #tpu.memory_space<vmem>>, vector<1x512xf32>
    %26 = vector.broadcast %25 : vector<1x512xf32> to vector<16x512xf32>
    %27 = arith.addf %24, %26 : vector<16x512xf32>
    %cst_24 = arith.constant 0.000000e+00 : f32
    %28 = vector.broadcast %cst_24 : f32 to vector<16x512xf32>
    %29 = arith.maximumf %27, %28 : vector<16x512xf32>
    %30 = arith.truncf %29 : vector<16x512xf32> to vector<16x512xbf16>
    %c512_25 = arith.constant 512 : index
    %c0_26 = arith.constant 0 : index
    %31 = vector.load %arg3[%c512_25, %c0_26] : memref<2048x128xbf16, #tpu.memory_space<vmem>>, vector<512x128xbf16>
    %cst_27 = arith.constant dense<0.000000e+00> : vector<16x128xf32>
    %32 = tpu.matmul %30, %31, %cst_27 {dimension_numbers = #tpu.dot_dimension_numbers<[1], [0], [0], [1], [0, 0, 1, 1], [], []>} : vector<16x512xbf16>, vector<512x128xbf16>, vector<16x128xf32> -> vector<16x128xf32>
    %33 = arith.addf %22, %32 : vector<16x128xf32>
    %c0_28 = arith.constant 0 : index
    %c1024 = arith.constant 1024 : index
    %34 = vector.load %arg2[%c0_28, %c1024] : memref<128x2048xbf16, #tpu.memory_space<vmem>>, vector<128x512xbf16>
    %cst_29 = arith.constant dense<0.000000e+00> : vector<16x512xf32>
    %35 = tpu.matmul %10, %34, %cst_29 {dimension_numbers = #tpu.dot_dimension_numbers<[1], [0], [0], [1], [0, 0, 1, 1], [], []>} : vector<16x128xbf16>, vector<128x512xbf16>, vector<16x512xf32> -> vector<16x512xf32>
    %c0_30 = arith.constant 0 : index
    %c1024_31 = arith.constant 1024 : index
    %36 = vector.load %arg6[%c0_30, %c1024_31] : memref<1x2048xf32, #tpu.memory_space<vmem>>, vector<1x512xf32>
    %37 = vector.broadcast %36 : vector<1x512xf32> to vector<16x512xf32>
    %38 = arith.addf %35, %37 : vector<16x512xf32>
    %cst_32 = arith.constant 0.000000e+00 : f32
    %39 = vector.broadcast %cst_32 : f32 to vector<16x512xf32>
    %40 = arith.maximumf %38, %39 : vector<16x512xf32>
    %41 = arith.truncf %40 : vector<16x512xf32> to vector<16x512xbf16>
    %c1024_33 = arith.constant 1024 : index
    %c0_34 = arith.constant 0 : index
    %42 = vector.load %arg3[%c1024_33, %c0_34] : memref<2048x128xbf16, #tpu.memory_space<vmem>>, vector<512x128xbf16>
    %cst_35 = arith.constant dense<0.000000e+00> : vector<16x128xf32>
    %43 = tpu.matmul %41, %42, %cst_35 {dimension_numbers = #tpu.dot_dimension_numbers<[1], [0], [0], [1], [0, 0, 1, 1], [], []>} : vector<16x512xbf16>, vector<512x128xbf16>, vector<16x128xf32> -> vector<16x128xf32>
    %44 = arith.addf %33, %43 : vector<16x128xf32>
    %c0_36 = arith.constant 0 : index
    %c1536 = arith.constant 1536 : index
    %45 = vector.load %arg2[%c0_36, %c1536] : memref<128x2048xbf16, #tpu.memory_space<vmem>>, vector<128x512xbf16>
    %cst_37 = arith.constant dense<0.000000e+00> : vector<16x512xf32>
    %46 = tpu.matmul %10, %45, %cst_37 {dimension_numbers = #tpu.dot_dimension_numbers<[1], [0], [0], [1], [0, 0, 1, 1], [], []>} : vector<16x128xbf16>, vector<128x512xbf16>, vector<16x512xf32> -> vector<16x512xf32>
    %c0_38 = arith.constant 0 : index
    %c1536_39 = arith.constant 1536 : index
    %47 = vector.load %arg6[%c0_38, %c1536_39] : memref<1x2048xf32, #tpu.memory_space<vmem>>, vector<1x512xf32>
    %48 = vector.broadcast %47 : vector<1x512xf32> to vector<16x512xf32>
    %49 = arith.addf %46, %48 : vector<16x512xf32>
    %cst_40 = arith.constant 0.000000e+00 : f32
    %50 = vector.broadcast %cst_40 : f32 to vector<16x512xf32>
    %51 = arith.maximumf %49, %50 : vector<16x512xf32>
    %52 = arith.truncf %51 : vector<16x512xf32> to vector<16x512xbf16>
    %c1536_41 = arith.constant 1536 : index
    %c0_42 = arith.constant 0 : index
    %53 = vector.load %arg3[%c1536_41, %c0_42] : memref<2048x128xbf16, #tpu.memory_space<vmem>>, vector<512x128xbf16>
    %cst_43 = arith.constant dense<0.000000e+00> : vector<16x128xf32>
    %54 = tpu.matmul %52, %53, %cst_43 {dimension_numbers = #tpu.dot_dimension_numbers<[1], [0], [0], [1], [0, 0, 1, 1], [], []>} : vector<16x512xbf16>, vector<512x128xbf16>, vector<16x128xf32> -> vector<16x128xf32>
    %55 = arith.addf %44, %54 : vector<16x128xf32>
    %56 = vector.broadcast %1 : vector<1x128xf32> to vector<16x128xf32>
    %57 = arith.addf %55, %56 : vector<16x128xf32>
    %58 = arith.truncf %57 : vector<16x128xf32> to vector<16x128xbf16>
    %c0_44 = arith.constant 0 : index
    %c0_45 = arith.constant 0 : index
    %59 = vector.load %arg4[%c0_44, %c0_45] : memref<128x384xbf16, #tpu.memory_space<vmem>>, vector<128x384xbf16>
    %cst_46 = arith.constant dense<0.000000e+00> : vector<16x384xf32>
    %60 = tpu.matmul %58, %59, %cst_46 {dimension_numbers = #tpu.dot_dimension_numbers<[1], [0], [0], [1], [0, 0, 1, 1], [], []>} : vector<16x128xbf16>, vector<128x384xbf16>, vector<16x384xf32> -> vector<16x384xf32>
    %61 = vector.extract_strided_slice %60 {offsets = [0, 0], sizes = [16, 128], strides = [1, 1]} : vector<16x384xf32> to vector<16x128xf32>
    %62 = vector.broadcast %7 : vector<1x128xf32> to vector<16x128xf32>
    %63 = arith.addf %61, %62 : vector<16x128xf32>
    %64 = vector.extract_strided_slice %60 {offsets = [0, 128], sizes = [16, 128], strides = [1, 1]} : vector<16x384xf32> to vector<16x128xf32>
    %65 = vector.broadcast %8 : vector<1x128xf32> to vector<16x128xf32>
    %66 = arith.addf %64, %65 : vector<16x128xf32>
    %67 = vector.extract_strided_slice %60 {offsets = [0, 256], sizes = [16, 128], strides = [1, 1]} : vector<16x384xf32> to vector<16x128xf32>
    %68 = vector.broadcast %9 : vector<1x128xf32> to vector<16x128xf32>
    %69 = arith.addf %67, %68 : vector<16x128xf32>
    %70 = vector.extract_strided_slice %63 {offsets = [0, 0], sizes = [16, 32], strides = [1, 1]} : vector<16x128xf32> to vector<16x32xf32>
    %71 = vector.shape_cast %70 : vector<16x32xf32> to vector<2x8x32xf32>
    %72 = arith.truncf %71 : vector<2x8x32xf32> to vector<2x8x32xbf16>
    %73 = vector.extract_strided_slice %66 {offsets = [0, 0], sizes = [16, 32], strides = [1, 1]} : vector<16x128xf32> to vector<16x32xf32>
    %74 = vector.shape_cast %73 : vector<16x32xf32> to vector<2x8x32xf32>
    %75 = arith.truncf %74 : vector<2x8x32xf32> to vector<2x8x32xbf16>
    %76 = vector.extract_strided_slice %69 {offsets = [0, 0], sizes = [16, 32], strides = [1, 1]} : vector<16x128xf32> to vector<16x32xf32>
    %77 = vector.shape_cast %76 : vector<16x32xf32> to vector<2x8x32xf32>
    %78 = arith.truncf %77 : vector<2x8x32xf32> to vector<2x8x32xbf16>
    %cst_47 = arith.constant dense<0.000000e+00> : vector<2x8x8xf32>
    %79 = tpu.matmul %72, %75, %cst_47 {dimension_numbers = #tpu.dot_dimension_numbers<[2], [2], [1], [1], [0, 0, 0, 1, 1, 1], [0], [0]>} : vector<2x8x32xbf16>, vector<2x8x32xbf16>, vector<2x8x8xf32> -> vector<2x8x8xf32>
    %cst_48 = arith.constant dense<0xFF800000> : vector<2x8xf32>
    %80 = vector.multi_reduction <maximumf>, %79, %cst_48 [2] : vector<2x8x8xf32> to vector<2x8xf32>
    %81 = vector.shape_cast %80 : vector<2x8xf32> to vector<2x8x1xf32>
    %82 = vector.broadcast %81 : vector<2x8x1xf32> to vector<2x8x8xf32>
    %83 = arith.subf %79, %82 : vector<2x8x8xf32>
    %84 = math.exp %83 : vector<2x8x8xf32>
    %cst_49 = arith.constant dense<0.000000e+00> : vector<2x8xf32>
    %85 = vector.multi_reduction <add>, %84, %cst_49 [2] : vector<2x8x8xf32> to vector<2x8xf32>
    %86 = vector.shape_cast %85 : vector<2x8xf32> to vector<2x8x1xf32>
    %87 = tpu.reciprocal %86 {approx = true} : vector<2x8x1xf32> -> vector<2x8x1xf32>
    %88 = vector.broadcast %87 : vector<2x8x1xf32> to vector<2x8x8xf32>
    %89 = arith.mulf %84, %88 : vector<2x8x8xf32>
    %90 = arith.truncf %89 : vector<2x8x8xf32> to vector<2x8x8xbf16>
    %cst_50 = arith.constant dense<0.000000e+00> : vector<2x8x32xf32>
    %91 = tpu.matmul %90, %78, %cst_50 {dimension_numbers = #tpu.dot_dimension_numbers<[2], [1], [1], [2], [0, 0, 0, 1, 1, 2], [0], [0]>} : vector<2x8x8xbf16>, vector<2x8x32xbf16>, vector<2x8x32xf32> -> vector<2x8x32xf32>
    %92 = vector.shape_cast %91 : vector<2x8x32xf32> to vector<16x32xf32>
    %93 = vector.extract_strided_slice %63 {offsets = [0, 32], sizes = [16, 32], strides = [1, 1]} : vector<16x128xf32> to vector<16x32xf32>
    %94 = vector.shape_cast %93 : vector<16x32xf32> to vector<2x8x32xf32>
    %95 = arith.truncf %94 : vector<2x8x32xf32> to vector<2x8x32xbf16>
    %96 = vector.extract_strided_slice %66 {offsets = [0, 32], sizes = [16, 32], strides = [1, 1]} : vector<16x128xf32> to vector<16x32xf32>
    %97 = vector.shape_cast %96 : vector<16x32xf32> to vector<2x8x32xf32>
    %98 = arith.truncf %97 : vector<2x8x32xf32> to vector<2x8x32xbf16>
    %99 = vector.extract_strided_slice %69 {offsets = [0, 32], sizes = [16, 32], strides = [1, 1]} : vector<16x128xf32> to vector<16x32xf32>
    %100 = vector.shape_cast %99 : vector<16x32xf32> to vector<2x8x32xf32>
    %101 = arith.truncf %100 : vector<2x8x32xf32> to vector<2x8x32xbf16>
    %cst_51 = arith.constant dense<0.000000e+00> : vector<2x8x8xf32>
    %102 = tpu.matmul %95, %98, %cst_51 {dimension_numbers = #tpu.dot_dimension_numbers<[2], [2], [1], [1], [0, 0, 0, 1, 1, 1], [0], [0]>} : vector<2x8x32xbf16>, vector<2x8x32xbf16>, vector<2x8x8xf32> -> vector<2x8x8xf32>
    %cst_52 = arith.constant dense<0xFF800000> : vector<2x8xf32>
    %103 = vector.multi_reduction <maximumf>, %102, %cst_52 [2] : vector<2x8x8xf32> to vector<2x8xf32>
    %104 = vector.shape_cast %103 : vector<2x8xf32> to vector<2x8x1xf32>
    %105 = vector.broadcast %104 : vector<2x8x1xf32> to vector<2x8x8xf32>
    %106 = arith.subf %102, %105 : vector<2x8x8xf32>
    %107 = math.exp %106 : vector<2x8x8xf32>
    %cst_53 = arith.constant dense<0.000000e+00> : vector<2x8xf32>
    %108 = vector.multi_reduction <add>, %107, %cst_53 [2] : vector<2x8x8xf32> to vector<2x8xf32>
    %109 = vector.shape_cast %108 : vector<2x8xf32> to vector<2x8x1xf32>
    %110 = tpu.reciprocal %109 {approx = true} : vector<2x8x1xf32> -> vector<2x8x1xf32>
    %111 = vector.broadcast %110 : vector<2x8x1xf32> to vector<2x8x8xf32>
    %112 = arith.mulf %107, %111 : vector<2x8x8xf32>
    %113 = arith.truncf %112 : vector<2x8x8xf32> to vector<2x8x8xbf16>
    %cst_54 = arith.constant dense<0.000000e+00> : vector<2x8x32xf32>
    %114 = tpu.matmul %113, %101, %cst_54 {dimension_numbers = #tpu.dot_dimension_numbers<[2], [1], [1], [2], [0, 0, 0, 1, 1, 2], [0], [0]>} : vector<2x8x8xbf16>, vector<2x8x32xbf16>, vector<2x8x32xf32> -> vector<2x8x32xf32>
    %115 = vector.shape_cast %114 : vector<2x8x32xf32> to vector<16x32xf32>
    %116 = vector.extract_strided_slice %63 {offsets = [0, 64], sizes = [16, 32], strides = [1, 1]} : vector<16x128xf32> to vector<16x32xf32>
    %117 = vector.shape_cast %116 : vector<16x32xf32> to vector<2x8x32xf32>
    %118 = arith.truncf %117 : vector<2x8x32xf32> to vector<2x8x32xbf16>
    %119 = vector.extract_strided_slice %66 {offsets = [0, 64], sizes = [16, 32], strides = [1, 1]} : vector<16x128xf32> to vector<16x32xf32>
    %120 = vector.shape_cast %119 : vector<16x32xf32> to vector<2x8x32xf32>
    %121 = arith.truncf %120 : vector<2x8x32xf32> to vector<2x8x32xbf16>
    %122 = vector.extract_strided_slice %69 {offsets = [0, 64], sizes = [16, 32], strides = [1, 1]} : vector<16x128xf32> to vector<16x32xf32>
    %123 = vector.shape_cast %122 : vector<16x32xf32> to vector<2x8x32xf32>
    %124 = arith.truncf %123 : vector<2x8x32xf32> to vector<2x8x32xbf16>
    %cst_55 = arith.constant dense<0.000000e+00> : vector<2x8x8xf32>
    %125 = tpu.matmul %118, %121, %cst_55 {dimension_numbers = #tpu.dot_dimension_numbers<[2], [2], [1], [1], [0, 0, 0, 1, 1, 1], [0], [0]>} : vector<2x8x32xbf16>, vector<2x8x32xbf16>, vector<2x8x8xf32> -> vector<2x8x8xf32>
    %cst_56 = arith.constant dense<0xFF800000> : vector<2x8xf32>
    %126 = vector.multi_reduction <maximumf>, %125, %cst_56 [2] : vector<2x8x8xf32> to vector<2x8xf32>
    %127 = vector.shape_cast %126 : vector<2x8xf32> to vector<2x8x1xf32>
    %128 = vector.broadcast %127 : vector<2x8x1xf32> to vector<2x8x8xf32>
    %129 = arith.subf %125, %128 : vector<2x8x8xf32>
    %130 = math.exp %129 : vector<2x8x8xf32>
    %cst_57 = arith.constant dense<0.000000e+00> : vector<2x8xf32>
    %131 = vector.multi_reduction <add>, %130, %cst_57 [2] : vector<2x8x8xf32> to vector<2x8xf32>
    %132 = vector.shape_cast %131 : vector<2x8xf32> to vector<2x8x1xf32>
    %133 = tpu.reciprocal %132 {approx = true} : vector<2x8x1xf32> -> vector<2x8x1xf32>
    %134 = vector.broadcast %133 : vector<2x8x1xf32> to vector<2x8x8xf32>
    %135 = arith.mulf %130, %134 : vector<2x8x8xf32>
    %136 = arith.truncf %135 : vector<2x8x8xf32> to vector<2x8x8xbf16>
    %cst_58 = arith.constant dense<0.000000e+00> : vector<2x8x32xf32>
    %137 = tpu.matmul %136, %124, %cst_58 {dimension_numbers = #tpu.dot_dimension_numbers<[2], [1], [1], [2], [0, 0, 0, 1, 1, 2], [0], [0]>} : vector<2x8x8xbf16>, vector<2x8x32xbf16>, vector<2x8x32xf32> -> vector<2x8x32xf32>
    %138 = vector.shape_cast %137 : vector<2x8x32xf32> to vector<16x32xf32>
    %139 = vector.extract_strided_slice %63 {offsets = [0, 96], sizes = [16, 32], strides = [1, 1]} : vector<16x128xf32> to vector<16x32xf32>
    %140 = vector.shape_cast %139 : vector<16x32xf32> to vector<2x8x32xf32>
    %141 = arith.truncf %140 : vector<2x8x32xf32> to vector<2x8x32xbf16>
    %142 = vector.extract_strided_slice %66 {offsets = [0, 96], sizes = [16, 32], strides = [1, 1]} : vector<16x128xf32> to vector<16x32xf32>
    %143 = vector.shape_cast %142 : vector<16x32xf32> to vector<2x8x32xf32>
    %144 = arith.truncf %143 : vector<2x8x32xf32> to vector<2x8x32xbf16>
    %145 = vector.extract_strided_slice %69 {offsets = [0, 96], sizes = [16, 32], strides = [1, 1]} : vector<16x128xf32> to vector<16x32xf32>
    %146 = vector.shape_cast %145 : vector<16x32xf32> to vector<2x8x32xf32>
    %147 = arith.truncf %146 : vector<2x8x32xf32> to vector<2x8x32xbf16>
    %cst_59 = arith.constant dense<0.000000e+00> : vector<2x8x8xf32>
    %148 = tpu.matmul %141, %144, %cst_59 {dimension_numbers = #tpu.dot_dimension_numbers<[2], [2], [1], [1], [0, 0, 0, 1, 1, 1], [0], [0]>} : vector<2x8x32xbf16>, vector<2x8x32xbf16>, vector<2x8x8xf32> -> vector<2x8x8xf32>
    %cst_60 = arith.constant dense<0xFF800000> : vector<2x8xf32>
    %149 = vector.multi_reduction <maximumf>, %148, %cst_60 [2] : vector<2x8x8xf32> to vector<2x8xf32>
    %150 = vector.shape_cast %149 : vector<2x8xf32> to vector<2x8x1xf32>
    %151 = vector.broadcast %150 : vector<2x8x1xf32> to vector<2x8x8xf32>
    %152 = arith.subf %148, %151 : vector<2x8x8xf32>
    %153 = math.exp %152 : vector<2x8x8xf32>
    %cst_61 = arith.constant dense<0.000000e+00> : vector<2x8xf32>
    %154 = vector.multi_reduction <add>, %153, %cst_61 [2] : vector<2x8x8xf32> to vector<2x8xf32>
    %155 = vector.shape_cast %154 : vector<2x8xf32> to vector<2x8x1xf32>
    %156 = tpu.reciprocal %155 {approx = true} : vector<2x8x1xf32> -> vector<2x8x1xf32>
    %157 = vector.broadcast %156 : vector<2x8x1xf32> to vector<2x8x8xf32>
    %158 = arith.mulf %153, %157 : vector<2x8x8xf32>
    %159 = arith.truncf %158 : vector<2x8x8xf32> to vector<2x8x8xbf16>
    %cst_62 = arith.constant dense<0.000000e+00> : vector<2x8x32xf32>
    %160 = tpu.matmul %159, %147, %cst_62 {dimension_numbers = #tpu.dot_dimension_numbers<[2], [1], [1], [2], [0, 0, 0, 1, 1, 2], [0], [0]>} : vector<2x8x8xbf16>, vector<2x8x32xbf16>, vector<2x8x32xf32> -> vector<2x8x32xf32>
    %161 = vector.shape_cast %160 : vector<2x8x32xf32> to vector<16x32xf32>
    %162 = tpu.concatenate %92, %115, %138, %161 in 1 : vector<16x32xf32>, vector<16x32xf32>, vector<16x32xf32>, vector<16x32xf32> -> vector<16x128xf32>
    %163 = arith.truncf %162 : vector<16x128xf32> to vector<16x128xbf16>
    %c0_63 = arith.constant 0 : index
    %c0_64 = arith.constant 0 : index
    %164 = vector.load %arg5[%c0_63, %c0_64] : memref<128x128xbf16, #tpu.memory_space<vmem>>, vector<128x128xbf16>
    %cst_65 = arith.constant dense<0.000000e+00> : vector<16x128xf32>
    %165 = tpu.matmul %163, %164, %cst_65 {dimension_numbers = #tpu.dot_dimension_numbers<[1], [0], [0], [1], [0, 0, 1, 1], [], []>} : vector<16x128xbf16>, vector<128x128xbf16>, vector<16x128xf32> -> vector<16x128xf32>
    %166 = vector.broadcast %2 : vector<1x128xf32> to vector<16x128xf32>
    %167 = arith.addf %165, %166 : vector<16x128xf32>
    %168 = arith.addf %57, %167 : vector<16x128xf32>
    %cst_66 = arith.constant dense<0.000000e+00> : vector<16xf32>
    %169 = vector.multi_reduction <add>, %168, %cst_66 [1] : vector<16x128xf32> to vector<16xf32>
    %170 = vector.shape_cast %169 : vector<16xf32> to vector<16x1xf32>
    %cst_67 = arith.constant 1.280000e+02 : f32
    %171 = vector.broadcast %cst_67 : f32 to vector<16x1xf32>
    %172 = arith.divf %170, %171 : vector<16x1xf32>
    %173 = vector.broadcast %172 : vector<16x1xf32> to vector<16x128xf32>
    %174 = arith.subf %168, %173 : vector<16x128xf32>
    %175 = arith.mulf %174, %174 : vector<16x128xf32>
    %cst_68 = arith.constant dense<0.000000e+00> : vector<16xf32>
    %176 = vector.multi_reduction <add>, %175, %cst_68 [1] : vector<16x128xf32> to vector<16xf32>
    %177 = vector.shape_cast %176 : vector<16xf32> to vector<16x1xf32>
    %cst_69 = arith.constant 1.280000e+02 : f32
    %178 = vector.broadcast %cst_69 : f32 to vector<16x1xf32>
    %179 = arith.divf %177, %178 : vector<16x1xf32>
    %cst_70 = arith.constant 9.99999974E-6 : f32
    %180 = vector.broadcast %cst_70 : f32 to vector<16x1xf32>
    %181 = arith.addf %179, %180 : vector<16x1xf32>
    %182 = math.rsqrt %181 : vector<16x1xf32>
    %183 = vector.broadcast %182 : vector<16x1xf32> to vector<16x128xf32>
    %184 = arith.mulf %174, %183 : vector<16x128xf32>
    %185 = vector.broadcast %3 : vector<1x128xf32> to vector<16x128xf32>
    %186 = arith.mulf %184, %185 : vector<16x128xf32>
    %187 = vector.broadcast %4 : vector<1x128xf32> to vector<16x128xf32>
    %188 = arith.addf %186, %187 : vector<16x128xf32>
    %189 = arith.truncf %188 : vector<16x128xf32> to vector<16x128xbf16>
    %cst_71 = arith.constant 0.000000e+00 : f32
    %190 = vector.broadcast %cst_71 : f32 to vector<16x128xf32>
    %c0_72 = arith.constant 0 : index
    %c0_73 = arith.constant 0 : index
    %191 = vector.load %arg2[%c0_72, %c0_73] : memref<128x2048xbf16, #tpu.memory_space<vmem>>, vector<128x512xbf16>
    %cst_74 = arith.constant dense<0.000000e+00> : vector<16x512xf32>
    %192 = tpu.matmul %189, %191, %cst_74 {dimension_numbers = #tpu.dot_dimension_numbers<[1], [0], [0], [1], [0, 0, 1, 1], [], []>} : vector<16x128xbf16>, vector<128x512xbf16>, vector<16x512xf32> -> vector<16x512xf32>
    %c0_75 = arith.constant 0 : index
    %c0_76 = arith.constant 0 : index
    %193 = vector.load %arg6[%c0_75, %c0_76] : memref<1x2048xf32, #tpu.memory_space<vmem>>, vector<1x512xf32>
    %194 = vector.broadcast %193 : vector<1x512xf32> to vector<16x512xf32>
    %195 = arith.addf %192, %194 : vector<16x512xf32>
    %cst_77 = arith.constant 0.000000e+00 : f32
    %196 = vector.broadcast %cst_77 : f32 to vector<16x512xf32>
    %197 = arith.maximumf %195, %196 : vector<16x512xf32>
    %198 = arith.truncf %197 : vector<16x512xf32> to vector<16x512xbf16>
    %c0_78 = arith.constant 0 : index
    %c0_79 = arith.constant 0 : index
    %199 = vector.load %arg3[%c0_78, %c0_79] : memref<2048x128xbf16, #tpu.memory_space<vmem>>, vector<512x128xbf16>
    %cst_80 = arith.constant dense<0.000000e+00> : vector<16x128xf32>
    %200 = tpu.matmul %198, %199, %cst_80 {dimension_numbers = #tpu.dot_dimension_numbers<[1], [0], [0], [1], [0, 0, 1, 1], [], []>} : vector<16x512xbf16>, vector<512x128xbf16>, vector<16x128xf32> -> vector<16x128xf32>
    %201 = arith.addf %190, %200 : vector<16x128xf32>
    %c0_81 = arith.constant 0 : index
    %c512_82 = arith.constant 512 : index
    %202 = vector.load %arg2[%c0_81, %c512_82] : memref<128x2048xbf16, #tpu.memory_space<vmem>>, vector<128x512xbf16>
    %cst_83 = arith.constant dense<0.000000e+00> : vector<16x512xf32>
    %203 = tpu.matmul %189, %202, %cst_83 {dimension_numbers = #tpu.dot_dimension_numbers<[1], [0], [0], [1], [0, 0, 1, 1], [], []>} : vector<16x128xbf16>, vector<128x512xbf16>, vector<16x512xf32> -> vector<16x512xf32>
    %c0_84 = arith.constant 0 : index
    %c512_85 = arith.constant 512 : index
    %204 = vector.load %arg6[%c0_84, %c512_85] : memref<1x2048xf32, #tpu.memory_space<vmem>>, vector<1x512xf32>
    %205 = vector.broadcast %204 : vector<1x512xf32> to vector<16x512xf32>
    %206 = arith.addf %203, %205 : vector<16x512xf32>
    %cst_86 = arith.constant 0.000000e+00 : f32
    %207 = vector.broadcast %cst_86 : f32 to vector<16x512xf32>
    %208 = arith.maximumf %206, %207 : vector<16x512xf32>
    %209 = arith.truncf %208 : vector<16x512xf32> to vector<16x512xbf16>
    %c512_87 = arith.constant 512 : index
    %c0_88 = arith.constant 0 : index
    %210 = vector.load %arg3[%c512_87, %c0_88] : memref<2048x128xbf16, #tpu.memory_space<vmem>>, vector<512x128xbf16>
    %cst_89 = arith.constant dense<0.000000e+00> : vector<16x128xf32>
    %211 = tpu.matmul %209, %210, %cst_89 {dimension_numbers = #tpu.dot_dimension_numbers<[1], [0], [0], [1], [0, 0, 1, 1], [], []>} : vector<16x512xbf16>, vector<512x128xbf16>, vector<16x128xf32> -> vector<16x128xf32>
    %212 = arith.addf %201, %211 : vector<16x128xf32>
    %c0_90 = arith.constant 0 : index
    %c1024_91 = arith.constant 1024 : index
    %213 = vector.load %arg2[%c0_90, %c1024_91] : memref<128x2048xbf16, #tpu.memory_space<vmem>>, vector<128x512xbf16>
    %cst_92 = arith.constant dense<0.000000e+00> : vector<16x512xf32>
    %214 = tpu.matmul %189, %213, %cst_92 {dimension_numbers = #tpu.dot_dimension_numbers<[1], [0], [0], [1], [0, 0, 1, 1], [], []>} : vector<16x128xbf16>, vector<128x512xbf16>, vector<16x512xf32> -> vector<16x512xf32>
    %c0_93 = arith.constant 0 : index
    %c1024_94 = arith.constant 1024 : index
    %215 = vector.load %arg6[%c0_93, %c1024_94] : memref<1x2048xf32, #tpu.memory_space<vmem>>, vector<1x512xf32>
    %216 = vector.broadcast %215 : vector<1x512xf32> to vector<16x512xf32>
    %217 = arith.addf %214, %216 : vector<16x512xf32>
    %cst_95 = arith.constant 0.000000e+00 : f32
    %218 = vector.broadcast %cst_95 : f32 to vector<16x512xf32>
    %219 = arith.maximumf %217, %218 : vector<16x512xf32>
    %220 = arith.truncf %219 : vector<16x512xf32> to vector<16x512xbf16>
    %c1024_96 = arith.constant 1024 : index
    %c0_97 = arith.constant 0 : index
    %221 = vector.load %arg3[%c1024_96, %c0_97] : memref<2048x128xbf16, #tpu.memory_space<vmem>>, vector<512x128xbf16>
    %cst_98 = arith.constant dense<0.000000e+00> : vector<16x128xf32>
    %222 = tpu.matmul %220, %221, %cst_98 {dimension_numbers = #tpu.dot_dimension_numbers<[1], [0], [0], [1], [0, 0, 1, 1], [], []>} : vector<16x512xbf16>, vector<512x128xbf16>, vector<16x128xf32> -> vector<16x128xf32>
    %223 = arith.addf %212, %222 : vector<16x128xf32>
    %c0_99 = arith.constant 0 : index
    %c1536_100 = arith.constant 1536 : index
    %224 = vector.load %arg2[%c0_99, %c1536_100] : memref<128x2048xbf16, #tpu.memory_space<vmem>>, vector<128x512xbf16>
    %cst_101 = arith.constant dense<0.000000e+00> : vector<16x512xf32>
    %225 = tpu.matmul %189, %224, %cst_101 {dimension_numbers = #tpu.dot_dimension_numbers<[1], [0], [0], [1], [0, 0, 1, 1], [], []>} : vector<16x128xbf16>, vector<128x512xbf16>, vector<16x512xf32> -> vector<16x512xf32>
    %c0_102 = arith.constant 0 : index
    %c1536_103 = arith.constant 1536 : index
    %226 = vector.load %arg6[%c0_102, %c1536_103] : memref<1x2048xf32, #tpu.memory_space<vmem>>, vector<1x512xf32>
    %227 = vector.broadcast %226 : vector<1x512xf32> to vector<16x512xf32>
    %228 = arith.addf %225, %227 : vector<16x512xf32>
    %cst_104 = arith.constant 0.000000e+00 : f32
    %229 = vector.broadcast %cst_104 : f32 to vector<16x512xf32>
    %230 = arith.maximumf %228, %229 : vector<16x512xf32>
    %231 = arith.truncf %230 : vector<16x512xf32> to vector<16x512xbf16>
    %c1536_105 = arith.constant 1536 : index
    %c0_106 = arith.constant 0 : index
    %232 = vector.load %arg3[%c1536_105, %c0_106] : memref<2048x128xbf16, #tpu.memory_space<vmem>>, vector<512x128xbf16>
    %cst_107 = arith.constant dense<0.000000e+00> : vector<16x128xf32>
    %233 = tpu.matmul %231, %232, %cst_107 {dimension_numbers = #tpu.dot_dimension_numbers<[1], [0], [0], [1], [0, 0, 1, 1], [], []>} : vector<16x512xbf16>, vector<512x128xbf16>, vector<16x128xf32> -> vector<16x128xf32>
    %234 = arith.addf %223, %233 : vector<16x128xf32>
    %235 = vector.broadcast %1 : vector<1x128xf32> to vector<16x128xf32>
    %236 = arith.addf %234, %235 : vector<16x128xf32>
    %237 = arith.addf %188, %236 : vector<16x128xf32>
    %cst_108 = arith.constant dense<0.000000e+00> : vector<16xf32>
    %238 = vector.multi_reduction <add>, %237, %cst_108 [1] : vector<16x128xf32> to vector<16xf32>
    %239 = vector.shape_cast %238 : vector<16xf32> to vector<16x1xf32>
    %cst_109 = arith.constant 1.280000e+02 : f32
    %240 = vector.broadcast %cst_109 : f32 to vector<16x1xf32>
    %241 = arith.divf %239, %240 : vector<16x1xf32>
    %242 = vector.broadcast %241 : vector<16x1xf32> to vector<16x128xf32>
    %243 = arith.subf %237, %242 : vector<16x128xf32>
    %244 = arith.mulf %243, %243 : vector<16x128xf32>
    %cst_110 = arith.constant dense<0.000000e+00> : vector<16xf32>
    %245 = vector.multi_reduction <add>, %244, %cst_110 [1] : vector<16x128xf32> to vector<16xf32>
    %246 = vector.shape_cast %245 : vector<16xf32> to vector<16x1xf32>
    %cst_111 = arith.constant 1.280000e+02 : f32
    %247 = vector.broadcast %cst_111 : f32 to vector<16x1xf32>
    %248 = arith.divf %246, %247 : vector<16x1xf32>
    %cst_112 = arith.constant 9.99999974E-6 : f32
    %249 = vector.broadcast %cst_112 : f32 to vector<16x1xf32>
    %250 = arith.addf %248, %249 : vector<16x1xf32>
    %251 = math.rsqrt %250 : vector<16x1xf32>
    %252 = vector.broadcast %251 : vector<16x1xf32> to vector<16x128xf32>
    %253 = arith.mulf %243, %252 : vector<16x128xf32>
    %254 = vector.broadcast %5 : vector<1x128xf32> to vector<16x128xf32>
    %255 = arith.mulf %253, %254 : vector<16x128xf32>
    %256 = vector.broadcast %6 : vector<1x128xf32> to vector<16x128xf32>
    %257 = arith.addf %255, %256 : vector<16x128xf32>
    %c0_113 = arith.constant 0 : index
    %c0_114 = arith.constant 0 : index
    %258 = vector.load %arg8[%c0_113, %c0_114] : memref<16x128xf32, #tpu.memory_space<vmem>>, vector<16x128xf32>
    tpu.vector_store %arg8[%c0_113, %c0_114], %257 {strides = array<i32>} : memref<16x128xf32, #tpu.memory_space<vmem>>, vector<16x128xf32>,
    return
  }
  func.func @transform_0(%arg0: i32) -> (i32, i32) {
    %c0_i32 = arith.constant 0 : i32
    %c0_i32_0 = arith.constant 0 : i32
    %c0_i32_1 = arith.constant 0 : i32
    return %c0_i32, %c0_i32_0 : i32, i32
  }
  func.func @transform_1(%arg0: i32) -> (i32, i32) {
    %c0_i32 = arith.constant 0 : i32
    %c0_i32_0 = arith.constant 0 : i32
    %c0_i32_1 = arith.constant 0 : i32
    return %c0_i32, %c0_i32_0 : i32, i32
  }
  func.func @transform_2(%arg0: i32) -> (i32, i32) {
    %c0_i32 = arith.constant 0 : i32
    %c0_i32_0 = arith.constant 0 : i32
    %c0_i32_1 = arith.constant 0 : i32
    return %c0_i32, %c0_i32_0 : i32, i32
  }
  func.func @transform_3(%arg0: i32) -> (i32, i32) {
    %c0_i32 = arith.constant 0 : i32
    %c0_i32_0 = arith.constant 0 : i32
    %c0_i32_1 = arith.constant 0 : i32
    return %c0_i32, %c0_i32_0 : i32, i32
  }
  func.func @transform_4(%arg0: i32) -> (i32, i32) {
    %c0_i32 = arith.constant 0 : i32
    %c0_i32_0 = arith.constant 0 : i32
    %c0_i32_1 = arith.constant 0 : i32
    return %c0_i32, %c0_i32_0 : i32, i32
  }
  func.func @transform_5(%arg0: i32) -> (i32, i32) {
    %c0_i32 = arith.constant 0 : i32
    %c0_i32_0 = arith.constant 0 : i32
    %c0_i32_1 = arith.constant 0 : i32
    return %c0_i32, %c0_i32_0 : i32, i32
  }
  func.func @transform_6(%arg0: i32) -> (i32, i32) {
    %c0_i32 = arith.constant 0 : i32
    %c0_i32_0 = arith.constant 0 : i32
    %c0_i32_1 = arith.constant 0 : i32
    return %c0_i32, %c0_i32_0 : i32, i32
  }
  func.func @transform_7(%arg0: i32) -> (i32, i32) {
    %c0_i32 = arith.constant 0 : i32
    %c0_i32_0 = arith.constant 0 : i32
    %c0_i32_1 = arith.constant 0 : i32
    return %c0_i32, %c0_i32_0 : i32, i32
  }
}

</mosaic_0001>

<llo_original>
// kernel: transformer_layer.1
$region0: #{transformer_layer.1}
  #allocation0 [shape = 'u32[]', space=smem, size = 0x4, offset = 0x4, fixed_abs, tag = 'smem constant byte address 0x4 - core index']
  #allocation1 [shape = 'u32[144,128]{1,0:T(1,128)}', space=vmem, size = 0x12000, scoped, tag = 'internal scratch']
  %s0 = inlined_call_operand.vmem [shape: f32[16,128], index: 0, kind: input, shape index: {}]
  %s1 = inlined_call_operand.hbm [shape: bf16[128,2048], index: 1, kind: input, shape index: {}]
  %s2 = inlined_call_operand.hbm [shape: bf16[2048,128], index: 2, kind: input, shape index: {}]
  %s3 = inlined_call_operand.hbm [shape: bf16[128,384], index: 3, kind: input, shape index: {}]
  %s4 = inlined_call_operand.hbm [shape: bf16[128,128], index: 4, kind: input, shape index: {}]
  %s5 = inlined_call_operand.vmem [shape: f32[1,2048], index: 5, kind: input, shape index: {}]
  %s6 = inlined_call_operand.vmem [shape: f32[9,128], index: 6, kind: input, shape index: {}]
  %s7 = inlined_call_operand.vmem [shape: f32[16,128], index: 7, kind: output, shape index: {}]
  %s8 = sld [smem:[#allocation0]]
  $region54: #{transformer_layer.1} parent=0
    _
  %s10 = ssub.s32 1, %s8
  %s11 = scalar_select 0, %s10, %s8
  $region1: #{transformer_layer.1} parent=0
    #allocation2 [shape = 'u8[524288]{0}', space=vmem, size = 0x80000, scoped, tag = 'input window, operand 1, single buffered']
    #allocation3 [shape = 's32[1]{0}', space=sflag, size = 0x4, scoped, tag = 'scoped memory for transformer_layer.1']
    #allocation4 [shape = 'u8[524288]{0}', space=vmem, size = 0x80000, scoped, tag = 'input window, operand 2, single buffered']
    #allocation5 [shape = 's32[1]{0}', space=sflag, size = 0x4, scoped, tag = 'scoped memory for transformer_layer.1']
    #allocation6 [shape = 'u8[98304]{0}', space=vmem, size = 0x18000, scoped, tag = 'input window, operand 3, single buffered']
    #allocation7 [shape = 'u8[32768]{0}', space=vmem, size = 0x8000, scoped, tag = 'input window, operand 4, single buffered']
    #allocation8 [shape = 's32[1]{0}', space=sflag, size = 0x4, scoped, tag = 'scoped memory for transformer_layer.1']
    %12 = vsyncpa [#allocation3], 0
    %13 = vsyncpa [#allocation5], 0
    %14 = vsyncpa [#allocation8], 0
    // Predicated region
    $region2: #{transformer_layer.1} parent=1 // pred_check
      _
    $region3: #{transformer_layer.1} parent=1 // pred_check_branch
      %16 = sbr.rel (0) target = $region5
    $region4: #{transformer_layer.1} parent=1 // pred_region
      _
    $region5: #{transformer_layer.1} parent=1 // pred_fallthru
      _
    // Predicated region
    $region6: #{transformer_layer.1} parent=1 // pred_check
      _
    $region7: #{transformer_layer.1} parent=1 // pred_check_branch
      %18 = sbr.rel (0) target = $region9
    $region8: #{transformer_layer.1} parent=1 // pred_region
      %s20 = ssub.s32 16384, 16384
      %21 = vsyncadd [#allocation3], %s20
      %s22 = sshll.u32 [#allocation2], 4
      %s23 = int_to_ptr.vmem [resolvable:$true] %s22
      %28 = dma.hbm_to_vmem [thread:$0]  %s1, 16384, %s23, [#allocation3], 1024, 1024, 64
    $region9: #{transformer_layer.1} parent=1 // pred_fallthru
      _
    // Predicated region
    $region10: #{transformer_layer.1} parent=1 // pred_check
      _
    $region11: #{transformer_layer.1} parent=1 // pred_check_branch
      %30 = sbr.rel (0) target = $region13
    $region12: #{transformer_layer.1} parent=1 // pred_region
      %s32 = ssub.s32 16384, 16384
      %33 = vsyncadd [#allocation5], %s32
      %s34 = sshll.u32 [#allocation4], 4
      %s35 = int_to_ptr.vmem [resolvable:$true] %s34
      %40 = dma.hbm_to_vmem [thread:$0]  %s2, 16384, %s35, [#allocation5], 64, 64, 4
    $region13: #{transformer_layer.1} parent=1 // pred_fallthru
      _
    // Predicated region
    $region14: #{transformer_layer.1} parent=1 // pred_check
      _
    $region15: #{transformer_layer.1} parent=1 // pred_check_branch
      %42 = sbr.rel (0) target = $region17
    $region16: #{transformer_layer.1} parent=1 // pred_region
      %s44 = ssub.s32 3072, 3072
      %45 = vsyncadd [#allocation5], %s44
      %s46 = sshll.u32 [#allocation6], 4
      %s47 = int_to_ptr.vmem [resolvable:$true] %s46
      %52 = dma.hbm_to_vmem [thread:$0]  %s3, 3072, %s47, [#allocation5], 192, 192, 12
    $region17: #{transformer_layer.1} parent=1 // pred_fallthru
      _
    // Predicated region
    $region18: #{transformer_layer.1} parent=1 // pred_check
      _
    $region19: #{transformer_layer.1} parent=1 // pred_check_branch
      %54 = sbr.rel (0) target = $region21
    $region20: #{transformer_layer.1} parent=1 // pred_region
      %s56 = ssub.s32 1024, 1024
      %57 = vsyncadd [#allocation8], %s56
      %s58 = sshll.u32 [#allocation7], 4
      %s59 = int_to_ptr.vmem [resolvable:$true] %s58
      %64 = dma.hbm_to_vmem [thread:$0]  %s4, 1024, %s59, [#allocation8], 64, 64, 4
    $region21: #{transformer_layer.1} parent=1 // pred_fallthru
      _
    // Predicated region
    $region22: #{transformer_layer.1} parent=1 // pred_check
      _
    $region23: #{transformer_layer.1} parent=1 // pred_check_branch
      %66 = sbr.rel (0) target = $region25
    $region24: #{transformer_layer.1} parent=1 // pred_region
      _
    $region25: #{transformer_layer.1} parent=1 // pred_fallthru
      _
    // Predicated region
    $region26: #{transformer_layer.1} parent=1 // pred_check
      _
    $region27: #{transformer_layer.1} parent=1 // pred_check_branch
      %68 = sbr.rel (0) target = $region29
    $region28: #{transformer_layer.1} parent=1 // pred_region
      _
    $region29: #{transformer_layer.1} parent=1 // pred_fallthru
      _
    // Predicated region
    $region30: #{transformer_layer.1} parent=1 // pred_check
      _
    $region31: #{transformer_layer.1} parent=1 // pred_check_branch
      %70 = sbr.rel (0) target = $region33
    $region32: #{transformer_layer.1} parent=1 // pred_region
      %71 = dma.done [#allocation3], 16384
    $region33: #{transformer_layer.1} parent=1 // pred_fallthru
      _
    // Predicated region
    $region34: #{transformer_layer.1} parent=1 // pred_check
      _
    $region35: #{transformer_layer.1} parent=1 // pred_check_branch
      %73 = sbr.rel (0) target = $region37
    $region36: #{transformer_layer.1} parent=1 // pred_region
      %74 = dma.done [#allocation5], 16384
    $region37: #{transformer_layer.1} parent=1 // pred_fallthru
      _
    // Predicated region
    $region38: #{transformer_layer.1} parent=1 // pred_check
      _
    $region39: #{transformer_layer.1} parent=1 // pred_check_branch
      %76 = sbr.rel (0) target = $region41
    $region40: #{transformer_layer.1} parent=1 // pred_region
      %77 = dma.done [#allocation5], 3072
    $region41: #{transformer_layer.1} parent=1 // pred_fallthru
      _
    // Predicated region
    $region42: #{transformer_layer.1} parent=1 // pred_check
      _
    $region43: #{transformer_layer.1} parent=1 // pred_check_branch
      %79 = sbr.rel (0) target = $region45
    $region44: #{transformer_layer.1} parent=1 // pred_region
      %80 = dma.done [#allocation8], 1024
    $region45: #{transformer_layer.1} parent=1 // pred_fallthru
      _
    %v82 = vld [vmem:[%s0] sm:$0xff]
    %v83 = vld [vmem:[%s0 + $0x8] sm:$0xff]
    %v84 = vld [vmem:[%s6] sm:$0x1]
    %v85 = vld [vmem:[%s6 + $0x1] sm:$0x1]
    %v86 = vld [vmem:[%s6 + $0x2] sm:$0x1]
    %v87 = vld [vmem:[%s6 + $0x3] sm:$0x1]
    %v88 = vld [vmem:[%s6 + $0x4] sm:$0x1]
    %v89 = vld [vmem:[%s6 + $0x5] sm:$0x1]
    %v90 = vld [vmem:[%s6 + $0x6] sm:$0x1]
    %v91 = vld [vmem:[%s6 + $0x7] sm:$0x1]
    %v92 = vld [vmem:[%s6 + $0x8] sm:$0x1]
    %v93 = vpack.c.bf16 %v83, %v82
    %v94 = vld [vmem:[#allocation2] sm:$0xff]
    %v95 = vld [vmem:[#allocation2 + $0x8] sm:$0xff]
    %v96 = vld [vmem:[#allocation2 + $0x40] sm:$0xff]
    %v97 = vld [vmem:[#allocation2 + $0x48] sm:$0xff]
    %v98 = vld [vmem:[#allocation2 + $0x80] sm:$0xff]
    %v99 = vld [vmem:[#allocation2 + $0x88] sm:$0xff]
    %v100 = vld [vmem:[#allocation2 + $0xc0] sm:$0xff]
    %v101 = vld [vmem:[#allocation2 + $0xc8] sm:$0xff]
    %v102 = vld [vmem:[#allocation2 + $0x100] sm:$0xff]
    %v103 = vld [vmem:[#allocation2 + $0x108] sm:$0xff]
    %v104 = vld [vmem:[#allocation2 + $0x140] sm:$0xff]
    %v105 = vld [vmem:[#allocation2 + $0x148] sm:$0xff]
    %v106 = vld [vmem:[#allocation2 + $0x180] sm:$0xff]
    %v107 = vld [vmem:[#allocation2 + $0x188] sm:$0xff]
    %v108 = vld [vmem:[#allocation2 + $0x1c0] sm:$0xff]
    %v109 = vld [vmem:[#allocation2 + $0x1c8] sm:$0xff]
    %v110 = vld [vmem:[#allocation2 + $0x200] sm:$0xff]
    %v111 = vld [vmem:[#allocation2 + $0x208] sm:$0xff]
    %v112 = vld [vmem:[#allocation2 + $0x240] sm:$0xff]
    %v113 = vld [vmem:[#allocation2 + $0x248] sm:$0xff]
    %v114 = vld [vmem:[#allocation2 + $0x280] sm:$0xff]
    %v115 = vld [vmem:[#allocation2 + $0x288] sm:$0xff]
    %v116 = vld [vmem:[#allocation2 + $0x2c0] sm:$0xff]
    %v117 = vld [vmem:[#allocation2 + $0x2c8] sm:$0xff]
    %v118 = vld [vmem:[#allocation2 + $0x300] sm:$0xff]
    %v119 = vld [vmem:[#allocation2 + $0x308] sm:$0xff]
    %v120 = vld [vmem:[#allocation2 + $0x340] sm:$0xff]
    %v121 = vld [vmem:[#allocation2 + $0x348] sm:$0xff]
    %v122 = vld [vmem:[#allocation2 + $0x380] sm:$0xff]
    %v123 = vld [vmem:[#allocation2 + $0x388] sm:$0xff]
    %v124 = vld [vmem:[#allocation2 + $0x3c0] sm:$0xff]
    %v125 = vld [vmem:[#allocation2 + $0x3c8] sm:$0xff]
    %v126 = vld [vmem:[%s5] sm:$0xf]
    %v128 = vlaneseq
    %v129 = vshrl.u32 %v128, 7
    %v130 = vsub.s32 0, %v129
    %v131 = vrot.slane %v126, %v130
    %v132 = vlaneseq
    %v133 = vshrl.u32 %v132, 7
    %v134 = vsub.s32 1, %v133
    %v135 = vrot.slane %v126, %v134
    %v136 = vlaneseq
    %v137 = vshrl.u32 %v136, 7
    %v138 = vsub.s32 2, %v137
    %v139 = vrot.slane %v126, %v138
    %v140 = vlaneseq
    %v141 = vshrl.u32 %v140, 7
    %v142 = vsub.s32 3, %v141
    %v143 = vrot.slane %v126, %v142
    %v180 = vunpack.c.l.b16 %v94
    %v181 = vunpack.c.h.b16 %v94
    %v182 = vunpack.c.l.b16 %v95
    %v183 = vunpack.c.h.b16 %v95
    %v184 = vunpack.c.l.b16 %v96
    %v185 = vunpack.c.h.b16 %v96
    %v186 = vunpack.c.l.b16 %v97
    %v187 = vunpack.c.h.b16 %v97
    %v188 = vunpack.c.l.b16 %v98
    %v189 = vunpack.c.h.b16 %v98
    %v190 = vunpack.c.l.b16 %v99
    %v191 = vunpack.c.h.b16 %v99
    %v192 = vunpack.c.l.b16 %v100
    %v193 = vunpack.c.h.b16 %v100
    %v194 = vunpack.c.l.b16 %v101
    %v195 = vunpack.c.h.b16 %v101
    %v196 = vunpack.c.l.b16 %v102
    %v197 = vunpack.c.h.b16 %v102
    %v198 = vunpack.c.l.b16 %v103
    %v199 = vunpack.c.h.b16 %v103
    %v200 = vunpack.c.l.b16 %v104
    %v201 = vunpack.c.h.b16 %v104
    %v202 = vunpack.c.l.b16 %v105
    %v203 = vunpack.c.h.b16 %v105
    %v204 = vunpack.c.l.b16 %v106
    %v205 = vunpack.c.h.b16 %v106
    %v206 = vunpack.c.l.b16 %v107
    %v207 = vunpack.c.h.b16 %v107
    %v208 = vunpack.c.l.b16 %v108
    %v209 = vunpack.c.h.b16 %v108
    %v210 = vunpack.c.l.b16 %v109
    %v211 = vunpack.c.h.b16 %v109
    %v212 = vunpack.c.l.b16 %v110
    %v213 = vunpack.c.h.b16 %v110
    %v214 = vunpack.c.l.b16 %v111
    %v215 = vunpack.c.h.b16 %v111
    %v216 = vunpack.c.l.b16 %v112
    %v217 = vunpack.c.h.b16 %v112
    %v218 = vunpack.c.l.b16 %v113
    %v219 = vunpack.c.h.b16 %v113
    %v220 = vunpack.c.l.b16 %v114
    %v221 = vunpack.c.h.b16 %v114
    %v222 = vunpack.c.l.b16 %v115
    %v223 = vunpack.c.h.b16 %v115
    %v224 = vunpack.c.l.b16 %v116
    %v225 = vunpack.c.h.b16 %v116
    %v226 = vunpack.c.l.b16 %v117
    %v227 = vunpack.c.h.b16 %v117
    %v228 = vunpack.c.l.b16 %v118
    %v229 = vunpack.c.h.b16 %v118
    %v230 = vunpack.c.l.b16 %v119
    %v231 = vunpack.c.h.b16 %v119
    %v232 = vunpack.c.l.b16 %v120
    %v233 = vunpack.c.h.b16 %v120
    %v234 = vunpack.c.l.b16 %v121
    %v235 = vunpack.c.h.b16 %v121
    %v236 = vunpack.c.l.b16 %v122
    %v237 = vunpack.c.h.b16 %v122
    %v238 = vunpack.c.l.b16 %v123
    %v239 = vunpack.c.h.b16 %v123
    %v240 = vunpack.c.l.b16 %v124
    %v241 = vunpack.c.h.b16 %v124
    %v242 = vunpack.c.l.b16 %v125
    %v243 = vunpack.c.h.b16 %v125
    %v244 = vpack.c.b16 %v184, %v180
    %v245 = vpack.c.b16 %v185, %v181
    %v246 = vpack.c.b16 %v186, %v182
    %v247 = vpack.c.b16 %v187, %v183
    %v248 = vpack.c.b16 %v192, %v188
    %v249 = vpack.c.b16 %v193, %v189
    %v250 = vpack.c.b16 %v194, %v190
    %v251 = vpack.c.b16 %v195, %v191
    %v252 = vpack.c.b16 %v200, %v196
    %v253 = vpack.c.b16 %v201, %v197
    %v254 = vpack.c.b16 %v202, %v198
    %v255 = vpack.c.b16 %v203, %v199
    %v256 = vpack.c.b16 %v208, %v204
    %v257 = vpack.c.b16 %v209, %v205
    %v258 = vpack.c.b16 %v210, %v206
    %v259 = vpack.c.b16 %v211, %v207
    %v260 = vpack.c.b16 %v216, %v212
    %v261 = vpack.c.b16 %v217, %v213
    %v262 = vpack.c.b16 %v218, %v214
    %v263 = vpack.c.b16 %v219, %v215
    %v264 = vpack.c.b16 %v224, %v220
    %v265 = vpack.c.b16 %v225, %v221
    %v266 = vpack.c.b16 %v226, %v222
    %v267 = vpack.c.b16 %v227, %v223
    %v268 = vpack.c.b16 %v232, %v228
    %v269 = vpack.c.b16 %v233, %v229
    %v270 = vpack.c.b16 %v234, %v230
    %v271 = vpack.c.b16 %v235, %v231
    %v272 = vpack.c.b16 %v240, %v236
    %v273 = vpack.c.b16 %v241, %v237
    %v274 = vpack.c.b16 %v242, %v238
    %v275 = vpack.c.b16 %v243, %v239
    %308 = vmatprep.subr.bf16.mxu0 %v245
    %309 = vmatpush1.bf16.msra.mxu0 %v244
    %310 = vmatprep.subr.bf16.mxu0 %v249
    %311 = vmatpush1.bf16.msra.mxu0 %v248
    %312 = vmatprep.subr.bf16.mxu0 %v253
    %313 = vmatpush1.bf16.msra.mxu0 %v252
    %314 = vmatprep.subr.bf16.mxu0 %v257
    %315 = vmatpush1.bf16.msra.mxu0 %v256
    %316 = vmatprep.subr.bf16.mxu0 %v261
    %317 = vmatpush1.bf16.msra.mxu0 %v260
    %318 = vmatprep.subr.bf16.mxu0 %v265
    %319 = vmatpush1.bf16.msra.mxu0 %v264
    %320 = vmatprep.subr.bf16.mxu0 %v269
    %321 = vmatpush1.bf16.msra.mxu0 %v268
    %322 = vmatprep.subr.bf16.mxu0 %v273
    %323 = vmatpush1.bf16.msra.mxu0 %v272
    %324 = vmatprep.subr.bf16.mxu0 0
    %325 = vmatpush1.bf16.msra.mxu0 0
    %326 = vmatprep.subr.bf16.mxu0 0
    %327 = vmatpush1.bf16.msra.mxu0 0
    %328 = vmatprep.subr.bf16.mxu0 0
    %329 = vmatpush1.bf16.msra.mxu0 0
    %330 = vmatprep.subr.bf16.mxu0 0
    %331 = vmatpush1.bf16.msra.mxu0 0
    %332 = vmatprep.subr.bf16.mxu0 0
    %333 = vmatpush1.bf16.msra.mxu0 0
    %334 = vmatprep.subr.bf16.mxu0 0
    %335 = vmatpush1.bf16.msra.mxu0 0
    %336 = vmatprep.subr.bf16.mxu0 0
    %337 = vmatpush1.bf16.msra.mxu0 0
    %338 = vmatprep.subr.bf16.mxu0 0
    %339 = vmatpush1.bf16.msra.mxu0 0
    %340 = vmatprep.mubr.bf16.mxu0 0
    %341 = vmatmul.mubr.bf16.gmra.mrb[0].mxu0 %v93
    %v342 = vpop.f32.mrb[0].mxu0
    %v343 = vadd.f32 %v131, %v342
    %v344 = vpop.f32.mrb[0].mxu0
    %v345 = vadd.f32 %v135, %v344
    %v346 = vpop.f32.mrb[0].mxu0
    %v347 = vadd.f32 %v131, %v346
    %v348 = vpop.f32.mrb[0].mxu0
    %v349 = vadd.f32 %v135, %v348
    %350 = vdwg.mxu0
    %351 = vmatprep.subr.bf16.mxu0 %v247
    %352 = vmatpush1.bf16.msra.mxu0 %v246
    %353 = vmatprep.subr.bf16.mxu0 %v251
    %354 = vmatpush1.bf16.msra.mxu0 %v250
    %355 = vmatprep.subr.bf16.mxu0 %v255
    %356 = vmatpush1.bf16.msra.mxu0 %v254
    %357 = vmatprep.subr.bf16.mxu0 %v259
    %358 = vmatpush1.bf16.msra.mxu0 %v258
    %359 = vmatprep.subr.bf16.mxu0 %v263
    %360 = vmatpush1.bf16.msra.mxu0 %v262
    %361 = vmatprep.subr.bf16.mxu0 %v267
    %362 = vmatpush1.bf16.msra.mxu0 %v266
    %363 = vmatprep.subr.bf16.mxu0 %v271
    %364 = vmatpush1.bf16.msra.mxu0 %v270
    %365 = vmatprep.subr.bf16.mxu0 %v275
    %366 = vmatpush1.bf16.msra.mxu0 %v274
    %367 = vmatprep.subr.bf16.mxu0 0
    %368 = vmatpush1.bf16.msra.mxu0 0
    %369 = vmatprep.subr.bf16.mxu0 0
    %370 = vmatpush1.bf16.msra.mxu0 0
    %371 = vmatprep.subr.bf16.mxu0 0
    %372 = vmatpush1.bf16.msra.mxu0 0
    %373 = vmatprep.subr.bf16.mxu0 0
    %374 = vmatpush1.bf16.msra.mxu0 0
    %375 = vmatprep.subr.bf16.mxu0 0
    %376 = vmatpush1.bf16.msra.mxu0 0
    %377 = vmatprep.subr.bf16.mxu0 0
    %378 = vmatpush1.bf16.msra.mxu0 0
    %379 = vmatprep.subr.bf16.mxu0 0
    %380 = vmatpush1.bf16.msra.mxu0 0
    %381 = vmatprep.subr.bf16.mxu0 0
    %382 = vmatpush1.bf16.msra.mxu0 0
    %383 = vmatprep.mubr.bf16.mxu0 0
    %384 = vmatmul.mubr.bf16.gmra.mrb[0].mxu0 %v93
    %v385 = vpop.f32.mrb[0].mxu0
    %v386 = vadd.f32 %v139, %v385
    %v387 = vpop.f32.mrb[0].mxu0
    %v388 = vadd.f32 %v143, %v387
    %v389 = vpop.f32.mrb[0].mxu0
    %v390 = vadd.f32 %v139, %v389
    %v391 = vpop.f32.mrb[0].mxu0
    %v392 = vadd.f32 %v143, %v391
    %393 = vdwg.mxu0
    %v394 = vmax.f32 %v343, 0.0
    %v395 = vmax.f32 %v345, 0.0
    %v396 = vmax.f32 %v386, 0.0
    %v397 = vmax.f32 %v388, 0.0
    %v398 = vmax.f32 %v347, 0.0
    %v399 = vmax.f32 %v349, 0.0
    %v400 = vmax.f32 %v390, 0.0
    %v401 = vmax.f32 %v392, 0.0
    %v402 = vpack.c.bf16 %v398, %v394
    %v403 = vpack.c.bf16 %v399, %v395
    %v404 = vpack.c.bf16 %v400, %v396
    %v405 = vpack.c.bf16 %v401, %v397
    %v406 = vld [vmem:[#allocation4] sm:$0xf]
    %v407 = vld [vmem:[#allocation4 + $0x4] sm:$0xf]
    %v408 = vld [vmem:[#allocation4 + $0x8] sm:$0xf]
    %v409 = vld [vmem:[#allocation4 + $0xc] sm:$0xf]
    %v410 = vld [vmem:[#allocation4 + $0x10] sm:$0xf]
    %v411 = vld [vmem:[#allocation4 + $0x14] sm:$0xf]
    %v412 = vld [vmem:[#allocation4 + $0x18] sm:$0xf]
    %v413 = vld [vmem:[#allocation4 + $0x1c] sm:$0xf]
    %v414 = vld [vmem:[#allocation4 + $0x20] sm:$0xf]
    %v415 = vld [vmem:[#allocation4 + $0x24] sm:$0xf]
    %v416 = vld [vmem:[#allocation4 + $0x28] sm:$0xf]
    %v417 = vld [vmem:[#allocation4 + $0x2c] sm:$0xf]
    %v418 = vld [vmem:[#allocation4 + $0x30] sm:$0xf]
    %v419 = vld [vmem:[#allocation4 + $0x34] sm:$0xf]
    %v420 = vld [vmem:[#allocation4 + $0x38] sm:$0xf]
    %v421 = vld [vmem:[#allocation4 + $0x3c] sm:$0xf]
    %v422 = vld [vmem:[#allocation4 + $0x40] sm:$0xf]
    %v423 = vld [vmem:[#allocation4 + $0x44] sm:$0xf]
    %v424 = vld [vmem:[#allocation4 + $0x48] sm:$0xf]
    %v425 = vld [vmem:[#allocation4 + $0x4c] sm:$0xf]
    %v426 = vld [vmem:[#allocation4 + $0x50] sm:$0xf]
    %v427 = vld [vmem:[#allocation4 + $0x54] sm:$0xf]
    %v428 = vld [vmem:[#allocation4 + $0x58] sm:$0xf]
    %v429 = vld [vmem:[#allocation4 + $0x5c] sm:$0xf]
    %v430 = vld [vmem:[#allocation4 + $0x60] sm:$0xf]
    %v431 = vld [vmem:[#allocation4 + $0x64] sm:$0xf]
    %v432 = vld [vmem:[#allocation4 + $0x68] sm:$0xf]
    %v433 = vld [vmem:[#allocation4 + $0x6c] sm:$0xf]
    %v434 = vld [vmem:[#allocation4 + $0x70] sm:$0xf]
    %v435 = vld [vmem:[#allocation4 + $0x74] sm:$0xf]
    %v436 = vld [vmem:[#allocation4 + $0x78] sm:$0xf]
    %v437 = vld [vmem:[#allocation4 + $0x7c] sm:$0xf]
    %v438 = vld [vmem:[#allocation4 + $0x80] sm:$0xf]
    %v439 = vld [vmem:[#allocation4 + $0x84] sm:$0xf]
    %v440 = vld [vmem:[#allocation4 + $0x88] sm:$0xf]
    %v441 = vld [vmem:[#allocation4 + $0x8c] sm:$0xf]
    %v442 = vld [vmem:[#allocation4 + $0x90] sm:$0xf]
    %v443 = vld [vmem:[#allocation4 + $0x94] sm:$0xf]
    %v444 = vld [vmem:[#allocation4 + $0x98] sm:$0xf]
    %v445 = vld [vmem:[#allocation4 + $0x9c] sm:$0xf]
    %v446 = vld [vmem:[#allocation4 + $0xa0] sm:$0xf]
    %v447 = vld [vmem:[#allocation4 + $0xa4] sm:$0xf]
    %v448 = vld [vmem:[#allocation4 + $0xa8] sm:$0xf]
    %v449 = vld [vmem:[#allocation4 + $0xac] sm:$0xf]
    %v450 = vld [vmem:[#allocation4 + $0xb0] sm:$0xf]
    %v451 = vld [vmem:[#allocation4 + $0xb4] sm:$0xf]
    %v452 = vld [vmem:[#allocation4 + $0xb8] sm:$0xf]
    %v453 = vld [vmem:[#allocation4 + $0xbc] sm:$0xf]
    %v454 = vld [vmem:[#allocation4 + $0xc0] sm:$0xf]
    %v455 = vld [vmem:[#allocation4 + $0xc4] sm:$0xf]
    %v456 = vld [vmem:[#allocation4 + $0xc8] sm:$0xf]
    %v457 = vld [vmem:[#allocation4 + $0xcc] sm:$0xf]
    %v458 = vld [vmem:[#allocation4 + $0xd0] sm:$0xf]
    %v459 = vld [vmem:[#allocation4 + $0xd4] sm:$0xf]
    %v460 = vld [vmem:[#allocation4 + $0xd8] sm:$0xf]
    %v461 = vld [vmem:[#allocation4 + $0xdc] sm:$0xf]
    %v462 = vld [vmem:[#allocation4 + $0xe0] sm:$0xf]
    %v463 = vld [vmem:[#allocation4 + $0xe4] sm:$0xf]
    %v464 = vld [vmem:[#allocation4 + $0xe8] sm:$0xf]
    %v465 = vld [vmem:[#allocation4 + $0xec] sm:$0xf]
    %v466 = vld [vmem:[#allocation4 + $0xf0] sm:$0xf]
    %v467 = vld [vmem:[#allocation4 + $0xf4] sm:$0xf]
    %v468 = vld [vmem:[#allocation4 + $0xf8] sm:$0xf]
    %v469 = vld [vmem:[#allocation4 + $0xfc] sm:$0xf]
    %v470 = vld [vmem:[#allocation2 + $0x10] sm:$0xff]
    %v471 = vld [vmem:[#allocation2 + $0x18] sm:$0xff]
    %v472 = vld [vmem:[#allocation2 + $0x50] sm:$0xff]
    %v473 = vld [vmem:[#allocation2 + $0x58] sm:$0xff]
    %v474 = vld [vmem:[#allocation2 + $0x90] sm:$0xff]
    %v475 = vld [vmem:[#allocation2 + $0x98] sm:$0xff]
    %v476 = vld [vmem:[#allocation2 + $0xd0] sm:$0xff]
    %v477 = vld [vmem:[#allocation2 + $0xd8] sm:$0xff]
    %v478 = vld [vmem:[#allocation2 + $0x110] sm:$0xff]
    %v479 = vld [vmem:[#allocation2 + $0x118] sm:$0xff]
    %v480 = vld [vmem:[#allocation2 + $0x150] sm:$0xff]
    %v481 = vld [vmem:[#allocation2 + $0x158] sm:$0xff]
    %v482 = vld [vmem:[#allocation2 + $0x190] sm:$0xff]
    %v483 = vld [vmem:[#allocation2 + $0x198] sm:$0xff]
    %v484 = vld [vmem:[#allocation2 + $0x1d0] sm:$0xff]
    %v485 = vld [vmem:[#allocation2 + $0x1d8] sm:$0xff]
    %v486 = vld [vmem:[#allocation2 + $0x210] sm:$0xff]
    %v487 = vld [vmem:[#allocation2 + $0x218] sm:$0xff]
    %v488 = vld [vmem:[#allocation2 + $0x250] sm:$0xff]
    %v489 = vld [vmem:[#allocation2 + $0x258] sm:$0xff]
    %v490 = vld [vmem:[#allocation2 + $0x290] sm:$0xff]
    %v491 = vld [vmem:[#allocation2 + $0x298] sm:$0xff]
    %v492 = vld [vmem:[#allocation2 + $0x2d0] sm:$0xff]
    %v493 = vld [vmem:[#allocation2 + $0x2d8] sm:$0xff]
    %v494 = vld [vmem:[#allocation2 + $0x310] sm:$0xff]
    %v495 = vld [vmem:[#allocation2 + $0x318] sm:$0xff]
    %v496 = vld [vmem:[#allocation2 + $0x350] sm:$0xff]
    %v497 = vld [vmem:[#allocation2 + $0x358] sm:$0xff]
    %v498 = vld [vmem:[#allocation2 + $0x390] sm:$0xff]
    %v499 = vld [vmem:[#allocation2 + $0x398] sm:$0xff]
    %v500 = vld [vmem:[#allocation2 + $0x3d0] sm:$0xff]
    %v501 = vld [vmem:[#allocation2 + $0x3d8] sm:$0xff]
    %v502 = vld [vmem:[%s5 + $0x4] sm:$0xf]
    %v504 = vlaneseq
    %v505 = vshrl.u32 %v504, 7
    %v506 = vsub.s32 0, %v505
    %v507 = vrot.slane %v502, %v506
    %v508 = vlaneseq
    %v509 = vshrl.u32 %v508, 7
    %v510 = vsub.s32 1, %v509
    %v511 = vrot.slane %v502, %v510
    %v512 = vlaneseq
    %v513 = vshrl.u32 %v512, 7
    %v514 = vsub.s32 2, %v513
    %v515 = vrot.slane %v502, %v514
    %v516 = vlaneseq
    %v517 = vshrl.u32 %v516, 7
    %v518 = vsub.s32 3, %v517
    %v519 = vrot.slane %v502, %v518
    %v556 = vunpack.c.l.b16 %v470
    %v557 = vunpack.c.h.b16 %v470
    %v558 = vunpack.c.l.b16 %v471
    %v559 = vunpack.c.h.b16 %v471
    %v560 = vunpack.c.l.b16 %v472
    %v561 = vunpack.c.h.b16 %v472
    %v562 = vunpack.c.l.b16 %v473
    %v563 = vunpack.c.h.b16 %v473
    %v564 = vunpack.c.l.b16 %v474
    %v565 = vunpack.c.h.b16 %v474
    %v566 = vunpack.c.l.b16 %v475
    %v567 = vunpack.c.h.b16 %v475
    %v568 = vunpack.c.l.b16 %v476
    %v569 = vunpack.c.h.b16 %v476
    %v570 = vunpack.c.l.b16 %v477
    %v571 = vunpack.c.h.b16 %v477
    %v572 = vunpack.c.l.b16 %v478
    %v573 = vunpack.c.h.b16 %v478
    %v574 = vunpack.c.l.b16 %v479
    %v575 = vunpack.c.h.b16 %v479
    %v576 = vunpack.c.l.b16 %v480
    %v577 = vunpack.c.h.b16 %v480
    %v578 = vunpack.c.l.b16 %v481
    %v579 = vunpack.c.h.b16 %v481
    %v580 = vunpack.c.l.b16 %v482
    %v581 = vunpack.c.h.b16 %v482
    %v582 = vunpack.c.l.b16 %v483
    %v583 = vunpack.c.h.b16 %v483
    %v584 = vunpack.c.l.b16 %v484
    %v585 = vunpack.c.h.b16 %v484
    %v586 = vunpack.c.l.b16 %v485
    %v587 = vunpack.c.h.b16 %v485
    %v588 = vunpack.c.l.b16 %v486
    %v589 = vunpack.c.h.b16 %v486
    %v590 = vunpack.c.l.b16 %v487
    %v591 = vunpack.c.h.b16 %v487
    %v592 = vunpack.c.l.b16 %v488
    %v593 = vunpack.c.h.b16 %v488
    %v594 = vunpack.c.l.b16 %v489
    %v595 = vunpack.c.h.b16 %v489
    %v596 = vunpack.c.l.b16 %v490
    %v597 = vunpack.c.h.b16 %v490
    %v598 = vunpack.c.l.b16 %v491
    %v599 = vunpack.c.h.b16 %v491
    %v600 = vunpack.c.l.b16 %v492
    %v601 = vunpack.c.h.b16 %v492
    %v602 = vunpack.c.l.b16 %v493
    %v603 = vunpack.c.h.b16 %v493
    %v604 = vunpack.c.l.b16 %v494
    %v605 = vunpack.c.h.b16 %v494
    %v606 = vunpack.c.l.b16 %v495
    %v607 = vunpack.c.h.b16 %v495
    %v608 = vunpack.c.l.b16 %v496
    %v609 = vunpack.c.h.b16 %v496
    %v610 = vunpack.c.l.b16 %v497
    %v611 = vunpack.c.h.b16 %v497
    %v612 = vunpack.c.l.b16 %v498
    %v613 = vunpack.c.h.b16 %v498
    %v614 = vunpack.c.l.b16 %v499
    %v615 = vunpack.c.h.b16 %v499
    %v616 = vunpack.c.l.b16 %v500
    %v617 = vunpack.c.h.b16 %v500
    %v618 = vunpack.c.l.b16 %v501
    %v619 = vunpack.c.h.b16 %v501
    %v620 = vpack.c.b16 %v560, %v556
    %v621 = vpack.c.b16 %v561, %v557
    %v622 = vpack.c.b16 %v562, %v558
    %v623 = vpack.c.b16 %v563, %v559
    %v624 = vpack.c.b16 %v568, %v564
    %v625 = vpack.c.b16 %v569, %v565
    %v626 = vpack.c.b16 %v570, %v566
    %v627 = vpack.c.b16 %v571, %v567
    %v628 = vpack.c.b16 %v576, %v572
    %v629 = vpack.c.b16 %v577, %v573
    %v630 = vpack.c.b16 %v578, %v574
    %v631 = vpack.c.b16 %v579, %v575
    %v632 = vpack.c.b16 %v584, %v580
    %v633 = vpack.c.b16 %v585, %v581
    %v634 = vpack.c.b16 %v586, %v582
    %v635 = vpack.c.b16 %v587, %v583
    %v636 = vpack.c.b16 %v592, %v588
    %v637 = vpack.c.b16 %v593, %v589
    %v638 = vpack.c.b16 %v594, %v590
    %v639 = vpack.c.b16 %v595, %v591
    %v640 = vpack.c.b16 %v600, %v596
    %v641 = vpack.c.b16 %v601, %v597
    %v642 = vpack.c.b16 %v602, %v598
    %v643 = vpack.c.b16 %v603, %v599
    %v644 = vpack.c.b16 %v608, %v604
    %v645 = vpack.c.b16 %v609, %v605
    %v646 = vpack.c.b16 %v610, %v606
    %v647 = vpack.c.b16 %v611, %v607
    %v648 = vpack.c.b16 %v616, %v612
    %v649 = vpack.c.b16 %v617, %v613
    %v650 = vpack.c.b16 %v618, %v614
    %v651 = vpack.c.b16 %v619, %v615
    %684 = vmatprep.subr.bf16.mxu0 %v621
    %685 = vmatpush1.bf16.msra.mxu0 %v620
    %686 = vmatprep.subr.bf16.mxu0 %v625
    %687 = vmatpush1.bf16.msra.mxu0 %v624
    %688 = vmatprep.subr.bf16.mxu0 %v629
    %689 = vmatpush1.bf16.msra.mxu0 %v628
    %690 = vmatprep.subr.bf16.mxu0 %v633
    %691 = vmatpush1.bf16.msra.mxu0 %v632
    %692 = vmatprep.subr.bf16.mxu0 %v637
    %693 = vmatpush1.bf16.msra.mxu0 %v636
    %694 = vmatprep.subr.bf16.mxu0 %v641
    %695 = vmatpush1.bf16.msra.mxu0 %v640
    %696 = vmatprep.subr.bf16.mxu0 %v645
    %697 = vmatpush1.bf16.msra.mxu0 %v644
    %698 = vmatprep.subr.bf16.mxu0 %v649
    %699 = vmatpush1.bf16.msra.mxu0 %v648
    %700 = vmatprep.subr.bf16.mxu0 0
    %701 = vmatpush1.bf16.msra.mxu0 0
    %702 = vmatprep.subr.bf16.mxu0 0
    %703 = vmatpush1.bf16.msra.mxu0 0
    %704 = vmatprep.subr.bf16.mxu0 0
    %705 = vmatpush1.bf16.msra.mxu0 0
    %706 = vmatprep.subr.bf16.mxu0 0
    %707 = vmatpush1.bf16.msra.mxu0 0
    %708 = vmatprep.subr.bf16.mxu0 0
    %709 = vmatpush1.bf16.msra.mxu0 0
    %710 = vmatprep.subr.bf16.mxu0 0
    %711 = vmatpush1.bf16.msra.mxu0 0
    %712 = vmatprep.subr.bf16.mxu0 0
    %713 = vmatpush1.bf16.msra.mxu0 0
    %714 = vmatprep.subr.bf16.mxu0 0
    %715 = vmatpush1.bf16.msra.mxu0 0
    %716 = vmatprep.mubr.bf16.mxu0 0
    %717 = vmatmul.mubr.bf16.gmra.mrb[0].mxu0 %v93
    %v718 = vpop.f32.mrb[0].mxu0
    %v719 = vadd.f32 %v507, %v718
    %v720 = vpop.f32.mrb[0].mxu0
    %v721 = vadd.f32 %v511, %v720
    %v722 = vpop.f32.mrb[0].mxu0
    %v723 = vadd.f32 %v507, %v722
    %v724 = vpop.f32.mrb[0].mxu0
    %v725 = vadd.f32 %v511, %v724
    %726 = vdwg.mxu0
    %727 = vmatprep.subr.bf16.mxu0 %v623
    %728 = vmatpush1.bf16.msra.mxu0 %v622
    %729 = vmatprep.subr.bf16.mxu0 %v627
    %730 = vmatpush1.bf16.msra.mxu0 %v626
    %731 = vmatprep.subr.bf16.mxu0 %v631
    %732 = vmatpush1.bf16.msra.mxu0 %v630
    %733 = vmatprep.subr.bf16.mxu0 %v635
    %734 = vmatpush1.bf16.msra.mxu0 %v634
    %735 = vmatprep.subr.bf16.mxu0 %v639
    %736 = vmatpush1.bf16.msra.mxu0 %v638
    %737 = vmatprep.subr.bf16.mxu0 %v643
    %738 = vmatpush1.bf16.msra.mxu0 %v642
    %739 = vmatprep.subr.bf16.mxu0 %v647
    %740 = vmatpush1.bf16.msra.mxu0 %v646
    %741 = vmatprep.subr.bf16.mxu0 %v651
    %742 = vmatpush1.bf16.msra.mxu0 %v650
    %743 = vmatprep.subr.bf16.mxu0 0
    %744 = vmatpush1.bf16.msra.mxu0 0
    %745 = vmatprep.subr.bf16.mxu0 0
    %746 = vmatpush1.bf16.msra.mxu0 0
    %747 = vmatprep.subr.bf16.mxu0 0
    %748 = vmatpush1.bf16.msra.mxu0 0
    %749 = vmatprep.subr.bf16.mxu0 0
    %750 = vmatpush1.bf16.msra.mxu0 0
    %751 = vmatprep.subr.bf16.mxu0 0
    %752 = vmatpush1.bf16.msra.mxu0 0
    %753 = vmatprep.subr.bf16.mxu0 0
    %754 = vmatpush1.bf16.msra.mxu0 0
    %755 = vmatprep.subr.bf16.mxu0 0
    %756 = vmatpush1.bf16.msra.mxu0 0
    %757 = vmatprep.subr.bf16.mxu0 0
    %758 = vmatpush1.bf16.msra.mxu0 0
    %759 = vmatprep.mubr.bf16.mxu0 0
    %760 = vmatmul.mubr.bf16.gmra.mrb[0].mxu0 %v93
    %v761 = vpop.f32.mrb[0].mxu0
    %v762 = vadd.f32 %v515, %v761
    %v763 = vpop.f32.mrb[0].mxu0
    %v764 = vadd.f32 %v519, %v763
    %v765 = vpop.f32.mrb[0].mxu0
    %v766 = vadd.f32 %v515, %v765
    %v767 = vpop.f32.mrb[0].mxu0
    %v768 = vadd.f32 %v519, %v767
    %769 = vdwg.mxu0
    %v770 = vmax.f32 %v719, 0.0
    %v771 = vmax.f32 %v721, 0.0
    %v772 = vmax.f32 %v762, 0.0
    %v773 = vmax.f32 %v764, 0.0
    %v774 = vmax.f32 %v723, 0.0
    %v775 = vmax.f32 %v725, 0.0
    %v776 = vmax.f32 %v766, 0.0
    %v777 = vmax.f32 %v768, 0.0
    %v778 = vpack.c.bf16 %v774, %v770
    %v779 = vpack.c.bf16 %v775, %v771
    %v780 = vpack.c.bf16 %v776, %v772
    %v781 = vpack.c.bf16 %v777, %v773
    %v782 = vld [vmem:[#allocation4 + $0x100] sm:$0xf]
    %v783 = vld [vmem:[#allocation4 + $0x104] sm:$0xf]
    %v784 = vld [vmem:[#allocation4 + $0x108] sm:$0xf]
    %v785 = vld [vmem:[#allocation4 + $0x10c] sm:$0xf]
    %v786 = vld [vmem:[#allocation4 + $0x110] sm:$0xf]
    %v787 = vld [vmem:[#allocation4 + $0x114] sm:$0xf]
    %v788 = vld [vmem:[#allocation4 + $0x118] sm:$0xf]
    %v789 = vld [vmem:[#allocation4 + $0x11c] sm:$0xf]
    %v790 = vld [vmem:[#allocation4 + $0x120] sm:$0xf]
    %v791 = vld [vmem:[#allocation4 + $0x124] sm:$0xf]
    %v792 = vld [vmem:[#allocation4 + $0x128] sm:$0xf]
    %v793 = vld [vmem:[#allocation4 + $0x12c] sm:$0xf]
    %v794 = vld [vmem:[#allocation4 + $0x130] sm:$0xf]
    %v795 = vld [vmem:[#allocation4 + $0x134] sm:$0xf]
    %v796 = vld [vmem:[#allocation4 + $0x138] sm:$0xf]
    %v797 = vld [vmem:[#allocation4 + $0x13c] sm:$0xf]
    %v798 = vld [vmem:[#allocation4 + $0x140] sm:$0xf]
    %v799 = vld [vmem:[#allocation4 + $0x144] sm:$0xf]
    %v800 = vld [vmem:[#allocation4 + $0x148] sm:$0xf]
    %v801 = vld [vmem:[#allocation4 + $0x14c] sm:$0xf]
    %v802 = vld [vmem:[#allocation4 + $0x150] sm:$0xf]
    %v803 = vld [vmem:[#allocation4 + $0x154] sm:$0xf]
    %v804 = vld [vmem:[#allocation4 + $0x158] sm:$0xf]
    %v805 = vld [vmem:[#allocation4 + $0x15c] sm:$0xf]
    %v806 = vld [vmem:[#allocation4 + $0x160] sm:$0xf]
    %v807 = vld [vmem:[#allocation4 + $0x164] sm:$0xf]
    %v808 = vld [vmem:[#allocation4 + $0x168] sm:$0xf]
    %v809 = vld [vmem:[#allocation4 + $0x16c] sm:$0xf]
    %v810 = vld [vmem:[#allocation4 + $0x170] sm:$0xf]
    %v811 = vld [vmem:[#allocation4 + $0x174] sm:$0xf]
    %v812 = vld [vmem:[#allocation4 + $0x178] sm:$0xf]
    %v813 = vld [vmem:[#allocation4 + $0x17c] sm:$0xf]
    %v814 = vld [vmem:[#allocation4 + $0x180] sm:$0xf]
    %v815 = vld [vmem:[#allocation4 + $0x184] sm:$0xf]
    %v816 = vld [vmem:[#allocation4 + $0x188] sm:$0xf]
    %v817 = vld [vmem:[#allocation4 + $0x18c] sm:$0xf]
    %v818 = vld [vmem:[#allocation4 + $0x190] sm:$0xf]
    %v819 = vld [vmem:[#allocation4 + $0x194] sm:$0xf]
    %v820 = vld [vmem:[#allocation4 + $0x198] sm:$0xf]
    %v821 = vld [vmem:[#allocation4 + $0x19c] sm:$0xf]
    %v822 = vld [vmem:[#allocation4 + $0x1a0] sm:$0xf]
    %v823 = vld [vmem:[#allocation4 + $0x1a4] sm:$0xf]
    %v824 = vld [vmem:[#allocation4 + $0x1a8] sm:$0xf]
    %v825 = vld [vmem:[#allocation4 + $0x1ac] sm:$0xf]
    %v826 = vld [vmem:[#allocation4 + $0x1b0] sm:$0xf]
    %v827 = vld [vmem:[#allocation4 + $0x1b4] sm:$0xf]
    %v828 = vld [vmem:[#allocation4 + $0x1b8] sm:$0xf]
    %v829 = vld [vmem:[#allocation4 + $0x1bc] sm:$0xf]
    %v830 = vld [vmem:[#allocation4 + $0x1c0] sm:$0xf]
    %v831 = vld [vmem:[#allocation4 + $0x1c4] sm:$0xf]
    %v832 = vld [vmem:[#allocation4 + $0x1c8] sm:$0xf]
    %v833 = vld [vmem:[#allocation4 + $0x1cc] sm:$0xf]
    %v834 = vld [vmem:[#allocation4 + $0x1d0] sm:$0xf]
    %v835 = vld [vmem:[#allocation4 + $0x1d4] sm:$0xf]
    %v836 = vld [vmem:[#allocation4 + $0x1d8] sm:$0xf]
    %v837 = vld [vmem:[#allocation4 + $0x1dc] sm:$0xf]
    %v838 = vld [vmem:[#allocation4 + $0x1e0] sm:$0xf]
    %v839 = vld [vmem:[#allocation4 + $0x1e4] sm:$0xf]
    %v840 = vld [vmem:[#allocation4 + $0x1e8] sm:$0xf]
    %v841 = vld [vmem:[#allocation4 + $0x1ec] sm:$0xf]
    %v842 = vld [vmem:[#allocation4 + $0x1f0] sm:$0xf]
    %v843 = vld [vmem:[#allocation4 + $0x1f4] sm:$0xf]
    %v844 = vld [vmem:[#allocation4 + $0x1f8] sm:$0xf]
    %v845 = vld [vmem:[#allocation4 + $0x1fc] sm:$0xf]
    %v910 = vunpack.c.l.b16 %v782
    %v911 = vunpack.c.l.b16 %v783
    %v912 = vunpack.c.l.b16 %v784
    %v913 = vunpack.c.l.b16 %v785
    %v914 = vunpack.c.l.b16 %v786
    %v915 = vunpack.c.l.b16 %v787
    %v916 = vunpack.c.l.b16 %v788
    %v917 = vunpack.c.l.b16 %v789
    %v918 = vunpack.c.l.b16 %v790
    %v919 = vunpack.c.l.b16 %v791
    %v920 = vunpack.c.l.b16 %v792
    %v921 = vunpack.c.l.b16 %v793
    %v922 = vunpack.c.l.b16 %v794
    %v923 = vunpack.c.l.b16 %v795
    %v924 = vunpack.c.l.b16 %v796
    %v925 = vunpack.c.l.b16 %v797
    %v926 = vunpack.c.l.b16 %v798
    %v927 = vunpack.c.l.b16 %v799
    %v928 = vunpack.c.l.b16 %v800
    %v929 = vunpack.c.l.b16 %v801
    %v930 = vunpack.c.l.b16 %v802
    %v931 = vunpack.c.l.b16 %v803
    %v932 = vunpack.c.l.b16 %v804
    %v933 = vunpack.c.l.b16 %v805
    %v934 = vunpack.c.l.b16 %v806
    %v935 = vunpack.c.l.b16 %v807
    %v936 = vunpack.c.l.b16 %v808
    %v937 = vunpack.c.l.b16 %v809
    %v938 = vunpack.c.l.b16 %v810
    %v939 = vunpack.c.l.b16 %v811
    %v940 = vunpack.c.l.b16 %v812
    %v941 = vunpack.c.l.b16 %v813
    %v942 = vunpack.c.l.b16 %v814
    %v943 = vunpack.c.l.b16 %v815
    %v944 = vunpack.c.l.b16 %v816
    %v945 = vunpack.c.l.b16 %v817
    %v946 = vunpack.c.l.b16 %v818
    %v947 = vunpack.c.l.b16 %v819
    %v948 = vunpack.c.l.b16 %v820
    %v949 = vunpack.c.l.b16 %v821
    %v950 = vunpack.c.l.b16 %v822
    %v951 = vunpack.c.l.b16 %v823
    %v952 = vunpack.c.l.b16 %v824
    %v953 = vunpack.c.l.b16 %v825
    %v954 = vunpack.c.l.b16 %v826
    %v955 = vunpack.c.l.b16 %v827
    %v956 = vunpack.c.l.b16 %v828
    %v957 = vunpack.c.l.b16 %v829
    %v958 = vunpack.c.l.b16 %v830
    %v959 = vunpack.c.l.b16 %v831
    %v960 = vunpack.c.l.b16 %v832
    %v961 = vunpack.c.l.b16 %v833
    %v962 = vunpack.c.l.b16 %v834
    %v963 = vunpack.c.l.b16 %v835
    %v964 = vunpack.c.l.b16 %v836
    %v965 = vunpack.c.l.b16 %v837
    %v966 = vunpack.c.l.b16 %v838
    %v967 = vunpack.c.l.b16 %v839
    %v968 = vunpack.c.l.b16 %v840
    %v969 = vunpack.c.l.b16 %v841
    %v970 = vunpack.c.l.b16 %v842
    %v971 = vunpack.c.l.b16 %v843
    %v972 = vunpack.c.l.b16 %v844
    %v973 = vunpack.c.l.b16 %v845
    %v974 = vpack.c.b16 %v911, %v910
    %v975 = vpack.c.b16 %v913, %v912
    %v976 = vpack.c.b16 %v915, %v914
    %v977 = vpack.c.b16 %v917, %v916
    %v978 = vpack.c.b16 %v919, %v918
    %v979 = vpack.c.b16 %v921, %v920
    %v980 = vpack.c.b16 %v923, %v922
    %v981 = vpack.c.b16 %v925, %v924
    %v982 = vpack.c.b16 %v927, %v926
    %v983 = vpack.c.b16 %v929, %v928
    %v984 = vpack.c.b16 %v931, %v930
    %v985 = vpack.c.b16 %v933, %v932
    %v986 = vpack.c.b16 %v935, %v934
    %v987 = vpack.c.b16 %v937, %v936
    %v988 = vpack.c.b16 %v939, %v938
    %v989 = vpack.c.b16 %v941, %v940
    %v990 = vpack.c.b16 %v943, %v942
    %v991 = vpack.c.b16 %v945, %v944
    %v992 = vpack.c.b16 %v947, %v946
    %v993 = vpack.c.b16 %v949, %v948
    %v994 = vpack.c.b16 %v951, %v950
    %v995 = vpack.c.b16 %v953, %v952
    %v996 = vpack.c.b16 %v955, %v954
    %v997 = vpack.c.b16 %v957, %v956
    %v998 = vpack.c.b16 %v959, %v958
    %v999 = vpack.c.b16 %v961, %v960
    %v1000 = vpack.c.b16 %v963, %v962
    %v1001 = vpack.c.b16 %v965, %v964
    %v1002 = vpack.c.b16 %v967, %v966
    %v1003 = vpack.c.b16 %v969, %v968
    %v1004 = vpack.c.b16 %v971, %v970
    %v1005 = vpack.c.b16 %v973, %v972
    %1038 = vmatprep.subr.bf16.mxu0 0
    %1039 = vmatpush1.bf16.msra.mxu0 %v974
    %1040 = vmatprep.subr.bf16.mxu0 0
    %1041 = vmatpush1.bf16.msra.mxu0 %v975
    %1042 = vmatprep.subr.bf16.mxu0 0
    %1043 = vmatpush1.bf16.msra.mxu0 %v976
    %1044 = vmatprep.subr.bf16.mxu0 0
    %1045 = vmatpush1.bf16.msra.mxu0 %v977
    %1046 = vmatprep.subr.bf16.mxu0 0
    %1047 = vmatpush1.bf16.msra.mxu0 %v978
    %1048 = vmatprep.subr.bf16.mxu0 0
    %1049 = vmatpush1.bf16.msra.mxu0 %v979
    %1050 = vmatprep.subr.bf16.mxu0 0
    %1051 = vmatpush1.bf16.msra.mxu0 %v980
    %1052 = vmatprep.subr.bf16.mxu0 0
    %1053 = vmatpush1.bf16.msra.mxu0 %v981
    %1054 = vmatprep.subr.bf16.mxu0 0
    %1055 = vmatpush1.bf16.msra.mxu0 %v982
    %1056 = vmatprep.subr.bf16.mxu0 0
    %1057 = vmatpush1.bf16.msra.mxu0 %v983
    %1058 = vmatprep.subr.bf16.mxu0 0
    %1059 = vmatpush1.bf16.msra.mxu0 %v984
    %1060 = vmatprep.subr.bf16.mxu0 0
    %1061 = vmatpush1.bf16.msra.mxu0 %v985
    %1062 = vmatprep.subr.bf16.mxu0 0
    %1063 = vmatpush1.bf16.msra.mxu0 %v986
    %1064 = vmatprep.subr.bf16.mxu0 0
    %1065 = vmatpush1.bf16.msra.mxu0 %v987
    %1066 = vmatprep.subr.bf16.mxu0 0
    %1067 = vmatpush1.bf16.msra.mxu0 %v988
    %1068 = vmatprep.subr.bf16.mxu0 0
    %1069 = vmatpush1.bf16.msra.mxu0 %v989
    %1070 = vmatprep.mubr.bf16.mxu0 %v779
    %1071 = vmatmul.mubr.bf16.gmra.mrb[0].mxu0 %v778
    %v1072 = vpop.f32.mrb[0].mxu0
    %v1073 = vadd.f32 0.0, %v1072
    %v1074 = vpop.f32.mrb[0].mxu0
    %v1075 = vpop.f32.mrb[0].mxu0
    %v1076 = vadd.f32 0.0, %v1075
    %v1077 = vpop.f32.mrb[0].mxu0
    %1078 = vdwg.mxu0
    %1079 = vmatprep.subr.bf16.mxu0 0
    %1080 = vmatpush1.bf16.msra.mxu0 %v990
    %1081 = vmatprep.subr.bf16.mxu0 0
    %1082 = vmatpush1.bf16.msra.mxu0 %v991
    %1083 = vmatprep.subr.bf16.mxu0 0
    %1084 = vmatpush1.bf16.msra.mxu0 %v992
    %1085 = vmatprep.subr.bf16.mxu0 0
    %1086 = vmatpush1.bf16.msra.mxu0 %v993
    %1087 = vmatprep.subr.bf16.mxu0 0
    %1088 = vmatpush1.bf16.msra.mxu0 %v994
    %1089 = vmatprep.subr.bf16.mxu0 0
    %1090 = vmatpush1.bf16.msra.mxu0 %v995
    %1091 = vmatprep.subr.bf16.mxu0 0
    %1092 = vmatpush1.bf16.msra.mxu0 %v996
    %1093 = vmatprep.subr.bf16.mxu0 0
    %1094 = vmatpush1.bf16.msra.mxu0 %v997
    %1095 = vmatprep.subr.bf16.mxu0 0
    %1096 = vmatpush1.bf16.msra.mxu0 %v998
    %1097 = vmatprep.subr.bf16.mxu0 0
    %1098 = vmatpush1.bf16.msra.mxu0 %v999
    %1099 = vmatprep.subr.bf16.mxu0 0
    %1100 = vmatpush1.bf16.msra.mxu0 %v1000
    %1101 = vmatprep.subr.bf16.mxu0 0
    %1102 = vmatpush1.bf16.msra.mxu0 %v1001
    %1103 = vmatprep.subr.bf16.mxu0 0
    %1104 = vmatpush1.bf16.msra.mxu0 %v1002
    %1105 = vmatprep.subr.bf16.mxu0 0
    %1106 = vmatpush1.bf16.msra.mxu0 %v1003
    %1107 = vmatprep.subr.bf16.mxu0 0
    %1108 = vmatpush1.bf16.msra.mxu0 %v1004
    %1109 = vmatprep.subr.bf16.mxu0 0
    %1110 = vmatpush1.bf16.msra.mxu0 %v1005
    %1111 = vmatprep.mubr.bf16.mxu0 %v781
    %1112 = vmatmul.mubr.bf16.gmra.mrb[0].mxu0 %v780
    %v1113 = vpop.f32.mrb[0].mxu0
    %v1114 = vadd.f32 %v1073, %v1113
    %v1115 = vpop.f32.mrb[0].mxu0
    %v1116 = vpop.f32.mrb[0].mxu0
    %v1117 = vadd.f32 %v1076, %v1116
    %v1118 = vpop.f32.mrb[0].mxu0
    %1119 = vdwg.mxu0
    %v1184 = vunpack.c.l.b16 %v406
    %v1185 = vunpack.c.l.b16 %v407
    %v1186 = vunpack.c.l.b16 %v408
    %v1187 = vunpack.c.l.b16 %v409
    %v1188 = vunpack.c.l.b16 %v410
    %v1189 = vunpack.c.l.b16 %v411
    %v1190 = vunpack.c.l.b16 %v412
    %v1191 = vunpack.c.l.b16 %v413
    %v1192 = vunpack.c.l.b16 %v414
    %v1193 = vunpack.c.l.b16 %v415
    %v1194 = vunpack.c.l.b16 %v416
    %v1195 = vunpack.c.l.b16 %v417
    %v1196 = vunpack.c.l.b16 %v418
    %v1197 = vunpack.c.l.b16 %v419
    %v1198 = vunpack.c.l.b16 %v420
    %v1199 = vunpack.c.l.b16 %v421
    %v1200 = vunpack.c.l.b16 %v422
    %v1201 = vunpack.c.l.b16 %v423
    %v1202 = vunpack.c.l.b16 %v424
    %v1203 = vunpack.c.l.b16 %v425
    %v1204 = vunpack.c.l.b16 %v426
    %v1205 = vunpack.c.l.b16 %v427
    %v1206 = vunpack.c.l.b16 %v428
    %v1207 = vunpack.c.l.b16 %v429
    %v1208 = vunpack.c.l.b16 %v430
    %v1209 = vunpack.c.l.b16 %v431
    %v1210 = vunpack.c.l.b16 %v432
    %v1211 = vunpack.c.l.b16 %v433
    %v1212 = vunpack.c.l.b16 %v434
    %v1213 = vunpack.c.l.b16 %v435
    %v1214 = vunpack.c.l.b16 %v436
    %v1215 = vunpack.c.l.b16 %v437
    %v1216 = vunpack.c.l.b16 %v438
    %v1217 = vunpack.c.l.b16 %v439
    %v1218 = vunpack.c.l.b16 %v440
    %v1219 = vunpack.c.l.b16 %v441
    %v1220 = vunpack.c.l.b16 %v442
    %v1221 = vunpack.c.l.b16 %v443
    %v1222 = vunpack.c.l.b16 %v444
    %v1223 = vunpack.c.l.b16 %v445
    %v1224 = vunpack.c.l.b16 %v446
    %v1225 = vunpack.c.l.b16 %v447
    %v1226 = vunpack.c.l.b16 %v448
    %v1227 = vunpack.c.l.b16 %v449
    %v1228 = vunpack.c.l.b16 %v450
    %v1229 = vunpack.c.l.b16 %v451
    %v1230 = vunpack.c.l.b16 %v452
    %v1231 = vunpack.c.l.b16 %v453
    %v1232 = vunpack.c.l.b16 %v454
    %v1233 = vunpack.c.l.b16 %v455
    %v1234 = vunpack.c.l.b16 %v456
    %v1235 = vunpack.c.l.b16 %v457
    %v1236 = vunpack.c.l.b16 %v458
    %v1237 = vunpack.c.l.b16 %v459
    %v1238 = vunpack.c.l.b16 %v460
    %v1239 = vunpack.c.l.b16 %v461
    %v1240 = vunpack.c.l.b16 %v462
    %v1241 = vunpack.c.l.b16 %v463
    %v1242 = vunpack.c.l.b16 %v464
    %v1243 = vunpack.c.l.b16 %v465
    %v1244 = vunpack.c.l.b16 %v466
    %v1245 = vunpack.c.l.b16 %v467
    %v1246 = vunpack.c.l.b16 %v468
    %v1247 = vunpack.c.l.b16 %v469
    %v1248 = vpack.c.b16 %v1185, %v1184
    %v1249 = vpack.c.b16 %v1187, %v1186
    %v1250 = vpack.c.b16 %v1189, %v1188
    %v1251 = vpack.c.b16 %v1191, %v1190
    %v1252 = vpack.c.b16 %v1193, %v1192
    %v1253 = vpack.c.b16 %v1195, %v1194
    %v1254 = vpack.c.b16 %v1197, %v1196
    %v1255 = vpack.c.b16 %v1199, %v1198
    %v1256 = vpack.c.b16 %v1201, %v1200
    %v1257 = vpack.c.b16 %v1203, %v1202
    %v1258 = vpack.c.b16 %v1205, %v1204
    %v1259 = vpack.c.b16 %v1207, %v1206
    %v1260 = vpack.c.b16 %v1209, %v1208
    %v1261 = vpack.c.b16 %v1211, %v1210
    %v1262 = vpack.c.b16 %v1213, %v1212
    %v1263 = vpack.c.b16 %v1215, %v1214
    %v1264 = vpack.c.b16 %v1217, %v1216
    %v1265 = vpack.c.b16 %v1219, %v1218
    %v1266 = vpack.c.b16 %v1221, %v1220
    %v1267 = vpack.c.b16 %v1223, %v1222
    %v1268 = vpack.c.b16 %v1225, %v1224
    %v1269 = vpack.c.b16 %v1227, %v1226
    %v1270 = vpack.c.b16 %v1229, %v1228
    %v1271 = vpack.c.b16 %v1231, %v1230
    %v1272 = vpack.c.b16 %v1233, %v1232
    %v1273 = vpack.c.b16 %v1235, %v1234
    %v1274 = vpack.c.b16 %v1237, %v1236
    %v1275 = vpack.c.b16 %v1239, %v1238
    %v1276 = vpack.c.b16 %v1241, %v1240
    %v1277 = vpack.c.b16 %v1243, %v1242
    %v1278 = vpack.c.b16 %v1245, %v1244
    %v1279 = vpack.c.b16 %v1247, %v1246
    %1312 = vmatprep.subr.bf16.mxu0 0
    %1313 = vmatpush1.bf16.msra.mxu0 %v1248
    %1314 = vmatprep.subr.bf16.mxu0 0
    %1315 = vmatpush1.bf16.msra.mxu0 %v1249
    %1316 = vmatprep.subr.bf16.mxu0 0
    %1317 = vmatpush1.bf16.msra.mxu0 %v1250
    %1318 = vmatprep.subr.bf16.mxu0 0
    %1319 = vmatpush1.bf16.msra.mxu0 %v1251
    %1320 = vmatprep.subr.bf16.mxu0 0
    %1321 = vmatpush1.bf16.msra.mxu0 %v1252
    %1322 = vmatprep.subr.bf16.mxu0 0
    %1323 = vmatpush1.bf16.msra.mxu0 %v1253
    %1324 = vmatprep.subr.bf16.mxu0 0
    %1325 = vmatpush1.bf16.msra.mxu0 %v1254
    %1326 = vmatprep.subr.bf16.mxu0 0
    %1327 = vmatpush1.bf16.msra.mxu0 %v1255
    %1328 = vmatprep.subr.bf16.mxu0 0
    %1329 = vmatpush1.bf16.msra.mxu0 %v1256
    %1330 = vmatprep.subr.bf16.mxu0 0
    %1331 = vmatpush1.bf16.msra.mxu0 %v1257
    %1332 = vmatprep.subr.bf16.mxu0 0
    %1333 = vmatpush1.bf16.msra.mxu0 %v1258
    %1334 = vmatprep.subr.bf16.mxu0 0
    %1335 = vmatpush1.bf16.msra.mxu0 %v1259
    %1336 = vmatprep.subr.bf16.mxu0 0
    %1337 = vmatpush1.bf16.msra.mxu0 %v1260
    %1338 = vmatprep.subr.bf16.mxu0 0
    %1339 = vmatpush1.bf16.msra.mxu0 %v1261
    %1340 = vmatprep.subr.bf16.mxu0 0
    %1341 = vmatpush1.bf16.msra.mxu0 %v1262
    %1342 = vmatprep.subr.bf16.mxu0 0
    %1343 = vmatpush1.bf16.msra.mxu0 %v1263
    %1344 = vmatprep.mubr.bf16.mxu0 %v403
    %1345 = vmatmul.mubr.bf16.gmra.mrb[0].mxu0 %v402
    %v1346 = vpop.f32.mrb[0].mxu0
    %v1347 = vadd.f32 %v1114, %v1346
    %v1348 = vpop.f32.mrb[0].mxu0
    %v1349 = vpop.f32.mrb[0].mxu0
    %v1350 = vadd.f32 %v1117, %v1349
    %v1351 = vpop.f32.mrb[0].mxu0
    %1352 = vdwg.mxu0
    %1353 = vmatprep.subr.bf16.mxu0 0
    %1354 = vmatpush1.bf16.msra.mxu0 %v1264
    %1355 = vmatprep.subr.bf16.mxu0 0
    %1356 = vmatpush1.bf16.msra.mxu0 %v1265
    %1357 = vmatprep.subr.bf16.mxu0 0
    %1358 = vmatpush1.bf16.msra.mxu0 %v1266
    %1359 = vmatprep.subr.bf16.mxu0 0
    %1360 = vmatpush1.bf16.msra.mxu0 %v1267
    %1361 = vmatprep.subr.bf16.mxu0 0
    %1362 = vmatpush1.bf16.msra.mxu0 %v1268
    %1363 = vmatprep.subr.bf16.mxu0 0
    %1364 = vmatpush1.bf16.msra.mxu0 %v1269
    %1365 = vmatprep.subr.bf16.mxu0 0
    %1366 = vmatpush1.bf16.msra.mxu0 %v1270
    %1367 = vmatprep.subr.bf16.mxu0 0
    %1368 = vmatpush1.bf16.msra.mxu0 %v1271
    %1369 = vmatprep.subr.bf16.mxu0 0
    %1370 = vmatpush1.bf16.msra.mxu0 %v1272
    %1371 = vmatprep.subr.bf16.mxu0 0
    %1372 = vmatpush1.bf16.msra.mxu0 %v1273
    %1373 = vmatprep.subr.bf16.mxu0 0
    %1374 = vmatpush1.bf16.msra.mxu0 %v1274
    %1375 = vmatprep.subr.bf16.mxu0 0
    %1376 = vmatpush1.bf16.msra.mxu0 %v1275
    %1377 = vmatprep.subr.bf16.mxu0 0
    %1378 = vmatpush1.bf16.msra.mxu0 %v1276
    %1379 = vmatprep.subr.bf16.mxu0 0
    %1380 = vmatpush1.bf16.msra.mxu0 %v1277
    %1381 = vmatprep.subr.bf16.mxu0 0
    %1382 = vmatpush1.bf16.msra.mxu0 %v1278
    %1383 = vmatprep.subr.bf16.mxu0 0
    %1384 = vmatpush1.bf16.msra.mxu0 %v1279
    %1385 = vmatprep.mubr.bf16.mxu0 %v405
    %1386 = vmatmul.mubr.bf16.gmra.mrb[0].mxu0 %v404
    %v1387 = vpop.f32.mrb[0].mxu0
    %v1388 = vadd.f32 %v1347, %v1387
    %v1389 = vpop.f32.mrb[0].mxu0
    %v1390 = vpop.f32.mrb[0].mxu0
    %v1391 = vadd.f32 %v1350, %v1390
    %v1392 = vpop.f32.mrb[0].mxu0
    %1393 = vdwg.mxu0
    %v1394 = vld [vmem:[#allocation2 + $0x20] sm:$0xff]
    %v1395 = vld [vmem:[#allocation2 + $0x28] sm:$0xff]
    %v1396 = vld [vmem:[#allocation2 + $0x60] sm:$0xff]
    %v1397 = vld [vmem:[#allocation2 + $0x68] sm:$0xff]
    %v1398 = vld [vmem:[#allocation2 + $0xa0] sm:$0xff]
    %v1399 = vld [vmem:[#allocation2 + $0xa8] sm:$0xff]
    %v1400 = vld [vmem:[#allocation2 + $0xe0] sm:$0xff]
    %v1401 = vld [vmem:[#allocation2 + $0xe8] sm:$0xff]
    %v1402 = vld [vmem:[#allocation2 + $0x120] sm:$0xff]
    %v1403 = vld [vmem:[#allocation2 + $0x128] sm:$0xff]
    %v1404 = vld [vmem:[#allocation2 + $0x160] sm:$0xff]
    %v1405 = vld [vmem:[#allocation2 + $0x168] sm:$0xff]
    %v1406 = vld [vmem:[#allocation2 + $0x1a0] sm:$0xff]
    %v1407 = vld [vmem:[#allocation2 + $0x1a8] sm:$0xff]
    %v1408 = vld [vmem:[#allocation2 + $0x1e0] sm:$0xff]
    %v1409 = vld [vmem:[#allocation2 + $0x1e8] sm:$0xff]
    %v1410 = vld [vmem:[#allocation2 + $0x220] sm:$0xff]
    %v1411 = vld [vmem:[#allocation2 + $0x228] sm:$0xff]
    %v1412 = vld [vmem:[#allocation2 + $0x260] sm:$0xff]
    %v1413 = vld [vmem:[#allocation2 + $0x268] sm:$0xff]
    %v1414 = vld [vmem:[#allocation2 + $0x2a0] sm:$0xff]
    %v1415 = vld [vmem:[#allocation2 + $0x2a8] sm:$0xff]
    %v1416 = vld [vmem:[#allocation2 + $0x2e0] sm:$0xff]
    %v1417 = vld [vmem:[#allocation2 + $0x2e8] sm:$0xff]
    %v1418 = vld [vmem:[#allocation2 + $0x320] sm:$0xff]
    %v1419 = vld [vmem:[#allocation2 + $0x328] sm:$0xff]
    %v1420 = vld [vmem:[#allocation2 + $0x360] sm:$0xff]
    %v1421 = vld [vmem:[#allocation2 + $0x368] sm:$0xff]
    %v1422 = vld [vmem:[#allocation2 + $0x3a0] sm:$0xff]
    %v1423 = vld [vmem:[#allocation2 + $0x3a8] sm:$0xff]
    %v1424 = vld [vmem:[#allocation2 + $0x3e0] sm:$0xff]
    %v1425 = vld [vmem:[#allocation2 + $0x3e8] sm:$0xff]
    %v1426 = vld [vmem:[%s5 + $0x8] sm:$0xf]
    %v1428 = vlaneseq
    %v1429 = vshrl.u32 %v1428, 7
    %v1430 = vsub.s32 0, %v1429
    %v1431 = vrot.slane %v1426, %v1430
    %v1432 = vlaneseq
    %v1433 = vshrl.u32 %v1432, 7
    %v1434 = vsub.s32 1, %v1433
    %v1435 = vrot.slane %v1426, %v1434
    %v1436 = vlaneseq
    %v1437 = vshrl.u32 %v1436, 7
    %v1438 = vsub.s32 2, %v1437
    %v1439 = vrot.slane %v1426, %v1438
    %v1440 = vlaneseq
    %v1441 = vshrl.u32 %v1440, 7
    %v1442 = vsub.s32 3, %v1441
    %v1443 = vrot.slane %v1426, %v1442
    %v1480 = vunpack.c.l.b16 %v1394
    %v1481 = vunpack.c.h.b16 %v1394
    %v1482 = vunpack.c.l.b16 %v1395
    %v1483 = vunpack.c.h.b16 %v1395
    %v1484 = vunpack.c.l.b16 %v1396
    %v1485 = vunpack.c.h.b16 %v1396
    %v1486 = vunpack.c.l.b16 %v1397
    %v1487 = vunpack.c.h.b16 %v1397
    %v1488 = vunpack.c.l.b16 %v1398
    %v1489 = vunpack.c.h.b16 %v1398
    %v1490 = vunpack.c.l.b16 %v1399
    %v1491 = vunpack.c.h.b16 %v1399
    %v1492 = vunpack.c.l.b16 %v1400
    %v1493 = vunpack.c.h.b16 %v1400
    %v1494 = vunpack.c.l.b16 %v1401
    %v1495 = vunpack.c.h.b16 %v1401
    %v1496 = vunpack.c.l.b16 %v1402
    %v1497 = vunpack.c.h.b16 %v1402
    %v1498 = vunpack.c.l.b16 %v1403
    %v1499 = vunpack.c.h.b16 %v1403
    %v1500 = vunpack.c.l.b16 %v1404
    %v1501 = vunpack.c.h.b16 %v1404
    %v1502 = vunpack.c.l.b16 %v1405
    %v1503 = vunpack.c.h.b16 %v1405
    %v1504 = vunpack.c.l.b16 %v1406
    %v1505 = vunpack.c.h.b16 %v1406
    %v1506 = vunpack.c.l.b16 %v1407
    %v1507 = vunpack.c.h.b16 %v1407
    %v1508 = vunpack.c.l.b16 %v1408
    %v1509 = vunpack.c.h.b16 %v1408
    %v1510 = vunpack.c.l.b16 %v1409
    %v1511 = vunpack.c.h.b16 %v1409
    %v1512 = vunpack.c.l.b16 %v1410
    %v1513 = vunpack.c.h.b16 %v1410
    %v1514 = vunpack.c.l.b16 %v1411
    %v1515 = vunpack.c.h.b16 %v1411
    %v1516 = vunpack.c.l.b16 %v1412
    %v1517 = vunpack.c.h.b16 %v1412
    %v1518 = vunpack.c.l.b16 %v1413
    %v1519 = vunpack.c.h.b16 %v1413
    %v1520 = vunpack.c.l.b16 %v1414
    %v1521 = vunpack.c.h.b16 %v1414
    %v1522 = vunpack.c.l.b16 %v1415
    %v1523 = vunpack.c.h.b16 %v1415
    %v1524 = vunpack.c.l.b16 %v1416
    %v1525 = vunpack.c.h.b16 %v1416
    %v1526 = vunpack.c.l.b16 %v1417
    %v1527 = vunpack.c.h.b16 %v1417
    %v1528 = vunpack.c.l.b16 %v1418
    %v1529 = vunpack.c.h.b16 %v1418
    %v1530 = vunpack.c.l.b16 %v1419
    %v1531 = vunpack.c.h.b16 %v1419
    %v1532 = vunpack.c.l.b16 %v1420
    %v1533 = vunpack.c.h.b16 %v1420
    %v1534 = vunpack.c.l.b16 %v1421
    %v1535 = vunpack.c.h.b16 %v1421
    %v1536 = vunpack.c.l.b16 %v1422
    %v1537 = vunpack.c.h.b16 %v1422
    %v1538 = vunpack.c.l.b16 %v1423
    %v1539 = vunpack.c.h.b16 %v1423
    %v1540 = vunpack.c.l.b16 %v1424
    %v1541 = vunpack.c.h.b16 %v1424
    %v1542 = vunpack.c.l.b16 %v1425
    %v1543 = vunpack.c.h.b16 %v1425
    %v1544 = vpack.c.b16 %v1484, %v1480
    %v1545 = vpack.c.b16 %v1485, %v1481
    %v1546 = vpack.c.b16 %v1486, %v1482
    %v1547 = vpack.c.b16 %v1487, %v1483
    %v1548 = vpack.c.b16 %v1492, %v1488
    %v1549 = vpack.c.b16 %v1493, %v1489
    %v1550 = vpack.c.b16 %v1494, %v1490
    %v1551 = vpack.c.b16 %v1495, %v1491
    %v1552 = vpack.c.b16 %v1500, %v1496
    %v1553 = vpack.c.b16 %v1501, %v1497
    %v1554 = vpack.c.b16 %v1502, %v1498
    %v1555 = vpack.c.b16 %v1503, %v1499
    %v1556 = vpack.c.b16 %v1508, %v1504
    %v1557 = vpack.c.b16 %v1509, %v1505
    %v1558 = vpack.c.b16 %v1510, %v1506
    %v1559 = vpack.c.b16 %v1511, %v1507
    %v1560 = vpack.c.b16 %v1516, %v1512
    %v1561 = vpack.c.b16 %v1517, %v1513
    %v1562 = vpack.c.b16 %v1518, %v1514
    %v1563 = vpack.c.b16 %v1519, %v1515
    %v1564 = vpack.c.b16 %v1524, %v1520
    %v1565 = vpack.c.b16 %v1525, %v1521
    %v1566 = vpack.c.b16 %v1526, %v1522
    %v1567 = vpack.c.b16 %v1527, %v1523
    %v1568 = vpack.c.b16 %v1532, %v1528
    %v1569 = vpack.c.b16 %v1533, %v1529
    %v1570 = vpack.c.b16 %v1534, %v1530
    %v1571 = vpack.c.b16 %v1535, %v1531
    %v1572 = vpack.c.b16 %v1540, %v1536
    %v1573 = vpack.c.b16 %v1541, %v1537
    %v1574 = vpack.c.b16 %v1542, %v1538
    %v1575 = vpack.c.b16 %v1543, %v1539
    %1608 = vmatprep.subr.bf16.mxu0 %v1545
    %1609 = vmatpush1.bf16.msra.mxu0 %v1544
    %1610 = vmatprep.subr.bf16.mxu0 %v1549
    %1611 = vmatpush1.bf16.msra.mxu0 %v1548
    %1612 = vmatprep.subr.bf16.mxu0 %v1553
    %1613 = vmatpush1.bf16.msra.mxu0 %v1552
    %1614 = vmatprep.subr.bf16.mxu0 %v1557
    %1615 = vmatpush1.bf16.msra.mxu0 %v1556
    %1616 = vmatprep.subr.bf16.mxu0 %v1561
    %1617 = vmatpush1.bf16.msra.mxu0 %v1560
    %1618 = vmatprep.subr.bf16.mxu0 %v1565
    %1619 = vmatpush1.bf16.msra.mxu0 %v1564
    %1620 = vmatprep.subr.bf16.mxu0 %v1569
    %1621 = vmatpush1.bf16.msra.mxu0 %v1568
    %1622 = vmatprep.subr.bf16.mxu0 %v1573
    %1623 = vmatpush1.bf16.msra.mxu0 %v1572
    %1624 = vmatprep.subr.bf16.mxu0 0
    %1625 = vmatpush1.bf16.msra.mxu0 0
    %1626 = vmatprep.subr.bf16.mxu0 0
    %1627 = vmatpush1.bf16.msra.mxu0 0
    %1628 = vmatprep.subr.bf16.mxu0 0
    %1629 = vmatpush1.bf16.msra.mxu0 0
    %1630 = vmatprep.subr.bf16.mxu0 0
    %1631 = vmatpush1.bf16.msra.mxu0 0
    %1632 = vmatprep.subr.bf16.mxu0 0
    %1633 = vmatpush1.bf16.msra.mxu0 0
    %1634 = vmatprep.subr.bf16.mxu0 0
    %1635 = vmatpush1.bf16.msra.mxu0 0
    %1636 = vmatprep.subr.bf16.mxu0 0
    %1637 = vmatpush1.bf16.msra.mxu0 0
    %1638 = vmatprep.subr.bf16.mxu0 0
    %1639 = vmatpush1.bf16.msra.mxu0 0
    %1640 = vmatprep.mubr.bf16.mxu0 0
    %1641 = vmatmul.mubr.bf16.gmra.mrb[0].mxu0 %v93
    %v1642 = vpop.f32.mrb[0].mxu0
    %v1643 = vadd.f32 %v1431, %v1642
    %v1644 = vpop.f32.mrb[0].mxu0
    %v1645 = vadd.f32 %v1435, %v1644
    %v1646 = vpop.f32.mrb[0].mxu0
    %v1647 = vadd.f32 %v1431, %v1646
    %v1648 = vpop.f32.mrb[0].mxu0
    %v1649 = vadd.f32 %v1435, %v1648
    %1650 = vdwg.mxu0
    %1651 = vmatprep.subr.bf16.mxu0 %v1547
    %1652 = vmatpush1.bf16.msra.mxu0 %v1546
    %1653 = vmatprep.subr.bf16.mxu0 %v1551
    %1654 = vmatpush1.bf16.msra.mxu0 %v1550
    %1655 = vmatprep.subr.bf16.mxu0 %v1555
    %1656 = vmatpush1.bf16.msra.mxu0 %v1554
    %1657 = vmatprep.subr.bf16.mxu0 %v1559
    %1658 = vmatpush1.bf16.msra.mxu0 %v1558
    %1659 = vmatprep.subr.bf16.mxu0 %v1563
    %1660 = vmatpush1.bf16.msra.mxu0 %v1562
    %1661 = vmatprep.subr.bf16.mxu0 %v1567
    %1662 = vmatpush1.bf16.msra.mxu0 %v1566
    %1663 = vmatprep.subr.bf16.mxu0 %v1571
    %1664 = vmatpush1.bf16.msra.mxu0 %v1570
    %1665 = vmatprep.subr.bf16.mxu0 %v1575
    %1666 = vmatpush1.bf16.msra.mxu0 %v1574
    %1667 = vmatprep.subr.bf16.mxu0 0
    %1668 = vmatpush1.bf16.msra.mxu0 0
    %1669 = vmatprep.subr.bf16.mxu0 0
    %1670 = vmatpush1.bf16.msra.mxu0 0
    %1671 = vmatprep.subr.bf16.mxu0 0
    %1672 = vmatpush1.bf16.msra.mxu0 0
    %1673 = vmatprep.subr.bf16.mxu0 0
    %1674 = vmatpush1.bf16.msra.mxu0 0
    %1675 = vmatprep.subr.bf16.mxu0 0
    %1676 = vmatpush1.bf16.msra.mxu0 0
    %1677 = vmatprep.subr.bf16.mxu0 0
    %1678 = vmatpush1.bf16.msra.mxu0 0
    %1679 = vmatprep.subr.bf16.mxu0 0
    %1680 = vmatpush1.bf16.msra.mxu0 0
    %1681 = vmatprep.subr.bf16.mxu0 0
    %1682 = vmatpush1.bf16.msra.mxu0 0
    %1683 = vmatprep.mubr.bf16.mxu0 0
    %1684 = vmatmul.mubr.bf16.gmra.mrb[0].mxu0 %v93
    %v1685 = vpop.f32.mrb[0].mxu0
    %v1686 = vadd.f32 %v1439, %v1685
    %v1687 = vpop.f32.mrb[0].mxu0
    %v1688 = vadd.f32 %v1443, %v1687
    %v1689 = vpop.f32.mrb[0].mxu0
    %v1690 = vadd.f32 %v1439, %v1689
    %v1691 = vpop.f32.mrb[0].mxu0
    %v1692 = vadd.f32 %v1443, %v1691
    %1693 = vdwg.mxu0
    %v1694 = vmax.f32 %v1643, 0.0
    %v1695 = vmax.f32 %v1645, 0.0
    %v1696 = vmax.f32 %v1686, 0.0
    %v1697 = vmax.f32 %v1688, 0.0
    %v1698 = vmax.f32 %v1647, 0.0
    %v1699 = vmax.f32 %v1649, 0.0
    %v1700 = vmax.f32 %v1690, 0.0
    %v1701 = vmax.f32 %v1692, 0.0
    %v1702 = vpack.c.bf16 %v1698, %v1694
    %v1703 = vpack.c.bf16 %v1699, %v1695
    %v1704 = vpack.c.bf16 %v1700, %v1696
    %v1705 = vpack.c.bf16 %v1701, %v1697
    %v1706 = vld [vmem:[#allocation4 + $0x200] sm:$0xf]
    %v1707 = vld [vmem:[#allocation4 + $0x204] sm:$0xf]
    %v1708 = vld [vmem:[#allocation4 + $0x208] sm:$0xf]
    %v1709 = vld [vmem:[#allocation4 + $0x20c] sm:$0xf]
    %v1710 = vld [vmem:[#allocation4 + $0x210] sm:$0xf]
    %v1711 = vld [vmem:[#allocation4 + $0x214] sm:$0xf]
    %v1712 = vld [vmem:[#allocation4 + $0x218] sm:$0xf]
    %v1713 = vld [vmem:[#allocation4 + $0x21c] sm:$0xf]
    %v1714 = vld [vmem:[#allocation4 + $0x220] sm:$0xf]
    %v1715 = vld [vmem:[#allocation4 + $0x224] sm:$0xf]
    %v1716 = vld [vmem:[#allocation4 + $0x228] sm:$0xf]
    %v1717 = vld [vmem:[#allocation4 + $0x22c] sm:$0xf]
    %v1718 = vld [vmem:[#allocation4 + $0x230] sm:$0xf]
    %v1719 = vld [vmem:[#allocation4 + $0x234] sm:$0xf]
    %v1720 = vld [vmem:[#allocation4 + $0x238] sm:$0xf]
    %v1721 = vld [vmem:[#allocation4 + $0x23c] sm:$0xf]
    %v1722 = vld [vmem:[#allocation4 + $0x240] sm:$0xf]
    %v1723 = vld [vmem:[#allocation4 + $0x244] sm:$0xf]
    %v1724 = vld [vmem:[#allocation4 + $0x248] sm:$0xf]
    %v1725 = vld [vmem:[#allocation4 + $0x24c] sm:$0xf]
    %v1726 = vld [vmem:[#allocation4 + $0x250] sm:$0xf]
    %v1727 = vld [vmem:[#allocation4 + $0x254] sm:$0xf]
    %v1728 = vld [vmem:[#allocation4 + $0x258] sm:$0xf]
    %v1729 = vld [vmem:[#allocation4 + $0x25c] sm:$0xf]
    %v1730 = vld [vmem:[#allocation4 + $0x260] sm:$0xf]
    %v1731 = vld [vmem:[#allocation4 + $0x264] sm:$0xf]
    %v1732 = vld [vmem:[#allocation4 + $0x268] sm:$0xf]
    %v1733 = vld [vmem:[#allocation4 + $0x26c] sm:$0xf]
    %v1734 = vld [vmem:[#allocation4 + $0x270] sm:$0xf]
    %v1735 = vld [vmem:[#allocation4 + $0x274] sm:$0xf]
    %v1736 = vld [vmem:[#allocation4 + $0x278] sm:$0xf]
    %v1737 = vld [vmem:[#allocation4 + $0x27c] sm:$0xf]
    %v1738 = vld [vmem:[#allocation4 + $0x280] sm:$0xf]
    %v1739 = vld [vmem:[#allocation4 + $0x284] sm:$0xf]
    %v1740 = vld [vmem:[#allocation4 + $0x288] sm:$0xf]
    %v1741 = vld [vmem:[#allocation4 + $0x28c] sm:$0xf]
    %v1742 = vld [vmem:[#allocation4 + $0x290] sm:$0xf]
    %v1743 = vld [vmem:[#allocation4 + $0x294] sm:$0xf]
    %v1744 = vld [vmem:[#allocation4 + $0x298] sm:$0xf]
    %v1745 = vld [vmem:[#allocation4 + $0x29c] sm:$0xf]
    %v1746 = vld [vmem:[#allocation4 + $0x2a0] sm:$0xf]
    %v1747 = vld [vmem:[#allocation4 + $0x2a4] sm:$0xf]
    %v1748 = vld [vmem:[#allocation4 + $0x2a8] sm:$0xf]
    %v1749 = vld [vmem:[#allocation4 + $0x2ac] sm:$0xf]
    %v1750 = vld [vmem:[#allocation4 + $0x2b0] sm:$0xf]
    %v1751 = vld [vmem:[#allocation4 + $0x2b4] sm:$0xf]
    %v1752 = vld [vmem:[#allocation4 + $0x2b8] sm:$0xf]
    %v1753 = vld [vmem:[#allocation4 + $0x2bc] sm:$0xf]
    %v1754 = vld [vmem:[#allocation4 + $0x2c0] sm:$0xf]
    %v1755 = vld [vmem:[#allocation4 + $0x2c4] sm:$0xf]
    %v1756 = vld [vmem:[#allocation4 + $0x2c8] sm:$0xf]
    %v1757 = vld [vmem:[#allocation4 + $0x2cc] sm:$0xf]
    %v1758 = vld [vmem:[#allocation4 + $0x2d0] sm:$0xf]
    %v1759 = vld [vmem:[#allocation4 + $0x2d4] sm:$0xf]
    %v1760 = vld [vmem:[#allocation4 + $0x2d8] sm:$0xf]
    %v1761 = vld [vmem:[#allocation4 + $0x2dc] sm:$0xf]
    %v1762 = vld [vmem:[#allocation4 + $0x2e0] sm:$0xf]
    %v1763 = vld [vmem:[#allocation4 + $0x2e4] sm:$0xf]
    %v1764 = vld [vmem:[#allocation4 + $0x2e8] sm:$0xf]
    %v1765 = vld [vmem:[#allocation4 + $0x2ec] sm:$0xf]
    %v1766 = vld [vmem:[#allocation4 + $0x2f0] sm:$0xf]
    %v1767 = vld [vmem:[#allocation4 + $0x2f4] sm:$0xf]
    %v1768 = vld [vmem:[#allocation4 + $0x2f8] sm:$0xf]
    %v1769 = vld [vmem:[#allocation4 + $0x2fc] sm:$0xf]
    %v1834 = vunpack.c.l.b16 %v1706
    %v1835 = vunpack.c.l.b16 %v1707
    %v1836 = vunpack.c.l.b16 %v1708
    %v1837 = vunpack.c.l.b16 %v1709
    %v1838 = vunpack.c.l.b16 %v1710
    %v1839 = vunpack.c.l.b16 %v1711
    %v1840 = vunpack.c.l.b16 %v1712
    %v1841 = vunpack.c.l.b16 %v1713
    %v1842 = vunpack.c.l.b16 %v1714
    %v1843 = vunpack.c.l.b16 %v1715
    %v1844 = vunpack.c.l.b16 %v1716
    %v1845 = vunpack.c.l.b16 %v1717
    %v1846 = vunpack.c.l.b16 %v1718
    %v1847 = vunpack.c.l.b16 %v1719
    %v1848 = vunpack.c.l.b16 %v1720
    %v1849 = vunpack.c.l.b16 %v1721
    %v1850 = vunpack.c.l.b16 %v1722
    %v1851 = vunpack.c.l.b16 %v1723
    %v1852 = vunpack.c.l.b16 %v1724
    %v1853 = vunpack.c.l.b16 %v1725
    %v1854 = vunpack.c.l.b16 %v1726
    %v1855 = vunpack.c.l.b16 %v1727
    %v1856 = vunpack.c.l.b16 %v1728
    %v1857 = vunpack.c.l.b16 %v1729
    %v1858 = vunpack.c.l.b16 %v1730
    %v1859 = vunpack.c.l.b16 %v1731
    %v1860 = vunpack.c.l.b16 %v1732
    %v1861 = vunpack.c.l.b16 %v1733
    %v1862 = vunpack.c.l.b16 %v1734
    %v1863 = vunpack.c.l.b16 %v1735
    %v1864 = vunpack.c.l.b16 %v1736
    %v1865 = vunpack.c.l.b16 %v1737
    %v1866 = vunpack.c.l.b16 %v1738
    %v1867 = vunpack.c.l.b16 %v1739
    %v1868 = vunpack.c.l.b16 %v1740
    %v1869 = vunpack.c.l.b16 %v1741
    %v1870 = vunpack.c.l.b16 %v1742
    %v1871 = vunpack.c.l.b16 %v1743
    %v1872 = vunpack.c.l.b16 %v1744
    %v1873 = vunpack.c.l.b16 %v1745
    %v1874 = vunpack.c.l.b16 %v1746
    %v1875 = vunpack.c.l.b16 %v1747
    %v1876 = vunpack.c.l.b16 %v1748
    %v1877 = vunpack.c.l.b16 %v1749
    %v1878 = vunpack.c.l.b16 %v1750
    %v1879 = vunpack.c.l.b16 %v1751
    %v1880 = vunpack.c.l.b16 %v1752
    %v1881 = vunpack.c.l.b16 %v1753
    %v1882 = vunpack.c.l.b16 %v1754
    %v1883 = vunpack.c.l.b16 %v1755
    %v1884 = vunpack.c.l.b16 %v1756
    %v1885 = vunpack.c.l.b16 %v1757
    %v1886 = vunpack.c.l.b16 %v1758
    %v1887 = vunpack.c.l.b16 %v1759
    %v1888 = vunpack.c.l.b16 %v1760
    %v1889 = vunpack.c.l.b16 %v1761
    %v1890 = vunpack.c.l.b16 %v1762
    %v1891 = vunpack.c.l.b16 %v1763
    %v1892 = vunpack.c.l.b16 %v1764
    %v1893 = vunpack.c.l.b16 %v1765
    %v1894 = vunpack.c.l.b16 %v1766
    %v1895 = vunpack.c.l.b16 %v1767
    %v1896 = vunpack.c.l.b16 %v1768
    %v1897 = vunpack.c.l.b16 %v1769
    %v1898 = vpack.c.b16 %v1835, %v1834
    %v1899 = vpack.c.b16 %v1837, %v1836
    %v1900 = vpack.c.b16 %v1839, %v1838
    %v1901 = vpack.c.b16 %v1841, %v1840
    %v1902 = vpack.c.b16 %v1843, %v1842
    %v1903 = vpack.c.b16 %v1845, %v1844
    %v1904 = vpack.c.b16 %v1847, %v1846
    %v1905 = vpack.c.b16 %v1849, %v1848
    %v1906 = vpack.c.b16 %v1851, %v1850
    %v1907 = vpack.c.b16 %v1853, %v1852
    %v1908 = vpack.c.b16 %v1855, %v1854
    %v1909 = vpack.c.b16 %v1857, %v1856
    %v1910 = vpack.c.b16 %v1859, %v1858
    %v1911 = vpack.c.b16 %v1861, %v1860
    %v1912 = vpack.c.b16 %v1863, %v1862
    %v1913 = vpack.c.b16 %v1865, %v1864
    %v1914 = vpack.c.b16 %v1867, %v1866
    %v1915 = vpack.c.b16 %v1869, %v1868
    %v1916 = vpack.c.b16 %v1871, %v1870
    %v1917 = vpack.c.b16 %v1873, %v1872
    %v1918 = vpack.c.b16 %v1875, %v1874
    %v1919 = vpack.c.b16 %v1877, %v1876
    %v1920 = vpack.c.b16 %v1879, %v1878
    %v1921 = vpack.c.b16 %v1881, %v1880
    %v1922 = vpack.c.b16 %v1883, %v1882
    %v1923 = vpack.c.b16 %v1885, %v1884
    %v1924 = vpack.c.b16 %v1887, %v1886
    %v1925 = vpack.c.b16 %v1889, %v1888
    %v1926 = vpack.c.b16 %v1891, %v1890
    %v1927 = vpack.c.b16 %v1893, %v1892
    %v1928 = vpack.c.b16 %v1895, %v1894
    %v1929 = vpack.c.b16 %v1897, %v1896
    %1962 = vmatprep.subr.bf16.mxu0 0
    %1963 = vmatpush1.bf16.msra.mxu0 %v1898
    %1964 = vmatprep.subr.bf16.mxu0 0
    %1965 = vmatpush1.bf16.msra.mxu0 %v1899
    %1966 = vmatprep.subr.bf16.mxu0 0
    %1967 = vmatpush1.bf16.msra.mxu0 %v1900
    %1968 = vmatprep.subr.bf16.mxu0 0
    %1969 = vmatpush1.bf16.msra.mxu0 %v1901
    %1970 = vmatprep.subr.bf16.mxu0 0
    %1971 = vmatpush1.bf16.msra.mxu0 %v1902
    %1972 = vmatprep.subr.bf16.mxu0 0
    %1973 = vmatpush1.bf16.msra.mxu0 %v1903
    %1974 = vmatprep.subr.bf16.mxu0 0
    %1975 = vmatpush1.bf16.msra.mxu0 %v1904
    %1976 = vmatprep.subr.bf16.mxu0 0
    %1977 = vmatpush1.bf16.msra.mxu0 %v1905
    %1978 = vmatprep.subr.bf16.mxu0 0
    %1979 = vmatpush1.bf16.msra.mxu0 %v1906
    %1980 = vmatprep.subr.bf16.mxu0 0
    %1981 = vmatpush1.bf16.msra.mxu0 %v1907
    %1982 = vmatprep.subr.bf16.mxu0 0
    %1983 = vmatpush1.bf16.msra.mxu0 %v1908
    %1984 = vmatprep.subr.bf16.mxu0 0
    %1985 = vmatpush1.bf16.msra.mxu0 %v1909
    %1986 = vmatprep.subr.bf16.mxu0 0
    %1987 = vmatpush1.bf16.msra.mxu0 %v1910
    %1988 = vmatprep.subr.bf16.mxu0 0
    %1989 = vmatpush1.bf16.msra.mxu0 %v1911
    %1990 = vmatprep.subr.bf16.mxu0 0
    %1991 = vmatpush1.bf16.msra.mxu0 %v1912
    %1992 = vmatprep.subr.bf16.mxu0 0
    %1993 = vmatpush1.bf16.msra.mxu0 %v1913
    %1994 = vmatprep.mubr.bf16.mxu0 %v1703
    %1995 = vmatmul.mubr.bf16.gmra.mrb[0].mxu0 %v1702
    %v1996 = vpop.f32.mrb[0].mxu0
    %v1997 = vadd.f32 0.0, %v1996
    %v1998 = vpop.f32.mrb[0].mxu0
    %v1999 = vpop.f32.mrb[0].mxu0
    %v2000 = vadd.f32 0.0, %v1999
    %v2001 = vpop.f32.mrb[0].mxu0
    %2002 = vdwg.mxu0
    %2003 = vmatprep.subr.bf16.mxu0 0
    %2004 = vmatpush1.bf16.msra.mxu0 %v1914
    %2005 = vmatprep.subr.bf16.mxu0 0
    %2006 = vmatpush1.bf16.msra.mxu0 %v1915
    %2007 = vmatprep.subr.bf16.mxu0 0
    %2008 = vmatpush1.bf16.msra.mxu0 %v1916
    %2009 = vmatprep.subr.bf16.mxu0 0
    %2010 = vmatpush1.bf16.msra.mxu0 %v1917
    %2011 = vmatprep.subr.bf16.mxu0 0
    %2012 = vmatpush1.bf16.msra.mxu0 %v1918
    %2013 = vmatprep.subr.bf16.mxu0 0
    %2014 = vmatpush1.bf16.msra.mxu0 %v1919
    %2015 = vmatprep.subr.bf16.mxu0 0
    %2016 = vmatpush1.bf16.msra.mxu0 %v1920
    %2017 = vmatprep.subr.bf16.mxu0 0
    %2018 = vmatpush1.bf16.msra.mxu0 %v1921
    %2019 = vmatprep.subr.bf16.mxu0 0
    %2020 = vmatpush1.bf16.msra.mxu0 %v1922
    %2021 = vmatprep.subr.bf16.mxu0 0
    %2022 = vmatpush1.bf16.msra.mxu0 %v1923
    %2023 = vmatprep.subr.bf16.mxu0 0
    %2024 = vmatpush1.bf16.msra.mxu0 %v1924
    %2025 = vmatprep.subr.bf16.mxu0 0
    %2026 = vmatpush1.bf16.msra.mxu0 %v1925
    %2027 = vmatprep.subr.bf16.mxu0 0
    %2028 = vmatpush1.bf16.msra.mxu0 %v1926
    %2029 = vmatprep.subr.bf16.mxu0 0
    %2030 = vmatpush1.bf16.msra.mxu0 %v1927
    %2031 = vmatprep.subr.bf16.mxu0 0
    %2032 = vmatpush1.bf16.msra.mxu0 %v1928
    %2033 = vmatprep.subr.bf16.mxu0 0
    %2034 = vmatpush1.bf16.msra.mxu0 %v1929
    %2035 = vmatprep.mubr.bf16.mxu0 %v1705
    %2036 = vmatmul.mubr.bf16.gmra.mrb[0].mxu0 %v1704
    %v2037 = vpop.f32.mrb[0].mxu0
    %v2038 = vadd.f32 %v1997, %v2037
    %v2039 = vpop.f32.mrb[0].mxu0
    %v2040 = vpop.f32.mrb[0].mxu0
    %v2041 = vadd.f32 %v2000, %v2040
    %v2042 = vpop.f32.mrb[0].mxu0
    %2043 = vdwg.mxu0
    %v2044 = vadd.f32 %v1388, %v2038
    %v2045 = vadd.f32 %v1391, %v2041
    %v2046 = vld [vmem:[#allocation2 + $0x30] sm:$0xff]
    %v2047 = vld [vmem:[#allocation2 + $0x38] sm:$0xff]
    %v2048 = vld [vmem:[#allocation2 + $0x70] sm:$0xff]
    %v2049 = vld [vmem:[#allocation2 + $0x78] sm:$0xff]
    %v2050 = vld [vmem:[#allocation2 + $0xb0] sm:$0xff]
    %v2051 = vld [vmem:[#allocation2 + $0xb8] sm:$0xff]
    %v2052 = vld [vmem:[#allocation2 + $0xf0] sm:$0xff]
    %v2053 = vld [vmem:[#allocation2 + $0xf8] sm:$0xff]
    %v2054 = vld [vmem:[#allocation2 + $0x130] sm:$0xff]
    %v2055 = vld [vmem:[#allocation2 + $0x138] sm:$0xff]
    %v2056 = vld [vmem:[#allocation2 + $0x170] sm:$0xff]
    %v2057 = vld [vmem:[#allocation2 + $0x178] sm:$0xff]
    %v2058 = vld [vmem:[#allocation2 + $0x1b0] sm:$0xff]
    %v2059 = vld [vmem:[#allocation2 + $0x1b8] sm:$0xff]
    %v2060 = vld [vmem:[#allocation2 + $0x1f0] sm:$0xff]
    %v2061 = vld [vmem:[#allocation2 + $0x1f8] sm:$0xff]
    %v2062 = vld [vmem:[#allocation2 + $0x230] sm:$0xff]
    %v2063 = vld [vmem:[#allocation2 + $0x238] sm:$0xff]
    %v2064 = vld [vmem:[#allocation2 + $0x270] sm:$0xff]
    %v2065 = vld [vmem:[#allocation2 + $0x278] sm:$0xff]
    %v2066 = vld [vmem:[#allocation2 + $0x2b0] sm:$0xff]
    %v2067 = vld [vmem:[#allocation2 + $0x2b8] sm:$0xff]
    %v2068 = vld [vmem:[#allocation2 + $0x2f0] sm:$0xff]
    %v2069 = vld [vmem:[#allocation2 + $0x2f8] sm:$0xff]
    %v2070 = vld [vmem:[#allocation2 + $0x330] sm:$0xff]
    %v2071 = vld [vmem:[#allocation2 + $0x338] sm:$0xff]
    %v2072 = vld [vmem:[#allocation2 + $0x370] sm:$0xff]
    %v2073 = vld [vmem:[#allocation2 + $0x378] sm:$0xff]
    %v2074 = vld [vmem:[#allocation2 + $0x3b0] sm:$0xff]
    %v2075 = vld [vmem:[#allocation2 + $0x3b8] sm:$0xff]
    %v2076 = vld [vmem:[#allocation2 + $0x3f0] sm:$0xff]
    %v2077 = vld [vmem:[#allocation2 + $0x3f8] sm:$0xff]
    %v2078 = vld [vmem:[%s5 + $0xc] sm:$0xf]
    %v2080 = vlaneseq
    %v2081 = vshrl.u32 %v2080, 7
    %v2082 = vsub.s32 0, %v2081
    %v2083 = vrot.slane %v2078, %v2082
    %v2084 = vlaneseq
    %v2085 = vshrl.u32 %v2084, 7
    %v2086 = vsub.s32 1, %v2085
    %v2087 = vrot.slane %v2078, %v2086
    %v2088 = vlaneseq
    %v2089 = vshrl.u32 %v2088, 7
    %v2090 = vsub.s32 2, %v2089
    %v2091 = vrot.slane %v2078, %v2090
    %v2092 = vlaneseq
    %v2093 = vshrl.u32 %v2092, 7
    %v2094 = vsub.s32 3, %v2093
    %v2095 = vrot.slane %v2078, %v2094
    %v2132 = vunpack.c.l.b16 %v2046
    %v2133 = vunpack.c.h.b16 %v2046
    %v2134 = vunpack.c.l.b16 %v2047
    %v2135 = vunpack.c.h.b16 %v2047
    %v2136 = vunpack.c.l.b16 %v2048
    %v2137 = vunpack.c.h.b16 %v2048
    %v2138 = vunpack.c.l.b16 %v2049
    %v2139 = vunpack.c.h.b16 %v2049
    %v2140 = vunpack.c.l.b16 %v2050
    %v2141 = vunpack.c.h.b16 %v2050
    %v2142 = vunpack.c.l.b16 %v2051
    %v2143 = vunpack.c.h.b16 %v2051
    %v2144 = vunpack.c.l.b16 %v2052
    %v2145 = vunpack.c.h.b16 %v2052
    %v2146 = vunpack.c.l.b16 %v2053
    %v2147 = vunpack.c.h.b16 %v2053
    %v2148 = vunpack.c.l.b16 %v2054
    %v2149 = vunpack.c.h.b16 %v2054
    %v2150 = vunpack.c.l.b16 %v2055
    %v2151 = vunpack.c.h.b16 %v2055
    %v2152 = vunpack.c.l.b16 %v2056
    %v2153 = vunpack.c.h.b16 %v2056
    %v2154 = vunpack.c.l.b16 %v2057
    %v2155 = vunpack.c.h.b16 %v2057
    %v2156 = vunpack.c.l.b16 %v2058
    %v2157 = vunpack.c.h.b16 %v2058
    %v2158 = vunpack.c.l.b16 %v2059
    %v2159 = vunpack.c.h.b16 %v2059
    %v2160 = vunpack.c.l.b16 %v2060
    %v2161 = vunpack.c.h.b16 %v2060
    %v2162 = vunpack.c.l.b16 %v2061
    %v2163 = vunpack.c.h.b16 %v2061
    %v2164 = vunpack.c.l.b16 %v2062
    %v2165 = vunpack.c.h.b16 %v2062
    %v2166 = vunpack.c.l.b16 %v2063
    %v2167 = vunpack.c.h.b16 %v2063
    %v2168 = vunpack.c.l.b16 %v2064
    %v2169 = vunpack.c.h.b16 %v2064
    %v2170 = vunpack.c.l.b16 %v2065
    %v2171 = vunpack.c.h.b16 %v2065
    %v2172 = vunpack.c.l.b16 %v2066
    %v2173 = vunpack.c.h.b16 %v2066
    %v2174 = vunpack.c.l.b16 %v2067
    %v2175 = vunpack.c.h.b16 %v2067
    %v2176 = vunpack.c.l.b16 %v2068
    %v2177 = vunpack.c.h.b16 %v2068
    %v2178 = vunpack.c.l.b16 %v2069
    %v2179 = vunpack.c.h.b16 %v2069
    %v2180 = vunpack.c.l.b16 %v2070
    %v2181 = vunpack.c.h.b16 %v2070
    %v2182 = vunpack.c.l.b16 %v2071
    %v2183 = vunpack.c.h.b16 %v2071
    %v2184 = vunpack.c.l.b16 %v2072
    %v2185 = vunpack.c.h.b16 %v2072
    %v2186 = vunpack.c.l.b16 %v2073
    %v2187 = vunpack.c.h.b16 %v2073
    %v2188 = vunpack.c.l.b16 %v2074
    %v2189 = vunpack.c.h.b16 %v2074
    %v2190 = vunpack.c.l.b16 %v2075
    %v2191 = vunpack.c.h.b16 %v2075
    %v2192 = vunpack.c.l.b16 %v2076
    %v2193 = vunpack.c.h.b16 %v2076
    %v2194 = vunpack.c.l.b16 %v2077
    %v2195 = vunpack.c.h.b16 %v2077
    %v2196 = vpack.c.b16 %v2136, %v2132
    %v2197 = vpack.c.b16 %v2137, %v2133
    %v2198 = vpack.c.b16 %v2138, %v2134
    %v2199 = vpack.c.b16 %v2139, %v2135
    %v2200 = vpack.c.b16 %v2144, %v2140
    %v2201 = vpack.c.b16 %v2145, %v2141
    %v2202 = vpack.c.b16 %v2146, %v2142
    %v2203 = vpack.c.b16 %v2147, %v2143
    %v2204 = vpack.c.b16 %v2152, %v2148
    %v2205 = vpack.c.b16 %v2153, %v2149
    %v2206 = vpack.c.b16 %v2154, %v2150
    %v2207 = vpack.c.b16 %v2155, %v2151
    %v2208 = vpack.c.b16 %v2160, %v2156
    %v2209 = vpack.c.b16 %v2161, %v2157
    %v2210 = vpack.c.b16 %v2162, %v2158
    %v2211 = vpack.c.b16 %v2163, %v2159
    %v2212 = vpack.c.b16 %v2168, %v2164
    %v2213 = vpack.c.b16 %v2169, %v2165
    %v2214 = vpack.c.b16 %v2170, %v2166
    %v2215 = vpack.c.b16 %v2171, %v2167
    %v2216 = vpack.c.b16 %v2176, %v2172
    %v2217 = vpack.c.b16 %v2177, %v2173
    %v2218 = vpack.c.b16 %v2178, %v2174
    %v2219 = vpack.c.b16 %v2179, %v2175
    %v2220 = vpack.c.b16 %v2184, %v2180
    %v2221 = vpack.c.b16 %v2185, %v2181
    %v2222 = vpack.c.b16 %v2186, %v2182
    %v2223 = vpack.c.b16 %v2187, %v2183
    %v2224 = vpack.c.b16 %v2192, %v2188
    %v2225 = vpack.c.b16 %v2193, %v2189
    %v2226 = vpack.c.b16 %v2194, %v2190
    %v2227 = vpack.c.b16 %v2195, %v2191
    %2260 = vmatprep.subr.bf16.mxu0 %v2197
    %2261 = vmatpush1.bf16.msra.mxu0 %v2196
    %2262 = vmatprep.subr.bf16.mxu0 %v2201
    %2263 = vmatpush1.bf16.msra.mxu0 %v2200
    %2264 = vmatprep.subr.bf16.mxu0 %v2205
    %2265 = vmatpush1.bf16.msra.mxu0 %v2204
    %2266 = vmatprep.subr.bf16.mxu0 %v2209
    %2267 = vmatpush1.bf16.msra.mxu0 %v2208
    %2268 = vmatprep.subr.bf16.mxu0 %v2213
    %2269 = vmatpush1.bf16.msra.mxu0 %v2212
    %2270 = vmatprep.subr.bf16.mxu0 %v2217
    %2271 = vmatpush1.bf16.msra.mxu0 %v2216
    %2272 = vmatprep.subr.bf16.mxu0 %v2221
    %2273 = vmatpush1.bf16.msra.mxu0 %v2220
    %2274 = vmatprep.subr.bf16.mxu0 %v2225
    %2275 = vmatpush1.bf16.msra.mxu0 %v2224
    %2276 = vmatprep.subr.bf16.mxu0 0
    %2277 = vmatpush1.bf16.msra.mxu0 0
    %2278 = vmatprep.subr.bf16.mxu0 0
    %2279 = vmatpush1.bf16.msra.mxu0 0
    %2280 = vmatprep.subr.bf16.mxu0 0
    %2281 = vmatpush1.bf16.msra.mxu0 0
    %2282 = vmatprep.subr.bf16.mxu0 0
    %2283 = vmatpush1.bf16.msra.mxu0 0
    %2284 = vmatprep.subr.bf16.mxu0 0
    %2285 = vmatpush1.bf16.msra.mxu0 0
    %2286 = vmatprep.subr.bf16.mxu0 0
    %2287 = vmatpush1.bf16.msra.mxu0 0
    %2288 = vmatprep.subr.bf16.mxu0 0
    %2289 = vmatpush1.bf16.msra.mxu0 0
    %2290 = vmatprep.subr.bf16.mxu0 0
    %2291 = vmatpush1.bf16.msra.mxu0 0
    %2292 = vmatprep.mubr.bf16.mxu0 0
    %2293 = vmatmul.mubr.bf16.gmra.mrb[0].mxu0 %v93
    %v2294 = vpop.f32.mrb[0].mxu0
    %v2295 = vadd.f32 %v2083, %v2294
    %v2296 = vpop.f32.mrb[0].mxu0
    %v2297 = vadd.f32 %v2087, %v2296
    %v2298 = vpop.f32.mrb[0].mxu0
    %v2299 = vadd.f32 %v2083, %v2298
    %v2300 = vpop.f32.mrb[0].mxu0
    %v2301 = vadd.f32 %v2087, %v2300
    %2302 = vdwg.mxu0
    %2303 = vmatprep.subr.bf16.mxu0 %v2199
    %2304 = vmatpush1.bf16.msra.mxu0 %v2198
    %2305 = vmatprep.subr.bf16.mxu0 %v2203
    %2306 = vmatpush1.bf16.msra.mxu0 %v2202
    %2307 = vmatprep.subr.bf16.mxu0 %v2207
    %2308 = vmatpush1.bf16.msra.mxu0 %v2206
    %2309 = vmatprep.subr.bf16.mxu0 %v2211
    %2310 = vmatpush1.bf16.msra.mxu0 %v2210
    %2311 = vmatprep.subr.bf16.mxu0 %v2215
    %2312 = vmatpush1.bf16.msra.mxu0 %v2214
    %2313 = vmatprep.subr.bf16.mxu0 %v2219
    %2314 = vmatpush1.bf16.msra.mxu0 %v2218
    %2315 = vmatprep.subr.bf16.mxu0 %v2223
    %2316 = vmatpush1.bf16.msra.mxu0 %v2222
    %2317 = vmatprep.subr.bf16.mxu0 %v2227
    %2318 = vmatpush1.bf16.msra.mxu0 %v2226
    %2319 = vmatprep.subr.bf16.mxu0 0
    %2320 = vmatpush1.bf16.msra.mxu0 0
    %2321 = vmatprep.subr.bf16.mxu0 0
    %2322 = vmatpush1.bf16.msra.mxu0 0
    %2323 = vmatprep.subr.bf16.mxu0 0
    %2324 = vmatpush1.bf16.msra.mxu0 0
    %2325 = vmatprep.subr.bf16.mxu0 0
    %2326 = vmatpush1.bf16.msra.mxu0 0
    %2327 = vmatprep.subr.bf16.mxu0 0
    %2328 = vmatpush1.bf16.msra.mxu0 0
    %2329 = vmatprep.subr.bf16.mxu0 0
    %2330 = vmatpush1.bf16.msra.mxu0 0
    %2331 = vmatprep.subr.bf16.mxu0 0
    %2332 = vmatpush1.bf16.msra.mxu0 0
    %2333 = vmatprep.subr.bf16.mxu0 0
    %2334 = vmatpush1.bf16.msra.mxu0 0
    %2335 = vmatprep.mubr.bf16.mxu0 0
    %2336 = vmatmul.mubr.bf16.gmra.mrb[0].mxu0 %v93
    %v2337 = vpop.f32.mrb[0].mxu0
    %v2338 = vadd.f32 %v2091, %v2337
    %v2339 = vpop.f32.mrb[0].mxu0
    %v2340 = vadd.f32 %v2095, %v2339
    %v2341 = vpop.f32.mrb[0].mxu0
    %v2342 = vadd.f32 %v2091, %v2341
    %v2343 = vpop.f32.mrb[0].mxu0
    %v2344 = vadd.f32 %v2095, %v2343
    %2345 = vdwg.mxu0
    %v2346 = vmax.f32 %v2295, 0.0
    %v2347 = vmax.f32 %v2297, 0.0
    %v2348 = vmax.f32 %v2338, 0.0
    %v2349 = vmax.f32 %v2340, 0.0
    %v2350 = vmax.f32 %v2299, 0.0
    %v2351 = vmax.f32 %v2301, 0.0
    %v2352 = vmax.f32 %v2342, 0.0
    %v2353 = vmax.f32 %v2344, 0.0
    %v2354 = vpack.c.bf16 %v2350, %v2346
    %v2355 = vpack.c.bf16 %v2351, %v2347
    %v2356 = vpack.c.bf16 %v2352, %v2348
    %v2357 = vpack.c.bf16 %v2353, %v2349
    %v2358 = vld [vmem:[#allocation4 + $0x300] sm:$0xf]
    %v2359 = vld [vmem:[#allocation4 + $0x304] sm:$0xf]
    %v2360 = vld [vmem:[#allocation4 + $0x308] sm:$0xf]
    %v2361 = vld [vmem:[#allocation4 + $0x30c] sm:$0xf]
    %v2362 = vld [vmem:[#allocation4 + $0x310] sm:$0xf]
    %v2363 = vld [vmem:[#allocation4 + $0x314] sm:$0xf]
    %v2364 = vld [vmem:[#allocation4 + $0x318] sm:$0xf]
    %v2365 = vld [vmem:[#allocation4 + $0x31c] sm:$0xf]
    %v2366 = vld [vmem:[#allocation4 + $0x320] sm:$0xf]
    %v2367 = vld [vmem:[#allocation4 + $0x324] sm:$0xf]
    %v2368 = vld [vmem:[#allocation4 + $0x328] sm:$0xf]
    %v2369 = vld [vmem:[#allocation4 + $0x32c] sm:$0xf]
    %v2370 = vld [vmem:[#allocation4 + $0x330] sm:$0xf]
    %v2371 = vld [vmem:[#allocation4 + $0x334] sm:$0xf]
    %v2372 = vld [vmem:[#allocation4 + $0x338] sm:$0xf]
    %v2373 = vld [vmem:[#allocation4 + $0x33c] sm:$0xf]
    %v2374 = vld [vmem:[#allocation4 + $0x340] sm:$0xf]
    %v2375 = vld [vmem:[#allocation4 + $0x344] sm:$0xf]
    %v2376 = vld [vmem:[#allocation4 + $0x348] sm:$0xf]
    %v2377 = vld [vmem:[#allocation4 + $0x34c] sm:$0xf]
    %v2378 = vld [vmem:[#allocation4 + $0x350] sm:$0xf]
    %v2379 = vld [vmem:[#allocation4 + $0x354] sm:$0xf]
    %v2380 = vld [vmem:[#allocation4 + $0x358] sm:$0xf]
    %v2381 = vld [vmem:[#allocation4 + $0x35c] sm:$0xf]
    %v2382 = vld [vmem:[#allocation4 + $0x360] sm:$0xf]
    %v2383 = vld [vmem:[#allocation4 + $0x364] sm:$0xf]
    %v2384 = vld [vmem:[#allocation4 + $0x368] sm:$0xf]
    %v2385 = vld [vmem:[#allocation4 + $0x36c] sm:$0xf]
    %v2386 = vld [vmem:[#allocation4 + $0x370] sm:$0xf]
    %v2387 = vld [vmem:[#allocation4 + $0x374] sm:$0xf]
    %v2388 = vld [vmem:[#allocation4 + $0x378] sm:$0xf]
    %v2389 = vld [vmem:[#allocation4 + $0x37c] sm:$0xf]
    %v2390 = vld [vmem:[#allocation4 + $0x380] sm:$0xf]
    %v2391 = vld [vmem:[#allocation4 + $0x384] sm:$0xf]
    %v2392 = vld [vmem:[#allocation4 + $0x388] sm:$0xf]
    %v2393 = vld [vmem:[#allocation4 + $0x38c] sm:$0xf]
    %v2394 = vld [vmem:[#allocation4 + $0x390] sm:$0xf]
    %v2395 = vld [vmem:[#allocation4 + $0x394] sm:$0xf]
    %v2396 = vld [vmem:[#allocation4 + $0x398] sm:$0xf]
    %v2397 = vld [vmem:[#allocation4 + $0x39c] sm:$0xf]
    %v2398 = vld [vmem:[#allocation4 + $0x3a0] sm:$0xf]
    %v2399 = vld [vmem:[#allocation4 + $0x3a4] sm:$0xf]
    %v2400 = vld [vmem:[#allocation4 + $0x3a8] sm:$0xf]
    %v2401 = vld [vmem:[#allocation4 + $0x3ac] sm:$0xf]
    %v2402 = vld [vmem:[#allocation4 + $0x3b0] sm:$0xf]
    %v2403 = vld [vmem:[#allocation4 + $0x3b4] sm:$0xf]
    %v2404 = vld [vmem:[#allocation4 + $0x3b8] sm:$0xf]
    %v2405 = vld [vmem:[#allocation4 + $0x3bc] sm:$0xf]
    %v2406 = vld [vmem:[#allocation4 + $0x3c0] sm:$0xf]
    %v2407 = vld [vmem:[#allocation4 + $0x3c4] sm:$0xf]
    %v2408 = vld [vmem:[#allocation4 + $0x3c8] sm:$0xf]
    %v2409 = vld [vmem:[#allocation4 + $0x3cc] sm:$0xf]
    %v2410 = vld [vmem:[#allocation4 + $0x3d0] sm:$0xf]
    %v2411 = vld [vmem:[#allocation4 + $0x3d4] sm:$0xf]
    %v2412 = vld [vmem:[#allocation4 + $0x3d8] sm:$0xf]
    %v2413 = vld [vmem:[#allocation4 + $0x3dc] sm:$0xf]
    %v2414 = vld [vmem:[#allocation4 + $0x3e0] sm:$0xf]
    %v2415 = vld [vmem:[#allocation4 + $0x3e4] sm:$0xf]
    %v2416 = vld [vmem:[#allocation4 + $0x3e8] sm:$0xf]
    %v2417 = vld [vmem:[#allocation4 + $0x3ec] sm:$0xf]
    %v2418 = vld [vmem:[#allocation4 + $0x3f0] sm:$0xf]
    %v2419 = vld [vmem:[#allocation4 + $0x3f4] sm:$0xf]
    %v2420 = vld [vmem:[#allocation4 + $0x3f8] sm:$0xf]
    %v2421 = vld [vmem:[#allocation4 + $0x3fc] sm:$0xf]
    %v2486 = vunpack.c.l.b16 %v2358
    %v2487 = vunpack.c.l.b16 %v2359
    %v2488 = vunpack.c.l.b16 %v2360
    %v2489 = vunpack.c.l.b16 %v2361
    %v2490 = vunpack.c.l.b16 %v2362
    %v2491 = vunpack.c.l.b16 %v2363
    %v2492 = vunpack.c.l.b16 %v2364
    %v2493 = vunpack.c.l.b16 %v2365
    %v2494 = vunpack.c.l.b16 %v2366
    %v2495 = vunpack.c.l.b16 %v2367
    %v2496 = vunpack.c.l.b16 %v2368
    %v2497 = vunpack.c.l.b16 %v2369
    %v2498 = vunpack.c.l.b16 %v2370
    %v2499 = vunpack.c.l.b16 %v2371
    %v2500 = vunpack.c.l.b16 %v2372
    %v2501 = vunpack.c.l.b16 %v2373
    %v2502 = vunpack.c.l.b16 %v2374
    %v2503 = vunpack.c.l.b16 %v2375
    %v2504 = vunpack.c.l.b16 %v2376
    %v2505 = vunpack.c.l.b16 %v2377
    %v2506 = vunpack.c.l.b16 %v2378
    %v2507 = vunpack.c.l.b16 %v2379
    %v2508 = vunpack.c.l.b16 %v2380
    %v2509 = vunpack.c.l.b16 %v2381
    %v2510 = vunpack.c.l.b16 %v2382
    %v2511 = vunpack.c.l.b16 %v2383
    %v2512 = vunpack.c.l.b16 %v2384
    %v2513 = vunpack.c.l.b16 %v2385
    %v2514 = vunpack.c.l.b16 %v2386
    %v2515 = vunpack.c.l.b16 %v2387
    %v2516 = vunpack.c.l.b16 %v2388
    %v2517 = vunpack.c.l.b16 %v2389
    %v2518 = vunpack.c.l.b16 %v2390
    %v2519 = vunpack.c.l.b16 %v2391
    %v2520 = vunpack.c.l.b16 %v2392
    %v2521 = vunpack.c.l.b16 %v2393
    %v2522 = vunpack.c.l.b16 %v2394
    %v2523 = vunpack.c.l.b16 %v2395
    %v2524 = vunpack.c.l.b16 %v2396
    %v2525 = vunpack.c.l.b16 %v2397
    %v2526 = vunpack.c.l.b16 %v2398
    %v2527 = vunpack.c.l.b16 %v2399
    %v2528 = vunpack.c.l.b16 %v2400
    %v2529 = vunpack.c.l.b16 %v2401
    %v2530 = vunpack.c.l.b16 %v2402
    %v2531 = vunpack.c.l.b16 %v2403
    %v2532 = vunpack.c.l.b16 %v2404
    %v2533 = vunpack.c.l.b16 %v2405
    %v2534 = vunpack.c.l.b16 %v2406
    %v2535 = vunpack.c.l.b16 %v2407
    %v2536 = vunpack.c.l.b16 %v2408
    %v2537 = vunpack.c.l.b16 %v2409
    %v2538 = vunpack.c.l.b16 %v2410
    %v2539 = vunpack.c.l.b16 %v2411
    %v2540 = vunpack.c.l.b16 %v2412
    %v2541 = vunpack.c.l.b16 %v2413
    %v2542 = vunpack.c.l.b16 %v2414
    %v2543 = vunpack.c.l.b16 %v2415
    %v2544 = vunpack.c.l.b16 %v2416
    %v2545 = vunpack.c.l.b16 %v2417
    %v2546 = vunpack.c.l.b16 %v2418
    %v2547 = vunpack.c.l.b16 %v2419
    %v2548 = vunpack.c.l.b16 %v2420
    %v2549 = vunpack.c.l.b16 %v2421
    %v2550 = vpack.c.b16 %v2487, %v2486
    %v2551 = vpack.c.b16 %v2489, %v2488
    %v2552 = vpack.c.b16 %v2491, %v2490
    %v2553 = vpack.c.b16 %v2493, %v2492
    %v2554 = vpack.c.b16 %v2495, %v2494
    %v2555 = vpack.c.b16 %v2497, %v2496
    %v2556 = vpack.c.b16 %v2499, %v2498
    %v2557 = vpack.c.b16 %v2501, %v2500
    %v2558 = vpack.c.b16 %v2503, %v2502
    %v2559 = vpack.c.b16 %v2505, %v2504
    %v2560 = vpack.c.b16 %v2507, %v2506
    %v2561 = vpack.c.b16 %v2509, %v2508
    %v2562 = vpack.c.b16 %v2511, %v2510
    %v2563 = vpack.c.b16 %v2513, %v2512
    %v2564 = vpack.c.b16 %v2515, %v2514
    %v2565 = vpack.c.b16 %v2517, %v2516
    %v2566 = vpack.c.b16 %v2519, %v2518
    %v2567 = vpack.c.b16 %v2521, %v2520
    %v2568 = vpack.c.b16 %v2523, %v2522
    %v2569 = vpack.c.b16 %v2525, %v2524
    %v2570 = vpack.c.b16 %v2527, %v2526
    %v2571 = vpack.c.b16 %v2529, %v2528
    %v2572 = vpack.c.b16 %v2531, %v2530
    %v2573 = vpack.c.b16 %v2533, %v2532
    %v2574 = vpack.c.b16 %v2535, %v2534
    %v2575 = vpack.c.b16 %v2537, %v2536
    %v2576 = vpack.c.b16 %v2539, %v2538
    %v2577 = vpack.c.b16 %v2541, %v2540
    %v2578 = vpack.c.b16 %v2543, %v2542
    %v2579 = vpack.c.b16 %v2545, %v2544
    %v2580 = vpack.c.b16 %v2547, %v2546
    %v2581 = vpack.c.b16 %v2549, %v2548
    %2614 = vmatprep.subr.bf16.mxu0 0
    %2615 = vmatpush1.bf16.msra.mxu0 %v2550
    %2616 = vmatprep.subr.bf16.mxu0 0
    %2617 = vmatpush1.bf16.msra.mxu0 %v2551
    %2618 = vmatprep.subr.bf16.mxu0 0
    %2619 = vmatpush1.bf16.msra.mxu0 %v2552
    %2620 = vmatprep.subr.bf16.mxu0 0
    %2621 = vmatpush1.bf16.msra.mxu0 %v2553
    %2622 = vmatprep.subr.bf16.mxu0 0
    %2623 = vmatpush1.bf16.msra.mxu0 %v2554
    %2624 = vmatprep.subr.bf16.mxu0 0
    %2625 = vmatpush1.bf16.msra.mxu0 %v2555
    %2626 = vmatprep.subr.bf16.mxu0 0
    %2627 = vmatpush1.bf16.msra.mxu0 %v2556
    %2628 = vmatprep.subr.bf16.mxu0 0
    %2629 = vmatpush1.bf16.msra.mxu0 %v2557
    %2630 = vmatprep.subr.bf16.mxu0 0
    %2631 = vmatpush1.bf16.msra.mxu0 %v2558
    %2632 = vmatprep.subr.bf16.mxu0 0
    %2633 = vmatpush1.bf16.msra.mxu0 %v2559
    %2634 = vmatprep.subr.bf16.mxu0 0
    %2635 = vmatpush1.bf16.msra.mxu0 %v2560
    %2636 = vmatprep.subr.bf16.mxu0 0
    %2637 = vmatpush1.bf16.msra.mxu0 %v2561
    %2638 = vmatprep.subr.bf16.mxu0 0
    %2639 = vmatpush1.bf16.msra.mxu0 %v2562
    %2640 = vmatprep.subr.bf16.mxu0 0
    %2641 = vmatpush1.bf16.msra.mxu0 %v2563
    %2642 = vmatprep.subr.bf16.mxu0 0
    %2643 = vmatpush1.bf16.msra.mxu0 %v2564
    %2644 = vmatprep.subr.bf16.mxu0 0
    %2645 = vmatpush1.bf16.msra.mxu0 %v2565
    %2646 = vmatprep.mubr.bf16.mxu0 %v2355
    %2647 = vmatmul.mubr.bf16.gmra.mrb[0].mxu0 %v2354
    %v2648 = vpop.f32.mrb[0].mxu0
    %v2649 = vadd.f32 0.0, %v2648
    %v2650 = vpop.f32.mrb[0].mxu0
    %v2651 = vpop.f32.mrb[0].mxu0
    %v2652 = vadd.f32 0.0, %v2651
    %v2653 = vpop.f32.mrb[0].mxu0
    %2654 = vdwg.mxu0
    %2655 = vmatprep.subr.bf16.mxu0 0
    %2656 = vmatpush1.bf16.msra.mxu0 %v2566
    %2657 = vmatprep.subr.bf16.mxu0 0
    %2658 = vmatpush1.bf16.msra.mxu0 %v2567
    %2659 = vmatprep.subr.bf16.mxu0 0
    %2660 = vmatpush1.bf16.msra.mxu0 %v2568
    %2661 = vmatprep.subr.bf16.mxu0 0
    %2662 = vmatpush1.bf16.msra.mxu0 %v2569
    %2663 = vmatprep.subr.bf16.mxu0 0
    %2664 = vmatpush1.bf16.msra.mxu0 %v2570
    %2665 = vmatprep.subr.bf16.mxu0 0
    %2666 = vmatpush1.bf16.msra.mxu0 %v2571
    %2667 = vmatprep.subr.bf16.mxu0 0
    %2668 = vmatpush1.bf16.msra.mxu0 %v2572
    %2669 = vmatprep.subr.bf16.mxu0 0
    %2670 = vmatpush1.bf16.msra.mxu0 %v2573
    %2671 = vmatprep.subr.bf16.mxu0 0
    %2672 = vmatpush1.bf16.msra.mxu0 %v2574
    %2673 = vmatprep.subr.bf16.mxu0 0
    %2674 = vmatpush1.bf16.msra.mxu0 %v2575
    %2675 = vmatprep.subr.bf16.mxu0 0
    %2676 = vmatpush1.bf16.msra.mxu0 %v2576
    %2677 = vmatprep.subr.bf16.mxu0 0
    %2678 = vmatpush1.bf16.msra.mxu0 %v2577
    %2679 = vmatprep.subr.bf16.mxu0 0
    %2680 = vmatpush1.bf16.msra.mxu0 %v2578
    %2681 = vmatprep.subr.bf16.mxu0 0
    %2682 = vmatpush1.bf16.msra.mxu0 %v2579
    %2683 = vmatprep.subr.bf16.mxu0 0
    %2684 = vmatpush1.bf16.msra.mxu0 %v2580
    %2685 = vmatprep.subr.bf16.mxu0 0
    %2686 = vmatpush1.bf16.msra.mxu0 %v2581
    %2687 = vmatprep.mubr.bf16.mxu0 %v2357
    %2688 = vmatmul.mubr.bf16.gmra.mrb[0].mxu0 %v2356
    %v2689 = vpop.f32.mrb[0].mxu0
    %v2690 = vadd.f32 %v2649, %v2689
    %v2691 = vpop.f32.mrb[0].mxu0
    %v2692 = vpop.f32.mrb[0].mxu0
    %v2693 = vadd.f32 %v2652, %v2692
    %v2694 = vpop.f32.mrb[0].mxu0
    %2695 = vdwg.mxu0
    %v2696 = vadd.f32 %v2044, %v2690
    %v2697 = vadd.f32 %v2045, %v2693
    %v2698 = vlaneseq
    %v2699 = vshrl.u32 %v2698, 7
    %v2700 = vsub.s32 0, %v2699
    %v2701 = vrot.slane %v84, %v2700
    %v2702 = vadd.f32 %v2696, %v2701
    %v2703 = vadd.f32 %v2697, %v2701
    %v2704 = vpack.c.bf16 %v2703, %v2702
    %v2705 = vld [vmem:[#allocation6] sm:$0xff]
    %v2706 = vld [vmem:[#allocation6 + $0x8] sm:$0xf]
    %v2707 = vld [vmem:[#allocation6 + $0xc] sm:$0xff]
    %v2708 = vld [vmem:[#allocation6 + $0x14] sm:$0xf]
    %v2709 = vld [vmem:[#allocation6 + $0x18] sm:$0xff]
    %v2710 = vld [vmem:[#allocation6 + $0x20] sm:$0xf]
    %v2711 = vld [vmem:[#allocation6 + $0x24] sm:$0xff]
    %v2712 = vld [vmem:[#allocation6 + $0x2c] sm:$0xf]
    %v2713 = vld [vmem:[#allocation6 + $0x30] sm:$0xff]
    %v2714 = vld [vmem:[#allocation6 + $0x38] sm:$0xf]
    %v2715 = vld [vmem:[#allocation6 + $0x3c] sm:$0xff]
    %v2716 = vld [vmem:[#allocation6 + $0x44] sm:$0xf]
    %v2717 = vld [vmem:[#allocation6 + $0x48] sm:$0xff]
    %v2718 = vld [vmem:[#allocation6 + $0x50] sm:$0xf]
    %v2719 = vld [vmem:[#allocation6 + $0x54] sm:$0xff]
    %v2720 = vld [vmem:[#allocation6 + $0x5c] sm:$0xf]
    %v2721 = vld [vmem:[#allocation6 + $0x60] sm:$0xff]
    %v2722 = vld [vmem:[#allocation6 + $0x68] sm:$0xf]
    %v2723 = vld [vmem:[#allocation6 + $0x6c] sm:$0xff]
    %v2724 = vld [vmem:[#allocation6 + $0x74] sm:$0xf]
    %v2725 = vld [vmem:[#allocation6 + $0x78] sm:$0xff]
    %v2726 = vld [vmem:[#allocation6 + $0x80] sm:$0xf]
    %v2727 = vld [vmem:[#allocation6 + $0x84] sm:$0xff]
    %v2728 = vld [vmem:[#allocation6 + $0x8c] sm:$0xf]
    %v2729 = vld [vmem:[#allocation6 + $0x90] sm:$0xff]
    %v2730 = vld [vmem:[#allocation6 + $0x98] sm:$0xf]
    %v2731 = vld [vmem:[#allocation6 + $0x9c] sm:$0xff]
    %v2732 = vld [vmem:[#allocation6 + $0xa4] sm:$0xf]
    %v2733 = vld [vmem:[#allocation6 + $0xa8] sm:$0xff]
    %v2734 = vld [vmem:[#allocation6 + $0xb0] sm:$0xf]
    %v2735 = vld [vmem:[#allocation6 + $0xb4] sm:$0xff]
    %v2736 = vld [vmem:[#allocation6 + $0xbc] sm:$0xf]
    %v2769 = vunpack.c.l.b16 %v2705
    %v2770 = vunpack.c.h.b16 %v2705
    %v2771 = vunpack.c.l.b16 %v2706
    %v2772 = vunpack.c.l.b16 %v2707
    %v2773 = vunpack.c.h.b16 %v2707
    %v2774 = vunpack.c.l.b16 %v2708
    %v2775 = vunpack.c.l.b16 %v2709
    %v2776 = vunpack.c.h.b16 %v2709
    %v2777 = vunpack.c.l.b16 %v2710
    %v2778 = vunpack.c.l.b16 %v2711
    %v2779 = vunpack.c.h.b16 %v2711
    %v2780 = vunpack.c.l.b16 %v2712
    %v2781 = vunpack.c.l.b16 %v2713
    %v2782 = vunpack.c.h.b16 %v2713
    %v2783 = vunpack.c.l.b16 %v2714
    %v2784 = vunpack.c.l.b16 %v2715
    %v2785 = vunpack.c.h.b16 %v2715
    %v2786 = vunpack.c.l.b16 %v2716
    %v2787 = vunpack.c.l.b16 %v2717
    %v2788 = vunpack.c.h.b16 %v2717
    %v2789 = vunpack.c.l.b16 %v2718
    %v2790 = vunpack.c.l.b16 %v2719
    %v2791 = vunpack.c.h.b16 %v2719
    %v2792 = vunpack.c.l.b16 %v2720
    %v2793 = vunpack.c.l.b16 %v2721
    %v2794 = vunpack.c.h.b16 %v2721
    %v2795 = vunpack.c.l.b16 %v2722
    %v2796 = vunpack.c.l.b16 %v2723
    %v2797 = vunpack.c.h.b16 %v2723
    %v2798 = vunpack.c.l.b16 %v2724
    %v2799 = vunpack.c.l.b16 %v2725
    %v2800 = vunpack.c.h.b16 %v2725
    %v2801 = vunpack.c.l.b16 %v2726
    %v2802 = vunpack.c.l.b16 %v2727
    %v2803 = vunpack.c.h.b16 %v2727
    %v2804 = vunpack.c.l.b16 %v2728
    %v2805 = vunpack.c.l.b16 %v2729
    %v2806 = vunpack.c.h.b16 %v2729
    %v2807 = vunpack.c.l.b16 %v2730
    %v2808 = vunpack.c.l.b16 %v2731
    %v2809 = vunpack.c.h.b16 %v2731
    %v2810 = vunpack.c.l.b16 %v2732
    %v2811 = vunpack.c.l.b16 %v2733
    %v2812 = vunpack.c.h.b16 %v2733
    %v2813 = vunpack.c.l.b16 %v2734
    %v2814 = vunpack.c.l.b16 %v2735
    %v2815 = vunpack.c.h.b16 %v2735
    %v2816 = vunpack.c.l.b16 %v2736
    %v2817 = vpack.c.b16 %v2772, %v2769
    %v2818 = vpack.c.b16 %v2773, %v2770
    %v2819 = vpack.c.b16 %v2774, %v2771
    %v2820 = vpack.c.b16 %v2778, %v2775
    %v2821 = vpack.c.b16 %v2779, %v2776
    %v2822 = vpack.c.b16 %v2780, %v2777
    %v2823 = vpack.c.b16 %v2784, %v2781
    %v2824 = vpack.c.b16 %v2785, %v2782
    %v2825 = vpack.c.b16 %v2786, %v2783
    %v2826 = vpack.c.b16 %v2790, %v2787
    %v2827 = vpack.c.b16 %v2791, %v2788
    %v2828 = vpack.c.b16 %v2792, %v2789
    %v2829 = vpack.c.b16 %v2796, %v2793
    %v2830 = vpack.c.b16 %v2797, %v2794
    %v2831 = vpack.c.b16 %v2798, %v2795
    %v2832 = vpack.c.b16 %v2802, %v2799
    %v2833 = vpack.c.b16 %v2803, %v2800
    %v2834 = vpack.c.b16 %v2804, %v2801
    %v2835 = vpack.c.b16 %v2808, %v2805
    %v2836 = vpack.c.b16 %v2809, %v2806
    %v2837 = vpack.c.b16 %v2810, %v2807
    %v2838 = vpack.c.b16 %v2814, %v2811
    %v2839 = vpack.c.b16 %v2815, %v2812
    %v2840 = vpack.c.b16 %v2816, %v2813
    %2865 = vmatprep.subr.bf16.mxu0 %v2818
    %2866 = vmatpush1.bf16.msra.mxu0 %v2817
    %2867 = vmatprep.subr.bf16.mxu0 %v2821
    %2868 = vmatpush1.bf16.msra.mxu0 %v2820
    %2869 = vmatprep.subr.bf16.mxu0 %v2824
    %2870 = vmatpush1.bf16.msra.mxu0 %v2823
    %2871 = vmatprep.subr.bf16.mxu0 %v2827
    %2872 = vmatpush1.bf16.msra.mxu0 %v2826
    %2873 = vmatprep.subr.bf16.mxu0 %v2830
    %2874 = vmatpush1.bf16.msra.mxu0 %v2829
    %2875 = vmatprep.subr.bf16.mxu0 %v2833
    %2876 = vmatpush1.bf16.msra.mxu0 %v2832
    %2877 = vmatprep.subr.bf16.mxu0 %v2836
    %2878 = vmatpush1.bf16.msra.mxu0 %v2835
    %2879 = vmatprep.subr.bf16.mxu0 %v2839
    %2880 = vmatpush1.bf16.msra.mxu0 %v2838
    %2881 = vmatprep.subr.bf16.mxu0 0
    %2882 = vmatpush1.bf16.msra.mxu0 0
    %2883 = vmatprep.subr.bf16.mxu0 0
    %2884 = vmatpush1.bf16.msra.mxu0 0
    %2885 = vmatprep.subr.bf16.mxu0 0
    %2886 = vmatpush1.bf16.msra.mxu0 0
    %2887 = vmatprep.subr.bf16.mxu0 0
    %2888 = vmatpush1.bf16.msra.mxu0 0
    %2889 = vmatprep.subr.bf16.mxu0 0
    %2890 = vmatpush1.bf16.msra.mxu0 0
    %2891 = vmatprep.subr.bf16.mxu0 0
    %2892 = vmatpush1.bf16.msra.mxu0 0
    %2893 = vmatprep.subr.bf16.mxu0 0
    %2894 = vmatpush1.bf16.msra.mxu0 0
    %2895 = vmatprep.subr.bf16.mxu0 0
    %2896 = vmatpush1.bf16.msra.mxu0 0
    %2897 = vmatprep.mubr.bf16.mxu0 0
    %2898 = vmatmul.mubr.bf16.gmra.mrb[0].mxu0 %v2704
    %v2899 = vpop.f32.mrb[0].mxu0
    %v2900 = vadd.f32 0.0, %v2899
    %v2901 = vpop.f32.mrb[0].mxu0
    %v2902 = vadd.f32 0.0, %v2901
    %v2903 = vpop.f32.mrb[0].mxu0
    %v2904 = vadd.f32 0.0, %v2903
    %v2905 = vpop.f32.mrb[0].mxu0
    %v2906 = vadd.f32 0.0, %v2905
    %2907 = vdwg.mxu0
    %2908 = vmatprep.subr.bf16.mxu0 0
    %2909 = vmatpush1.bf16.msra.mxu0 %v2819
    %2910 = vmatprep.subr.bf16.mxu0 0
    %2911 = vmatpush1.bf16.msra.mxu0 %v2822
    %2912 = vmatprep.subr.bf16.mxu0 0
    %2913 = vmatpush1.bf16.msra.mxu0 %v2825
    %2914 = vmatprep.subr.bf16.mxu0 0
    %2915 = vmatpush1.bf16.msra.mxu0 %v2828
    %2916 = vmatprep.subr.bf16.mxu0 0
    %2917 = vmatpush1.bf16.msra.mxu0 %v2831
    %2918 = vmatprep.subr.bf16.mxu0 0
    %2919 = vmatpush1.bf16.msra.mxu0 %v2834
    %2920 = vmatprep.subr.bf16.mxu0 0
    %2921 = vmatpush1.bf16.msra.mxu0 %v2837
    %2922 = vmatprep.subr.bf16.mxu0 0
    %2923 = vmatpush1.bf16.msra.mxu0 %v2840
    %2924 = vmatprep.subr.bf16.mxu0 0
    %2925 = vmatpush1.bf16.msra.mxu0 0
    %2926 = vmatprep.subr.bf16.mxu0 0
    %2927 = vmatpush1.bf16.msra.mxu0 0
    %2928 = vmatprep.subr.bf16.mxu0 0
    %2929 = vmatpush1.bf16.msra.mxu0 0
    %2930 = vmatprep.subr.bf16.mxu0 0
    %2931 = vmatpush1.bf16.msra.mxu0 0
    %2932 = vmatprep.subr.bf16.mxu0 0
    %2933 = vmatpush1.bf16.msra.mxu0 0
    %2934 = vmatprep.subr.bf16.mxu0 0
    %2935 = vmatpush1.bf16.msra.mxu0 0
    %2936 = vmatprep.subr.bf16.mxu0 0
    %2937 = vmatpush1.bf16.msra.mxu0 0
    %2938 = vmatprep.subr.bf16.mxu0 0
    %2939 = vmatpush1.bf16.msra.mxu0 0
    %2940 = vmatprep.mubr.bf16.mxu0 0
    %2941 = vmatmul.mubr.bf16.gmra.mrb[0].mxu0 %v2704
    %v2942 = vpop.f32.mrb[0].mxu0
    %v2943 = vadd.f32 0.0, %v2942
    %v2944 = vpop.f32.mrb[0].mxu0
    %v2945 = vpop.f32.mrb[0].mxu0
    %v2946 = vadd.f32 0.0, %v2945
    %v2947 = vpop.f32.mrb[0].mxu0
    %2948 = vdwg.mxu0
    %v2949 = vlaneseq
    %v2950 = vshrl.u32 %v2949, 7
    %v2951 = vsub.s32 0, %v2950
    %v2952 = vrot.slane %v90, %v2951
    %v2953 = vadd.f32 %v2900, %v2952
    %v2954 = vadd.f32 %v2904, %v2952
    %v2955 = vlaneseq
    %v2956 = vshrl.u32 %v2955, 7
    %v2957 = vsub.s32 0, %v2956
    %v2958 = vrot.slane %v91, %v2957
    %v2959 = vadd.f32 %v2902, %v2958
    %v2960 = vadd.f32 %v2906, %v2958
    %v2961 = vlaneseq
    %v2962 = vshrl.u32 %v2961, 7
    %v2963 = vsub.s32 0, %v2962
    %v2964 = vrot.slane %v92, %v2963
    %v2965 = vadd.f32 %v2943, %v2964
    %v2966 = vadd.f32 %v2946, %v2964
    %v2967 = vpack.c.bf16 %v2953, %v2953
    %v2968 = vpack.c.bf16 %v2954, %v2954
    %v2969 = vpack.c.bf16 %v2959, %v2959
    %v2970 = vpack.c.bf16 %v2960, %v2960
    %v2971 = vpack.c.bf16 %v2965, %v2965
    %v2972 = vpack.c.bf16 %v2966, %v2966
    %vm2973 = vcmask 261120
    %v2975 = vsel %vm2973, %v2967, 0
    %v2978 = vsel %vm2973, %v2969, 0
    %2980 = vmatprep.subr.bf16.mxu0 0
    %2981 = vmatpush1.bf16.xpose.msra.mxu0 %v2978
    %2982 = vmatprep.subr.bf16.mxu0 0
    %2983 = vmatpush1.bf16.xpose.msra.mxu0 0
    %2984 = vmatprep.subr.bf16.mxu0 0
    %2985 = vmatpush1.bf16.xpose.msra.mxu0 0
    %2986 = vmatprep.subr.bf16.mxu0 0
    %2987 = vmatpush1.bf16.xpose.msra.mxu0 0
    %2988 = vmatprep.subr.bf16.mxu0 0
    %2989 = vmatpush1.bf16.xpose.msra.mxu0 0
    %2990 = vmatprep.subr.bf16.mxu0 0
    %2991 = vmatpush1.bf16.xpose.msra.mxu0 0
    %2992 = vmatprep.subr.bf16.mxu0 0
    %2993 = vmatpush1.bf16.xpose.msra.mxu0 0
    %2994 = vmatprep.subr.bf16.mxu0 0
    %2995 = vmatpush1.bf16.xpose.msra.mxu0 0
    %2996 = vmatprep.subr.bf16.mxu0 0
    %2997 = vmatpush1.bf16.xpose.msra.mxu0 0
    %2998 = vmatprep.subr.bf16.mxu0 0
    %2999 = vmatpush1.bf16.xpose.msra.mxu0 0
    %3000 = vmatprep.subr.bf16.mxu0 0
    %3001 = vmatpush1.bf16.xpose.msra.mxu0 0
    %3002 = vmatprep.subr.bf16.mxu0 0
    %3003 = vmatpush1.bf16.xpose.msra.mxu0 0
    %3004 = vmatprep.subr.bf16.mxu0 0
    %3005 = vmatpush1.bf16.xpose.msra.mxu0 0
    %3006 = vmatprep.subr.bf16.mxu0 0
    %3007 = vmatpush1.bf16.xpose.msra.mxu0 0
    %3008 = vmatprep.subr.bf16.mxu0 0
    %3009 = vmatpush1.bf16.xpose.msra.mxu0 0
    %3010 = vmatprep.subr.bf16.mxu0 0
    %3011 = vmatpush1.bf16.xpose.msra.mxu0 0
    %3012 = vmatprep.mubr.bf16.mxu0 0
    %3013 = vmatmul.mubr.bf16.gmra.mrb[0].mxu0 %v2975
    %v3014 = vpop.f32.mrb[0].mxu0
    %v3015 = vadd.f32 0.0, %v3014
    %v3016 = vpop.f32.mrb[0].mxu0
    %v3017 = vpop.f32.mrb[0].mxu0
    %v3018 = vpop.f32.mrb[0].mxu0
    %3019 = vdwg.mxu0
    %v3021 = vsel %vm2973, %v2968, 0
    %v3024 = vsel %vm2973, %v2970, 0
    %3026 = vmatprep.subr.bf16.mxu0 0
    %3027 = vmatpush1.bf16.xpose.msra.mxu0 %v3024
    %3028 = vmatprep.subr.bf16.mxu0 0
    %3029 = vmatpush1.bf16.xpose.msra.mxu0 0
    %3030 = vmatprep.subr.bf16.mxu0 0
    %3031 = vmatpush1.bf16.xpose.msra.mxu0 0
    %3032 = vmatprep.subr.bf16.mxu0 0
    %3033 = vmatpush1.bf16.xpose.msra.mxu0 0
    %3034 = vmatprep.subr.bf16.mxu0 0
    %3035 = vmatpush1.bf16.xpose.msra.mxu0 0
    %3036 = vmatprep.subr.bf16.mxu0 0
    %3037 = vmatpush1.bf16.xpose.msra.mxu0 0
    %3038 = vmatprep.subr.bf16.mxu0 0
    %3039 = vmatpush1.bf16.xpose.msra.mxu0 0
    %3040 = vmatprep.subr.bf16.mxu0 0
    %3041 = vmatpush1.bf16.xpose.msra.mxu0 0
    %3042 = vmatprep.subr.bf16.mxu0 0
    %3043 = vmatpush1.bf16.xpose.msra.mxu0 0
    %3044 = vmatprep.subr.bf16.mxu0 0
    %3045 = vmatpush1.bf16.xpose.msra.mxu0 0
    %3046 = vmatprep.subr.bf16.mxu0 0
    %3047 = vmatpush1.bf16.xpose.msra.mxu0 0
    %3048 = vmatprep.subr.bf16.mxu0 0
    %3049 = vmatpush1.bf16.xpose.msra.mxu0 0
    %3050 = vmatprep.subr.bf16.mxu0 0
    %3051 = vmatpush1.bf16.xpose.msra.mxu0 0
    %3052 = vmatprep.subr.bf16.mxu0 0
    %3053 = vmatpush1.bf16.xpose.msra.mxu0 0
    %3054 = vmatprep.subr.bf16.mxu0 0
    %3055 = vmatpush1.bf16.xpose.msra.mxu0 0
    %3056 = vmatprep.subr.bf16.mxu0 0
    %3057 = vmatpush1.bf16.xpose.msra.mxu0 0
    %3058 = vmatprep.mubr.bf16.mxu0 0
    %3059 = vmatmul.mubr.bf16.gmra.mrb[0].mxu0 %v3021
    %v3060 = vpop.f32.mrb[0].mxu0
    %v3061 = vadd.f32 0.0, %v3060
    %v3062 = vpop.f32.mrb[0].mxu0
    %v3063 = vpop.f32.mrb[0].mxu0
    %v3064 = vpop.f32.mrb[0].mxu0
    %3065 = vdwg.mxu0
    %vm3066 = vcmask 64512
    %v3067 = vsel %vm3066, %v3015, -inf
    %3068 = vmax.xlane.f32.xlu0 %v3067
    %v3069 = vpop.xlane.xlu0 %3068
    %v3070 = vsel %vm3066, %v3061, -inf
    %3071 = vmax.xlane.f32.xlu0 %v3070
    %v3072 = vpop.xlane.xlu0 %3071
    %v3073 = vsub.f32 %v3015, %v3069
    %v3074 = vsub.f32 %v3061, %v3072
    %v3075 = vmul.f32 %v3073, 1.442695
    %v3076 = vpow.pop %v3075
    %v3077 = vmul.f32 %v3074, 1.442695
    %v3078 = vpow.pop %v3077
    %v3079 = vsel %vm3066, %v3076, 0.0
    %3080 = vadd.xlane.f32.xlu0 %v3079
    %v3081 = vpop.xlane.xlu0 %3080
    %v3082 = vsel %vm3066, %v3078, 0.0
    %3083 = vadd.xlane.f32.xlu0 %v3082
    %v3084 = vpop.xlane.xlu0 %3083
    %v3085 = vrcp.pop %v3081
    %v3086 = vrcp.pop %v3084
    %v3087 = vmul.f32 %v3076, %v3085
    %v3088 = vmul.f32 %v3078, %v3086
    %v3089 = vpack.c.bf16 %v3087, %v3087
    %v3090 = vpack.c.bf16 %v3088, %v3088
    %v3092 = vsel %vm3066, %v3089, 0
    %vm3094 = vcmask 1043456
    %v3096 = vsel %vm3094, %v2971, 0
    %3098 = vmatprep.subr.bf16.mxu0 0
    %3099 = vmatpush1.bf16.msra.mxu0 %v3096
    %3100 = vmatprep.subr.bf16.mxu0 0
    %3101 = vmatpush1.bf16.msra.mxu0 0
    %3102 = vmatprep.subr.bf16.mxu0 0
    %3103 = vmatpush1.bf16.msra.mxu0 0
    %3104 = vmatprep.subr.bf16.mxu0 0
    %3105 = vmatpush1.bf16.msra.mxu0 0
    %3106 = vmatprep.subr.bf16.mxu0 0
    %3107 = vmatpush1.bf16.msra.mxu0 0
    %3108 = vmatprep.subr.bf16.mxu0 0
    %3109 = vmatpush1.bf16.msra.mxu0 0
    %3110 = vmatprep.subr.bf16.mxu0 0
    %3111 = vmatpush1.bf16.msra.mxu0 0
    %3112 = vmatprep.subr.bf16.mxu0 0
    %3113 = vmatpush1.bf16.msra.mxu0 0
    %3114 = vmatprep.subr.bf16.mxu0 0
    %3115 = vmatpush1.bf16.msra.mxu0 0
    %3116 = vmatprep.subr.bf16.mxu0 0
    %3117 = vmatpush1.bf16.msra.mxu0 0
    %3118 = vmatprep.subr.bf16.mxu0 0
    %3119 = vmatpush1.bf16.msra.mxu0 0
    %3120 = vmatprep.subr.bf16.mxu0 0
    %3121 = vmatpush1.bf16.msra.mxu0 0
    %3122 = vmatprep.subr.bf16.mxu0 0
    %3123 = vmatpush1.bf16.msra.mxu0 0
    %3124 = vmatprep.subr.bf16.mxu0 0
    %3125 = vmatpush1.bf16.msra.mxu0 0
    %3126 = vmatprep.subr.bf16.mxu0 0
    %3127 = vmatpush1.bf16.msra.mxu0 0
    %3128 = vmatprep.subr.bf16.mxu0 0
    %3129 = vmatpush1.bf16.msra.mxu0 0
    %3130 = vmatprep.mubr.bf16.mxu0 0
    %3131 = vmatmul.mubr.bf16.gmra.mrb[0].mxu0 %v3092
    %v3132 = vpop.f32.mrb[0].mxu0
    %v3133 = vadd.f32 0.0, %v3132
    %v3134 = vpop.f32.mrb[0].mxu0
    %v3135 = vpop.f32.mrb[0].mxu0
    %v3136 = vpop.f32.mrb[0].mxu0
    %3137 = vdwg.mxu0
    %v3139 = vsel %vm3066, %v3090, 0
    %v3142 = vsel %vm3094, %v2972, 0
    %3144 = vmatprep.subr.bf16.mxu0 0
    %3145 = vmatpush1.bf16.msra.mxu0 %v3142
    %3146 = vmatprep.subr.bf16.mxu0 0
    %3147 = vmatpush1.bf16.msra.mxu0 0
    %3148 = vmatprep.subr.bf16.mxu0 0
    %3149 = vmatpush1.bf16.msra.mxu0 0
    %3150 = vmatprep.subr.bf16.mxu0 0
    %3151 = vmatpush1.bf16.msra.mxu0 0
    %3152 = vmatprep.subr.bf16.mxu0 0
    %3153 = vmatpush1.bf16.msra.mxu0 0
    %3154 = vmatprep.subr.bf16.mxu0 0
    %3155 = vmatpush1.bf16.msra.mxu0 0
    %3156 = vmatprep.subr.bf16.mxu0 0
    %3157 = vmatpush1.bf16.msra.mxu0 0
    %3158 = vmatprep.subr.bf16.mxu0 0
    %3159 = vmatpush1.bf16.msra.mxu0 0
    %3160 = vmatprep.subr.bf16.mxu0 0
    %3161 = vmatpush1.bf16.msra.mxu0 0
    %3162 = vmatprep.subr.bf16.mxu0 0
    %3163 = vmatpush1.bf16.msra.mxu0 0
    %3164 = vmatprep.subr.bf16.mxu0 0
    %3165 = vmatpush1.bf16.msra.mxu0 0
    %3166 = vmatprep.subr.bf16.mxu0 0
    %3167 = vmatpush1.bf16.msra.mxu0 0
    %3168 = vmatprep.subr.bf16.mxu0 0
    %3169 = vmatpush1.bf16.msra.mxu0 0
    %3170 = vmatprep.subr.bf16.mxu0 0
    %3171 = vmatpush1.bf16.msra.mxu0 0
    %3172 = vmatprep.subr.bf16.mxu0 0
    %3173 = vmatpush1.bf16.msra.mxu0 0
    %3174 = vmatprep.subr.bf16.mxu0 0
    %3175 = vmatpush1.bf16.msra.mxu0 0
    %3176 = vmatprep.mubr.bf16.mxu0 0
    %3177 = vmatmul.mubr.bf16.gmra.mrb[0].mxu0 %v3139
    %v3178 = vpop.f32.mrb[0].mxu0
    %v3179 = vadd.f32 0.0, %v3178
    %v3180 = vpop.f32.mrb[0].mxu0
    %v3181 = vpop.f32.mrb[0].mxu0
    %v3182 = vpop.f32.mrb[0].mxu0
    %3183 = vdwg.mxu0
    %3185 = vrot.lane.b32.xlu0 %v2967, 96
    %v3186 = vpop.permute.xlu0 %3185
    %3188 = vrot.lane.b32.xlu0 %v2969, 96
    %v3189 = vpop.permute.xlu0 %3188
    %v3191 = vsel %vm2973, %v3186, 0
    %v3194 = vsel %vm2973, %v3189, 0
    %3196 = vmatprep.subr.bf16.mxu0 0
    %3197 = vmatpush1.bf16.xpose.msra.mxu0 %v3194
    %3198 = vmatprep.subr.bf16.mxu0 0
    %3199 = vmatpush1.bf16.xpose.msra.mxu0 0
    %3200 = vmatprep.subr.bf16.mxu0 0
    %3201 = vmatpush1.bf16.xpose.msra.mxu0 0
    %3202 = vmatprep.subr.bf16.mxu0 0
    %3203 = vmatpush1.bf16.xpose.msra.mxu0 0
    %3204 = vmatprep.subr.bf16.mxu0 0
    %3205 = vmatpush1.bf16.xpose.msra.mxu0 0
    %3206 = vmatprep.subr.bf16.mxu0 0
    %3207 = vmatpush1.bf16.xpose.msra.mxu0 0
    %3208 = vmatprep.subr.bf16.mxu0 0
    %3209 = vmatpush1.bf16.xpose.msra.mxu0 0
    %3210 = vmatprep.subr.bf16.mxu0 0
    %3211 = vmatpush1.bf16.xpose.msra.mxu0 0
    %3212 = vmatprep.subr.bf16.mxu0 0
    %3213 = vmatpush1.bf16.xpose.msra.mxu0 0
    %3214 = vmatprep.subr.bf16.mxu0 0
    %3215 = vmatpush1.bf16.xpose.msra.mxu0 0
    %3216 = vmatprep.subr.bf16.mxu0 0
    %3217 = vmatpush1.bf16.xpose.msra.mxu0 0
    %3218 = vmatprep.subr.bf16.mxu0 0
    %3219 = vmatpush1.bf16.xpose.msra.mxu0 0
    %3220 = vmatprep.subr.bf16.mxu0 0
    %3221 = vmatpush1.bf16.xpose.msra.mxu0 0
    %3222 = vmatprep.subr.bf16.mxu0 0
    %3223 = vmatpush1.bf16.xpose.msra.mxu0 0
    %3224 = vmatprep.subr.bf16.mxu0 0
    %3225 = vmatpush1.bf16.xpose.msra.mxu0 0
    %3226 = vmatprep.subr.bf16.mxu0 0
    %3227 = vmatpush1.bf16.xpose.msra.mxu0 0
    %3228 = vmatprep.mubr.bf16.mxu0 0
    %3229 = vmatmul.mubr.bf16.gmra.mrb[0].mxu0 %v3191
    %v3230 = vpop.f32.mrb[0].mxu0
    %v3231 = vadd.f32 0.0, %v3230
    %v3232 = vpop.f32.mrb[0].mxu0
    %v3233 = vpop.f32.mrb[0].mxu0
    %v3234 = vpop.f32.mrb[0].mxu0
    %3235 = vdwg.mxu0
    %3237 = vrot.lane.b32.xlu0 %v2968, 96
    %v3238 = vpop.permute.xlu0 %3237
    %3240 = vrot.lane.b32.xlu0 %v2970, 96
    %v3241 = vpop.permute.xlu0 %3240
    %v3243 = vsel %vm2973, %v3238, 0
    %v3246 = vsel %vm2973, %v3241, 0
    %3248 = vmatprep.subr.bf16.mxu0 0
    %3249 = vmatpush1.bf16.xpose.msra.mxu0 %v3246
    %3250 = vmatprep.subr.bf16.mxu0 0
    %3251 = vmatpush1.bf16.xpose.msra.mxu0 0
    %3252 = vmatprep.subr.bf16.mxu0 0
    %3253 = vmatpush1.bf16.xpose.msra.mxu0 0
    %3254 = vmatprep.subr.bf16.mxu0 0
    %3255 = vmatpush1.bf16.xpose.msra.mxu0 0
    %3256 = vmatprep.subr.bf16.mxu0 0
    %3257 = vmatpush1.bf16.xpose.msra.mxu0 0
    %3258 = vmatprep.subr.bf16.mxu0 0
    %3259 = vmatpush1.bf16.xpose.msra.mxu0 0
    %3260 = vmatprep.subr.bf16.mxu0 0
    %3261 = vmatpush1.bf16.xpose.msra.mxu0 0
    %3262 = vmatprep.subr.bf16.mxu0 0
    %3263 = vmatpush1.bf16.xpose.msra.mxu0 0
    %3264 = vmatprep.subr.bf16.mxu0 0
    %3265 = vmatpush1.bf16.xpose.msra.mxu0 0
    %3266 = vmatprep.subr.bf16.mxu0 0
    %3267 = vmatpush1.bf16.xpose.msra.mxu0 0
    %3268 = vmatprep.subr.bf16.mxu0 0
    %3269 = vmatpush1.bf16.xpose.msra.mxu0 0
    %3270 = vmatprep.subr.bf16.mxu0 0
    %3271 = vmatpush1.bf16.xpose.msra.mxu0 0
    %3272 = vmatprep.subr.bf16.mxu0 0
    %3273 = vmatpush1.bf16.xpose.msra.mxu0 0
    %3274 = vmatprep.subr.bf16.mxu0 0
    %3275 = vmatpush1.bf16.xpose.msra.mxu0 0
    %3276 = vmatprep.subr.bf16.mxu0 0
    %3277 = vmatpush1.bf16.xpose.msra.mxu0 0
    %3278 = vmatprep.subr.bf16.mxu0 0
    %3279 = vmatpush1.bf16.xpose.msra.mxu0 0
    %3280 = vmatprep.mubr.bf16.mxu0 0
    %3281 = vmatmul.mubr.bf16.gmra.mrb[0].mxu0 %v3243
    %v3282 = vpop.f32.mrb[0].mxu0
    %v3283 = vadd.f32 0.0, %v3282
    %v3284 = vpop.f32.mrb[0].mxu0
    %v3285 = vpop.f32.mrb[0].mxu0
    %v3286 = vpop.f32.mrb[0].mxu0
    %3287 = vdwg.mxu0
    %v3288 = vsel %vm3066, %v3231, -inf
    %3289 = vmax.xlane.f32.xlu0 %v3288
    %v3290 = vpop.xlane.xlu0 %3289
    %v3291 = vsel %vm3066, %v3283, -inf
    %3292 = vmax.xlane.f32.xlu0 %v3291
    %v3293 = vpop.xlane.xlu0 %3292
    %v3294 = vsub.f32 %v3231, %v3290
    %v3295 = vsub.f32 %v3283, %v3293
    %v3296 = vmul.f32 %v3294, 1.442695
    %v3297 = vpow.pop %v3296
    %v3298 = vmul.f32 %v3295, 1.442695
    %v3299 = vpow.pop %v3298
    %v3300 = vsel %vm3066, %v3297, 0.0
    %3301 = vadd.xlane.f32.xlu0 %v3300
    %v3302 = vpop.xlane.xlu0 %3301
    %v3303 = vsel %vm3066, %v3299, 0.0
    %3304 = vadd.xlane.f32.xlu0 %v3303
    %v3305 = vpop.xlane.xlu0 %3304
    %v3306 = vrcp.pop %v3302
    %v3307 = vrcp.pop %v3305
    %v3308 = vmul.f32 %v3297, %v3306
    %v3309 = vmul.f32 %v3299, %v3307
    %v3310 = vpack.c.bf16 %v3308, %v3308
    %v3311 = vpack.c.bf16 %v3309, %v3309
    %3313 = vrot.lane.b32.xlu0 %v2971, 96
    %v3314 = vpop.permute.xlu0 %3313
    %v3316 = vsel %vm3066, %v3310, 0
    %v3319 = vsel %vm3094, %v3314, 0
    %3321 = vmatprep.subr.bf16.mxu0 0
    %3322 = vmatpush1.bf16.msra.mxu0 %v3319
    %3323 = vmatprep.subr.bf16.mxu0 0
    %3324 = vmatpush1.bf16.msra.mxu0 0
    %3325 = vmatprep.subr.bf16.mxu0 0
    %3326 = vmatpush1.bf16.msra.mxu0 0
    %3327 = vmatprep.subr.bf16.mxu0 0
    %3328 = vmatpush1.bf16.msra.mxu0 0
    %3329 = vmatprep.subr.bf16.mxu0 0
    %3330 = vmatpush1.bf16.msra.mxu0 0
    %3331 = vmatprep.subr.bf16.mxu0 0
    %3332 = vmatpush1.bf16.msra.mxu0 0
    %3333 = vmatprep.subr.bf16.mxu0 0
    %3334 = vmatpush1.bf16.msra.mxu0 0
    %3335 = vmatprep.subr.bf16.mxu0 0
    %3336 = vmatpush1.bf16.msra.mxu0 0
    %3337 = vmatprep.subr.bf16.mxu0 0
    %3338 = vmatpush1.bf16.msra.mxu0 0
    %3339 = vmatprep.subr.bf16.mxu0 0
    %3340 = vmatpush1.bf16.msra.mxu0 0
    %3341 = vmatprep.subr.bf16.mxu0 0
    %3342 = vmatpush1.bf16.msra.mxu0 0
    %3343 = vmatprep.subr.bf16.mxu0 0
    %3344 = vmatpush1.bf16.msra.mxu0 0
    %3345 = vmatprep.subr.bf16.mxu0 0
    %3346 = vmatpush1.bf16.msra.mxu0 0
    %3347 = vmatprep.subr.bf16.mxu0 0
    %3348 = vmatpush1.bf16.msra.mxu0 0
    %3349 = vmatprep.subr.bf16.mxu0 0
    %3350 = vmatpush1.bf16.msra.mxu0 0
    %3351 = vmatprep.subr.bf16.mxu0 0
    %3352 = vmatpush1.bf16.msra.mxu0 0
    %3353 = vmatprep.mubr.bf16.mxu0 0
    %3354 = vmatmul.mubr.bf16.gmra.mrb[0].mxu0 %v3316
    %v3355 = vpop.f32.mrb[0].mxu0
    %v3356 = vadd.f32 0.0, %v3355
    %v3357 = vpop.f32.mrb[0].mxu0
    %v3358 = vpop.f32.mrb[0].mxu0
    %v3359 = vpop.f32.mrb[0].mxu0
    %3360 = vdwg.mxu0
    %3362 = vrot.lane.b32.xlu0 %v2972, 96
    %v3363 = vpop.permute.xlu0 %3362
    %v3365 = vsel %vm3066, %v3311, 0
    %v3368 = vsel %vm3094, %v3363, 0
    %3370 = vmatprep.subr.bf16.mxu0 0
    %3371 = vmatpush1.bf16.msra.mxu0 %v3368
    %3372 = vmatprep.subr.bf16.mxu0 0
    %3373 = vmatpush1.bf16.msra.mxu0 0
    %3374 = vmatprep.subr.bf16.mxu0 0
    %3375 = vmatpush1.bf16.msra.mxu0 0
    %3376 = vmatprep.subr.bf16.mxu0 0
    %3377 = vmatpush1.bf16.msra.mxu0 0
    %3378 = vmatprep.subr.bf16.mxu0 0
    %3379 = vmatpush1.bf16.msra.mxu0 0
    %3380 = vmatprep.subr.bf16.mxu0 0
    %3381 = vmatpush1.bf16.msra.mxu0 0
    %3382 = vmatprep.subr.bf16.mxu0 0
    %3383 = vmatpush1.bf16.msra.mxu0 0
    %3384 = vmatprep.subr.bf16.mxu0 0
    %3385 = vmatpush1.bf16.msra.mxu0 0
    %3386 = vmatprep.subr.bf16.mxu0 0
    %3387 = vmatpush1.bf16.msra.mxu0 0
    %3388 = vmatprep.subr.bf16.mxu0 0
    %3389 = vmatpush1.bf16.msra.mxu0 0
    %3390 = vmatprep.subr.bf16.mxu0 0
    %3391 = vmatpush1.bf16.msra.mxu0 0
    %3392 = vmatprep.subr.bf16.mxu0 0
    %3393 = vmatpush1.bf16.msra.mxu0 0
    %3394 = vmatprep.subr.bf16.mxu0 0
    %3395 = vmatpush1.bf16.msra.mxu0 0
    %3396 = vmatprep.subr.bf16.mxu0 0
    %3397 = vmatpush1.bf16.msra.mxu0 0
    %3398 = vmatprep.subr.bf16.mxu0 0
    %3399 = vmatpush1.bf16.msra.mxu0 0
    %3400 = vmatprep.subr.bf16.mxu0 0
    %3401 = vmatpush1.bf16.msra.mxu0 0
    %3402 = vmatprep.mubr.bf16.mxu0 0
    %3403 = vmatmul.mubr.bf16.gmra.mrb[0].mxu0 %v3365
    %v3404 = vpop.f32.mrb[0].mxu0
    %v3405 = vadd.f32 0.0, %v3404
    %v3406 = vpop.f32.mrb[0].mxu0
    %v3407 = vpop.f32.mrb[0].mxu0
    %v3408 = vpop.f32.mrb[0].mxu0
    %3409 = vdwg.mxu0
    %3410 = vrot.lane.b32.xlu0 %v2967, 64
    %v3411 = vpop.permute.xlu0 %3410
    %3412 = vrot.lane.b32.xlu0 %v2969, 64
    %v3413 = vpop.permute.xlu0 %3412
    %v3415 = vsel %vm2973, %v3411, 0
    %v3418 = vsel %vm2973, %v3413, 0
    %3420 = vmatprep.subr.bf16.mxu0 0
    %3421 = vmatpush1.bf16.xpose.msra.mxu0 %v3418
    %3422 = vmatprep.subr.bf16.mxu0 0
    %3423 = vmatpush1.bf16.xpose.msra.mxu0 0
    %3424 = vmatprep.subr.bf16.mxu0 0
    %3425 = vmatpush1.bf16.xpose.msra.mxu0 0
    %3426 = vmatprep.subr.bf16.mxu0 0
    %3427 = vmatpush1.bf16.xpose.msra.mxu0 0
    %3428 = vmatprep.subr.bf16.mxu0 0
    %3429 = vmatpush1.bf16.xpose.msra.mxu0 0
    %3430 = vmatprep.subr.bf16.mxu0 0
    %3431 = vmatpush1.bf16.xpose.msra.mxu0 0
    %3432 = vmatprep.subr.bf16.mxu0 0
    %3433 = vmatpush1.bf16.xpose.msra.mxu0 0
    %3434 = vmatprep.subr.bf16.mxu0 0
    %3435 = vmatpush1.bf16.xpose.msra.mxu0 0
    %3436 = vmatprep.subr.bf16.mxu0 0
    %3437 = vmatpush1.bf16.xpose.msra.mxu0 0
    %3438 = vmatprep.subr.bf16.mxu0 0
    %3439 = vmatpush1.bf16.xpose.msra.mxu0 0
    %3440 = vmatprep.subr.bf16.mxu0 0
    %3441 = vmatpush1.bf16.xpose.msra.mxu0 0
    %3442 = vmatprep.subr.bf16.mxu0 0
    %3443 = vmatpush1.bf16.xpose.msra.mxu0 0
    %3444 = vmatprep.subr.bf16.mxu0 0
    %3445 = vmatpush1.bf16.xpose.msra.mxu0 0
    %3446 = vmatprep.subr.bf16.mxu0 0
    %3447 = vmatpush1.bf16.xpose.msra.mxu0 0
    %3448 = vmatprep.subr.bf16.mxu0 0
    %3449 = vmatpush1.bf16.xpose.msra.mxu0 0
    %3450 = vmatprep.subr.bf16.mxu0 0
    %3451 = vmatpush1.bf16.xpose.msra.mxu0 0
    %3452 = vmatprep.mubr.bf16.mxu0 0
    %3453 = vmatmul.mubr.bf16.gmra.mrb[0].mxu0 %v3415
    %v3454 = vpop.f32.mrb[0].mxu0
    %v3455 = vadd.f32 0.0, %v3454
    %v3456 = vpop.f32.mrb[0].mxu0
    %v3457 = vpop.f32.mrb[0].mxu0
    %v3458 = vpop.f32.mrb[0].mxu0
    %3459 = vdwg.mxu0
    %3460 = vrot.lane.b32.xlu0 %v2968, 64
    %v3461 = vpop.permute.xlu0 %3460
    %3462 = vrot.lane.b32.xlu0 %v2970, 64
    %v3463 = vpop.permute.xlu0 %3462
    %v3465 = vsel %vm2973, %v3461, 0
    %v3468 = vsel %vm2973, %v3463, 0
    %3470 = vmatprep.subr.bf16.mxu0 0
    %3471 = vmatpush1.bf16.xpose.msra.mxu0 %v3468
    %3472 = vmatprep.subr.bf16.mxu0 0
    %3473 = vmatpush1.bf16.xpose.msra.mxu0 0
    %3474 = vmatprep.subr.bf16.mxu0 0
    %3475 = vmatpush1.bf16.xpose.msra.mxu0 0
    %3476 = vmatprep.subr.bf16.mxu0 0
    %3477 = vmatpush1.bf16.xpose.msra.mxu0 0
    %3478 = vmatprep.subr.bf16.mxu0 0
    %3479 = vmatpush1.bf16.xpose.msra.mxu0 0
    %3480 = vmatprep.subr.bf16.mxu0 0
    %3481 = vmatpush1.bf16.xpose.msra.mxu0 0
    %3482 = vmatprep.subr.bf16.mxu0 0
    %3483 = vmatpush1.bf16.xpose.msra.mxu0 0
    %3484 = vmatprep.subr.bf16.mxu0 0
    %3485 = vmatpush1.bf16.xpose.msra.mxu0 0
    %3486 = vmatprep.subr.bf16.mxu0 0
    %3487 = vmatpush1.bf16.xpose.msra.mxu0 0
    %3488 = vmatprep.subr.bf16.mxu0 0
    %3489 = vmatpush1.bf16.xpose.msra.mxu0 0
    %3490 = vmatprep.subr.bf16.mxu0 0
    %3491 = vmatpush1.bf16.xpose.msra.mxu0 0
    %3492 = vmatprep.subr.bf16.mxu0 0
    %3493 = vmatpush1.bf16.xpose.msra.mxu0 0
    %3494 = vmatprep.subr.bf16.mxu0 0
    %3495 = vmatpush1.bf16.xpose.msra.mxu0 0
    %3496 = vmatprep.subr.bf16.mxu0 0
    %3497 = vmatpush1.bf16.xpose.msra.mxu0 0
    %3498 = vmatprep.subr.bf16.mxu0 0
    %3499 = vmatpush1.bf16.xpose.msra.mxu0 0
    %3500 = vmatprep.subr.bf16.mxu0 0
    %3501 = vmatpush1.bf16.xpose.msra.mxu0 0
    %3502 = vmatprep.mubr.bf16.mxu0 0
    %3503 = vmatmul.mubr.bf16.gmra.mrb[0].mxu0 %v3465
    %v3504 = vpop.f32.mrb[0].mxu0
    %v3505 = vadd.f32 0.0, %v3504
    %v3506 = vpop.f32.mrb[0].mxu0
    %v3507 = vpop.f32.mrb[0].mxu0
    %v3508 = vpop.f32.mrb[0].mxu0
    %3509 = vdwg.mxu0
    %v3510 = vsel %vm3066, %v3455, -inf
    %3511 = vmax.xlane.f32.xlu0 %v3510
    %v3512 = vpop.xlane.xlu0 %3511
    %v3513 = vsel %vm3066, %v3505, -inf
    %3514 = vmax.xlane.f32.xlu0 %v3513
    %v3515 = vpop.xlane.xlu0 %3514
    %v3516 = vsub.f32 %v3455, %v3512
    %v3517 = vsub.f32 %v3505, %v3515
    %v3518 = vmul.f32 %v3516, 1.442695
    %v3519 = vpow.pop %v3518
    %v3520 = vmul.f32 %v3517, 1.442695
    %v3521 = vpow.pop %v3520
    %v3522 = vsel %vm3066, %v3519, 0.0
    %3523 = vadd.xlane.f32.xlu0 %v3522
    %v3524 = vpop.xlane.xlu0 %3523
    %v3525 = vsel %vm3066, %v3521, 0.0
    %3526 = vadd.xlane.f32.xlu0 %v3525
    %v3527 = vpop.xlane.xlu0 %3526
    %v3528 = vrcp.pop %v3524
    %v3529 = vrcp.pop %v3527
    %v3530 = vmul.f32 %v3519, %v3528
    %v3531 = vmul.f32 %v3521, %v3529
    %v3532 = vpack.c.bf16 %v3530, %v3530
    %v3533 = vpack.c.bf16 %v3531, %v3531
    %3534 = vrot.lane.b32.xlu0 %v2971, 64
    %v3535 = vpop.permute.xlu0 %3534
    %v3537 = vsel %vm3066, %v3532, 0
    %v3540 = vsel %vm3094, %v3535, 0
    %3542 = vmatprep.subr.bf16.mxu0 0
    %3543 = vmatpush1.bf16.msra.mxu0 %v3540
    %3544 = vmatprep.subr.bf16.mxu0 0
    %3545 = vmatpush1.bf16.msra.mxu0 0
    %3546 = vmatprep.subr.bf16.mxu0 0
    %3547 = vmatpush1.bf16.msra.mxu0 0
    %3548 = vmatprep.subr.bf16.mxu0 0
    %3549 = vmatpush1.bf16.msra.mxu0 0
    %3550 = vmatprep.subr.bf16.mxu0 0
    %3551 = vmatpush1.bf16.msra.mxu0 0
    %3552 = vmatprep.subr.bf16.mxu0 0
    %3553 = vmatpush1.bf16.msra.mxu0 0
    %3554 = vmatprep.subr.bf16.mxu0 0
    %3555 = vmatpush1.bf16.msra.mxu0 0
    %3556 = vmatprep.subr.bf16.mxu0 0
    %3557 = vmatpush1.bf16.msra.mxu0 0
    %3558 = vmatprep.subr.bf16.mxu0 0
    %3559 = vmatpush1.bf16.msra.mxu0 0
    %3560 = vmatprep.subr.bf16.mxu0 0
    %3561 = vmatpush1.bf16.msra.mxu0 0
    %3562 = vmatprep.subr.bf16.mxu0 0
    %3563 = vmatpush1.bf16.msra.mxu0 0
    %3564 = vmatprep.subr.bf16.mxu0 0
    %3565 = vmatpush1.bf16.msra.mxu0 0
    %3566 = vmatprep.subr.bf16.mxu0 0
    %3567 = vmatpush1.bf16.msra.mxu0 0
    %3568 = vmatprep.subr.bf16.mxu0 0
    %3569 = vmatpush1.bf16.msra.mxu0 0
    %3570 = vmatprep.subr.bf16.mxu0 0
    %3571 = vmatpush1.bf16.msra.mxu0 0
    %3572 = vmatprep.subr.bf16.mxu0 0
    %3573 = vmatpush1.bf16.msra.mxu0 0
    %3574 = vmatprep.mubr.bf16.mxu0 0
    %3575 = vmatmul.mubr.bf16.gmra.mrb[0].mxu0 %v3537
    %v3576 = vpop.f32.mrb[0].mxu0
    %v3577 = vadd.f32 0.0, %v3576
    %v3578 = vpop.f32.mrb[0].mxu0
    %v3579 = vpop.f32.mrb[0].mxu0
    %v3580 = vpop.f32.mrb[0].mxu0
    %3581 = vdwg.mxu0
    %3582 = vrot.lane.b32.xlu0 %v2972, 64
    %v3583 = vpop.permute.xlu0 %3582
    %v3585 = vsel %vm3066, %v3533, 0
    %v3588 = vsel %vm3094, %v3583, 0
    %3590 = vmatprep.subr.bf16.mxu0 0
    %3591 = vmatpush1.bf16.msra.mxu0 %v3588
    %3592 = vmatprep.subr.bf16.mxu0 0
    %3593 = vmatpush1.bf16.msra.mxu0 0
    %3594 = vmatprep.subr.bf16.mxu0 0
    %3595 = vmatpush1.bf16.msra.mxu0 0
    %3596 = vmatprep.subr.bf16.mxu0 0
    %3597 = vmatpush1.bf16.msra.mxu0 0
    %3598 = vmatprep.subr.bf16.mxu0 0
    %3599 = vmatpush1.bf16.msra.mxu0 0
    %3600 = vmatprep.subr.bf16.mxu0 0
    %3601 = vmatpush1.bf16.msra.mxu0 0
    %3602 = vmatprep.subr.bf16.mxu0 0
    %3603 = vmatpush1.bf16.msra.mxu0 0
    %3604 = vmatprep.subr.bf16.mxu0 0
    %3605 = vmatpush1.bf16.msra.mxu0 0
    %3606 = vmatprep.subr.bf16.mxu0 0
    %3607 = vmatpush1.bf16.msra.mxu0 0
    %3608 = vmatprep.subr.bf16.mxu0 0
    %3609 = vmatpush1.bf16.msra.mxu0 0
    %3610 = vmatprep.subr.bf16.mxu0 0
    %3611 = vmatpush1.bf16.msra.mxu0 0
    %3612 = vmatprep.subr.bf16.mxu0 0
    %3613 = vmatpush1.bf16.msra.mxu0 0
    %3614 = vmatprep.subr.bf16.mxu0 0
    %3615 = vmatpush1.bf16.msra.mxu0 0
    %3616 = vmatprep.subr.bf16.mxu0 0
    %3617 = vmatpush1.bf16.msra.mxu0 0
    %3618 = vmatprep.subr.bf16.mxu0 0
    %3619 = vmatpush1.bf16.msra.mxu0 0
    %3620 = vmatprep.subr.bf16.mxu0 0
    %3621 = vmatpush1.bf16.msra.mxu0 0
    %3622 = vmatprep.mubr.bf16.mxu0 0
    %3623 = vmatmul.mubr.bf16.gmra.mrb[0].mxu0 %v3585
    %v3624 = vpop.f32.mrb[0].mxu0
    %v3625 = vadd.f32 0.0, %v3624
    %v3626 = vpop.f32.mrb[0].mxu0
    %v3627 = vpop.f32.mrb[0].mxu0
    %v3628 = vpop.f32.mrb[0].mxu0
    %3629 = vdwg.mxu0
    %3630 = vrot.lane.b32.xlu0 %v2967, 32
    %v3631 = vpop.permute.xlu0 %3630
    %3632 = vrot.lane.b32.xlu0 %v2969, 32
    %v3633 = vpop.permute.xlu0 %3632
    %v3635 = vsel %vm2973, %v3631, 0
    %v3638 = vsel %vm2973, %v3633, 0
    %3640 = vmatprep.subr.bf16.mxu0 0
    %3641 = vmatpush1.bf16.xpose.msra.mxu0 %v3638
    %3642 = vmatprep.subr.bf16.mxu0 0
    %3643 = vmatpush1.bf16.xpose.msra.mxu0 0
    %3644 = vmatprep.subr.bf16.mxu0 0
    %3645 = vmatpush1.bf16.xpose.msra.mxu0 0
    %3646 = vmatprep.subr.bf16.mxu0 0
    %3647 = vmatpush1.bf16.xpose.msra.mxu0 0
    %3648 = vmatprep.subr.bf16.mxu0 0
    %3649 = vmatpush1.bf16.xpose.msra.mxu0 0
    %3650 = vmatprep.subr.bf16.mxu0 0
    %3651 = vmatpush1.bf16.xpose.msra.mxu0 0
    %3652 = vmatprep.subr.bf16.mxu0 0
    %3653 = vmatpush1.bf16.xpose.msra.mxu0 0
    %3654 = vmatprep.subr.bf16.mxu0 0
    %3655 = vmatpush1.bf16.xpose.msra.mxu0 0
    %3656 = vmatprep.subr.bf16.mxu0 0
    %3657 = vmatpush1.bf16.xpose.msra.mxu0 0
    %3658 = vmatprep.subr.bf16.mxu0 0
    %3659 = vmatpush1.bf16.xpose.msra.mxu0 0
    %3660 = vmatprep.subr.bf16.mxu0 0
    %3661 = vmatpush1.bf16.xpose.msra.mxu0 0
    %3662 = vmatprep.subr.bf16.mxu0 0
    %3663 = vmatpush1.bf16.xpose.msra.mxu0 0
    %3664 = vmatprep.subr.bf16.mxu0 0
    %3665 = vmatpush1.bf16.xpose.msra.mxu0 0
    %3666 = vmatprep.subr.bf16.mxu0 0
    %3667 = vmatpush1.bf16.xpose.msra.mxu0 0
    %3668 = vmatprep.subr.bf16.mxu0 0
    %3669 = vmatpush1.bf16.xpose.msra.mxu0 0
    %3670 = vmatprep.subr.bf16.mxu0 0
    %3671 = vmatpush1.bf16.xpose.msra.mxu0 0
    %3672 = vmatprep.mubr.bf16.mxu0 0
    %3673 = vmatmul.mubr.bf16.gmra.mrb[0].mxu0 %v3635
    %v3674 = vpop.f32.mrb[0].mxu0
    %v3675 = vadd.f32 0.0, %v3674
    %v3676 = vpop.f32.mrb[0].mxu0
    %v3677 = vpop.f32.mrb[0].mxu0
    %v3678 = vpop.f32.mrb[0].mxu0
    %3679 = vdwg.mxu0
    %3680 = vrot.lane.b32.xlu0 %v2968, 32
    %v3681 = vpop.permute.xlu0 %3680
    %3682 = vrot.lane.b32.xlu0 %v2970, 32
    %v3683 = vpop.permute.xlu0 %3682
    %v3685 = vsel %vm2973, %v3681, 0
    %v3688 = vsel %vm2973, %v3683, 0
    %3690 = vmatprep.subr.bf16.mxu0 0
    %3691 = vmatpush1.bf16.xpose.msra.mxu0 %v3688
    %3692 = vmatprep.subr.bf16.mxu0 0
    %3693 = vmatpush1.bf16.xpose.msra.mxu0 0
    %3694 = vmatprep.subr.bf16.mxu0 0
    %3695 = vmatpush1.bf16.xpose.msra.mxu0 0
    %3696 = vmatprep.subr.bf16.mxu0 0
    %3697 = vmatpush1.bf16.xpose.msra.mxu0 0
    %3698 = vmatprep.subr.bf16.mxu0 0
    %3699 = vmatpush1.bf16.xpose.msra.mxu0 0
    %3700 = vmatprep.subr.bf16.mxu0 0
    %3701 = vmatpush1.bf16.xpose.msra.mxu0 0
    %3702 = vmatprep.subr.bf16.mxu0 0
    %3703 = vmatpush1.bf16.xpose.msra.mxu0 0
    %3704 = vmatprep.subr.bf16.mxu0 0
    %3705 = vmatpush1.bf16.xpose.msra.mxu0 0
    %3706 = vmatprep.subr.bf16.mxu0 0
    %3707 = vmatpush1.bf16.xpose.msra.mxu0 0
    %3708 = vmatprep.subr.bf16.mxu0 0
    %3709 = vmatpush1.bf16.xpose.msra.mxu0 0
    %3710 = vmatprep.subr.bf16.mxu0 0
    %3711 = vmatpush1.bf16.xpose.msra.mxu0 0
    %3712 = vmatprep.subr.bf16.mxu0 0
    %3713 = vmatpush1.bf16.xpose.msra.mxu0 0
    %3714 = vmatprep.subr.bf16.mxu0 0
    %3715 = vmatpush1.bf16.xpose.msra.mxu0 0
    %3716 = vmatprep.subr.bf16.mxu0 0
    %3717 = vmatpush1.bf16.xpose.msra.mxu0 0
    %3718 = vmatprep.subr.bf16.mxu0 0
    %3719 = vmatpush1.bf16.xpose.msra.mxu0 0
    %3720 = vmatprep.subr.bf16.mxu0 0
    %3721 = vmatpush1.bf16.xpose.msra.mxu0 0
    %3722 = vmatprep.mubr.bf16.mxu0 0
    %3723 = vmatmul.mubr.bf16.gmra.mrb[0].mxu0 %v3685
    %v3724 = vpop.f32.mrb[0].mxu0
    %v3725 = vadd.f32 0.0, %v3724
    %v3726 = vpop.f32.mrb[0].mxu0
    %v3727 = vpop.f32.mrb[0].mxu0
    %v3728 = vpop.f32.mrb[0].mxu0
    %3729 = vdwg.mxu0
    %v3730 = vsel %vm3066, %v3675, -inf
    %3731 = vmax.xlane.f32.xlu0 %v3730
    %v3732 = vpop.xlane.xlu0 %3731
    %v3733 = vsel %vm3066, %v3725, -inf
    %3734 = vmax.xlane.f32.xlu0 %v3733
    %v3735 = vpop.xlane.xlu0 %3734
    %v3736 = vsub.f32 %v3675, %v3732
    %v3737 = vsub.f32 %v3725, %v3735
    %v3738 = vmul.f32 %v3736, 1.442695
    %v3739 = vpow.pop %v3738
    %v3740 = vmul.f32 %v3737, 1.442695
    %v3741 = vpow.pop %v3740
    %v3742 = vsel %vm3066, %v3739, 0.0
    %3743 = vadd.xlane.f32.xlu0 %v3742
    %v3744 = vpop.xlane.xlu0 %3743
    %v3745 = vsel %vm3066, %v3741, 0.0
    %3746 = vadd.xlane.f32.xlu0 %v3745
    %v3747 = vpop.xlane.xlu0 %3746
    %v3748 = vrcp.pop %v3744
    %v3749 = vrcp.pop %v3747
    %v3750 = vmul.f32 %v3739, %v3748
    %v3751 = vmul.f32 %v3741, %v3749
    %v3752 = vpack.c.bf16 %v3750, %v3750
    %v3753 = vpack.c.bf16 %v3751, %v3751
    %3754 = vrot.lane.b32.xlu0 %v2971, 32
    %v3755 = vpop.permute.xlu0 %3754
    %v3757 = vsel %vm3066, %v3752, 0
    %v3760 = vsel %vm3094, %v3755, 0
    %3762 = vmatprep.subr.bf16.mxu0 0
    %3763 = vmatpush1.bf16.msra.mxu0 %v3760
    %3764 = vmatprep.subr.bf16.mxu0 0
    %3765 = vmatpush1.bf16.msra.mxu0 0
    %3766 = vmatprep.subr.bf16.mxu0 0
    %3767 = vmatpush1.bf16.msra.mxu0 0
    %3768 = vmatprep.subr.bf16.mxu0 0
    %3769 = vmatpush1.bf16.msra.mxu0 0
    %3770 = vmatprep.subr.bf16.mxu0 0
    %3771 = vmatpush1.bf16.msra.mxu0 0
    %3772 = vmatprep.subr.bf16.mxu0 0
    %3773 = vmatpush1.bf16.msra.mxu0 0
    %3774 = vmatprep.subr.bf16.mxu0 0
    %3775 = vmatpush1.bf16.msra.mxu0 0
    %3776 = vmatprep.subr.bf16.mxu0 0
    %3777 = vmatpush1.bf16.msra.mxu0 0
    %3778 = vmatprep.subr.bf16.mxu0 0
    %3779 = vmatpush1.bf16.msra.mxu0 0
    %3780 = vmatprep.subr.bf16.mxu0 0
    %3781 = vmatpush1.bf16.msra.mxu0 0
    %3782 = vmatprep.subr.bf16.mxu0 0
    %3783 = vmatpush1.bf16.msra.mxu0 0
    %3784 = vmatprep.subr.bf16.mxu0 0
    %3785 = vmatpush1.bf16.msra.mxu0 0
    %3786 = vmatprep.subr.bf16.mxu0 0
    %3787 = vmatpush1.bf16.msra.mxu0 0
    %3788 = vmatprep.subr.bf16.mxu0 0
    %3789 = vmatpush1.bf16.msra.mxu0 0
    %3790 = vmatprep.subr.bf16.mxu0 0
    %3791 = vmatpush1.bf16.msra.mxu0 0
    %3792 = vmatprep.subr.bf16.mxu0 0
    %3793 = vmatpush1.bf16.msra.mxu0 0
    %3794 = vmatprep.mubr.bf16.mxu0 0
    %3795 = vmatmul.mubr.bf16.gmra.mrb[0].mxu0 %v3757
    %v3796 = vpop.f32.mrb[0].mxu0
    %v3797 = vadd.f32 0.0, %v3796
    %v3798 = vpop.f32.mrb[0].mxu0
    %v3799 = vpop.f32.mrb[0].mxu0
    %v3800 = vpop.f32.mrb[0].mxu0
    %3801 = vdwg.mxu0
    %3802 = vrot.lane.b32.xlu0 %v2972, 32
    %v3803 = vpop.permute.xlu0 %3802
    %v3805 = vsel %vm3066, %v3753, 0
    %v3808 = vsel %vm3094, %v3803, 0
    %3810 = vmatprep.subr.bf16.mxu0 0
    %3811 = vmatpush1.bf16.msra.mxu0 %v3808
    %3812 = vmatprep.subr.bf16.mxu0 0
    %3813 = vmatpush1.bf16.msra.mxu0 0
    %3814 = vmatprep.subr.bf16.mxu0 0
    %3815 = vmatpush1.bf16.msra.mxu0 0
    %3816 = vmatprep.subr.bf16.mxu0 0
    %3817 = vmatpush1.bf16.msra.mxu0 0
    %3818 = vmatprep.subr.bf16.mxu0 0
    %3819 = vmatpush1.bf16.msra.mxu0 0
    %3820 = vmatprep.subr.bf16.mxu0 0
    %3821 = vmatpush1.bf16.msra.mxu0 0
    %3822 = vmatprep.subr.bf16.mxu0 0
    %3823 = vmatpush1.bf16.msra.mxu0 0
    %3824 = vmatprep.subr.bf16.mxu0 0
    %3825 = vmatpush1.bf16.msra.mxu0 0
    %3826 = vmatprep.subr.bf16.mxu0 0
    %3827 = vmatpush1.bf16.msra.mxu0 0
    %3828 = vmatprep.subr.bf16.mxu0 0
    %3829 = vmatpush1.bf16.msra.mxu0 0
    %3830 = vmatprep.subr.bf16.mxu0 0
    %3831 = vmatpush1.bf16.msra.mxu0 0
    %3832 = vmatprep.subr.bf16.mxu0 0
    %3833 = vmatpush1.bf16.msra.mxu0 0
    %3834 = vmatprep.subr.bf16.mxu0 0
    %3835 = vmatpush1.bf16.msra.mxu0 0
    %3836 = vmatprep.subr.bf16.mxu0 0
    %3837 = vmatpush1.bf16.msra.mxu0 0
    %3838 = vmatprep.subr.bf16.mxu0 0
    %3839 = vmatpush1.bf16.msra.mxu0 0
    %3840 = vmatprep.subr.bf16.mxu0 0
    %3841 = vmatpush1.bf16.msra.mxu0 0
    %3842 = vmatprep.mubr.bf16.mxu0 0
    %3843 = vmatmul.mubr.bf16.gmra.mrb[0].mxu0 %v3805
    %v3844 = vpop.f32.mrb[0].mxu0
    %v3845 = vadd.f32 0.0, %v3844
    %v3846 = vpop.f32.mrb[0].mxu0
    %v3847 = vpop.f32.mrb[0].mxu0
    %v3848 = vpop.f32.mrb[0].mxu0
    %3849 = vdwg.mxu0
    %3852 = vrot.lane.b32.xlu0 %v3356, 32
    %v3853 = vpop.permute.xlu0 %3852
    %3854 = vrot.lane.b32.xlu0 %v3405, 32
    %v3855 = vpop.permute.xlu0 %3854
    %3860 = vrot.lane.b32.xlu0 %v3577, 64
    %v3861 = vpop.permute.xlu0 %3860
    %3862 = vrot.lane.b32.xlu0 %v3625, 64
    %v3863 = vpop.permute.xlu0 %3862
    %3868 = vrot.lane.b32.xlu0 %v3797, 96
    %v3869 = vpop.permute.xlu0 %3868
    %3870 = vrot.lane.b32.xlu0 %v3845, 96
    %v3871 = vpop.permute.xlu0 %3870
    %v3874 = vsel %vm2973, %v3133, %v3853
    %v3875 = vsel %vm2973, %v3179, %v3855
    %vm3876 = vcmask 523264
    %v3877 = vsel %vm3876, %v3874, %v3861
    %v3878 = vsel %vm3876, %v3875, %v3863
    %vm3879 = vcmask 785408
    %v3880 = vsel %vm3879, %v3877, %v3869
    %v3881 = vsel %vm3879, %v3878, %v3871
    %v3882 = vpack.c.bf16 %v3881, %v3880
    %v3883 = vld [vmem:[#allocation7] sm:$0xf]
    %v3884 = vld [vmem:[#allocation7 + $0x4] sm:$0xf]
    %v3885 = vld [vmem:[#allocation7 + $0x8] sm:$0xf]
    %v3886 = vld [vmem:[#allocation7 + $0xc] sm:$0xf]
    %v3887 = vld [vmem:[#allocation7 + $0x10] sm:$0xf]
    %v3888 = vld [vmem:[#allocation7 + $0x14] sm:$0xf]
    %v3889 = vld [vmem:[#allocation7 + $0x18] sm:$0xf]
    %v3890 = vld [vmem:[#allocation7 + $0x1c] sm:$0xf]
    %v3891 = vld [vmem:[#allocation7 + $0x20] sm:$0xf]
    %v3892 = vld [vmem:[#allocation7 + $0x24] sm:$0xf]
    %v3893 = vld [vmem:[#allocation7 + $0x28] sm:$0xf]
    %v3894 = vld [vmem:[#allocation7 + $0x2c] sm:$0xf]
    %v3895 = vld [vmem:[#allocation7 + $0x30] sm:$0xf]
    %v3896 = vld [vmem:[#allocation7 + $0x34] sm:$0xf]
    %v3897 = vld [vmem:[#allocation7 + $0x38] sm:$0xf]
    %v3898 = vld [vmem:[#allocation7 + $0x3c] sm:$0xf]
    %v3899 = vlaneseq
    %v3900 = vshrl.u32 %v3899, 7
    %v3901 = vsub.s32 0, %v3900
    %v3902 = vrot.slane %v85, %v3901
    %v3919 = vunpack.c.l.b16 %v3883
    %v3920 = vunpack.c.l.b16 %v3884
    %v3921 = vunpack.c.l.b16 %v3885
    %v3922 = vunpack.c.l.b16 %v3886
    %v3923 = vunpack.c.l.b16 %v3887
    %v3924 = vunpack.c.l.b16 %v3888
    %v3925 = vunpack.c.l.b16 %v3889
    %v3926 = vunpack.c.l.b16 %v3890
    %v3927 = vunpack.c.l.b16 %v3891
    %v3928 = vunpack.c.l.b16 %v3892
    %v3929 = vunpack.c.l.b16 %v3893
    %v3930 = vunpack.c.l.b16 %v3894
    %v3931 = vunpack.c.l.b16 %v3895
    %v3932 = vunpack.c.l.b16 %v3896
    %v3933 = vunpack.c.l.b16 %v3897
    %v3934 = vunpack.c.l.b16 %v3898
    %v3935 = vpack.c.b16 %v3920, %v3919
    %v3936 = vpack.c.b16 %v3922, %v3921
    %v3937 = vpack.c.b16 %v3924, %v3923
    %v3938 = vpack.c.b16 %v3926, %v3925
    %v3939 = vpack.c.b16 %v3928, %v3927
    %v3940 = vpack.c.b16 %v3930, %v3929
    %v3941 = vpack.c.b16 %v3932, %v3931
    %v3942 = vpack.c.b16 %v3934, %v3933
    %3951 = vmatprep.subr.bf16.mxu0 0
    %3952 = vmatpush1.bf16.msra.mxu0 %v3935
    %3953 = vmatprep.subr.bf16.mxu0 0
    %3954 = vmatpush1.bf16.msra.mxu0 %v3936
    %3955 = vmatprep.subr.bf16.mxu0 0
    %3956 = vmatpush1.bf16.msra.mxu0 %v3937
    %3957 = vmatprep.subr.bf16.mxu0 0
    %3958 = vmatpush1.bf16.msra.mxu0 %v3938
    %3959 = vmatprep.subr.bf16.mxu0 0
    %3960 = vmatpush1.bf16.msra.mxu0 %v3939
    %3961 = vmatprep.subr.bf16.mxu0 0
    %3962 = vmatpush1.bf16.msra.mxu0 %v3940
    %3963 = vmatprep.subr.bf16.mxu0 0
    %3964 = vmatpush1.bf16.msra.mxu0 %v3941
    %3965 = vmatprep.subr.bf16.mxu0 0
    %3966 = vmatpush1.bf16.msra.mxu0 %v3942
    %3967 = vmatprep.subr.bf16.mxu0 0
    %3968 = vmatpush1.bf16.msra.mxu0 0
    %3969 = vmatprep.subr.bf16.mxu0 0
    %3970 = vmatpush1.bf16.msra.mxu0 0
    %3971 = vmatprep.subr.bf16.mxu0 0
    %3972 = vmatpush1.bf16.msra.mxu0 0
    %3973 = vmatprep.subr.bf16.mxu0 0
    %3974 = vmatpush1.bf16.msra.mxu0 0
    %3975 = vmatprep.subr.bf16.mxu0 0
    %3976 = vmatpush1.bf16.msra.mxu0 0
    %3977 = vmatprep.subr.bf16.mxu0 0
    %3978 = vmatpush1.bf16.msra.mxu0 0
    %3979 = vmatprep.subr.bf16.mxu0 0
    %3980 = vmatpush1.bf16.msra.mxu0 0
    %3981 = vmatprep.subr.bf16.mxu0 0
    %3982 = vmatpush1.bf16.msra.mxu0 0
    %3983 = vmatprep.mubr.bf16.mxu0 0
    %3984 = vmatmul.mubr.bf16.gmra.mrb[0].mxu0 %v3882
    %v3985 = vpop.f32.mrb[0].mxu0
    %v3986 = vadd.f32 %v3902, %v3985
    %v3987 = vpop.f32.mrb[0].mxu0
    %v3988 = vpop.f32.mrb[0].mxu0
    %v3989 = vadd.f32 %v3902, %v3988
    %v3990 = vpop.f32.mrb[0].mxu0
    %3991 = vdwg.mxu0
    %v3992 = vadd.f32 %v2702, %v3986
    %v3993 = vadd.f32 %v2703, %v3989
    %3994 = vadd.xlane.f32.xlu0 %v3992
    %v3995 = vpop.xlane.xlu0 %3994
    %3996 = vadd.xlane.f32.xlu0 %v3993
    %v3997 = vpop.xlane.xlu0 %3996
    %v3998 = vrcp.pop 128.0
    %v3999 = vmul.f32 %v3995, %v3998
    %v4000 = vmul.f32 %v3997, %v3998
    %v4001 = vsub.f32 %v3992, %v3999
    %v4002 = vsub.f32 %v3993, %v4000
    %v4003 = vmul.f32 %v4001, %v4001
    %v4004 = vmul.f32 %v4002, %v4002
    %4005 = vadd.xlane.f32.xlu0 %v4003
    %v4006 = vpop.xlane.xlu0 %4005
    %4007 = vadd.xlane.f32.xlu0 %v4004
    %v4008 = vpop.xlane.xlu0 %4007
    %v4009 = vmul.f32 %v4006, %v3998
    %v4010 = vmul.f32 %v4008, %v3998
    %v4011 = vadd.f32 %v4009, 1e-05
    %v4012 = vadd.f32 %v4010, 1e-05
    %v4013 = vrsqrt.pop %v4011
    %v4014 = vrsqrt.pop %v4012
    %v4015 = vmul.f32 %v4001, %v4013
    %v4016 = vmul.f32 %v4002, %v4014
    %v4017 = vlaneseq
    %v4018 = vshrl.u32 %v4017, 7
    %v4019 = vsub.s32 0, %v4018
    %v4020 = vrot.slane %v86, %v4019
    %v4021 = vmul.f32 %v4015, %v4020
    %v4022 = vmul.f32 %v4016, %v4020
    %v4023 = vlaneseq
    %v4024 = vshrl.u32 %v4023, 7
    %v4025 = vsub.s32 0, %v4024
    %v4026 = vrot.slane %v87, %v4025
    %v4027 = vadd.f32 %v4021, %v4026
    %v4028 = vadd.f32 %v4022, %v4026
    %v4029 = vpack.c.bf16 %v4028, %v4027
    %4030 = vmatprep.subr.bf16.mxu0 %v245
    %4031 = vmatpush1.bf16.msra.mxu0 %v244
    %4032 = vmatprep.subr.bf16.mxu0 %v249
    %4033 = vmatpush1.bf16.msra.mxu0 %v248
    %4034 = vmatprep.subr.bf16.mxu0 %v253
    %4035 = vmatpush1.bf16.msra.mxu0 %v252
    %4036 = vmatprep.subr.bf16.mxu0 %v257
    %4037 = vmatpush1.bf16.msra.mxu0 %v256
    %4038 = vmatprep.subr.bf16.mxu0 %v261
    %4039 = vmatpush1.bf16.msra.mxu0 %v260
    %4040 = vmatprep.subr.bf16.mxu0 %v265
    %4041 = vmatpush1.bf16.msra.mxu0 %v264
    %4042 = vmatprep.subr.bf16.mxu0 %v269
    %4043 = vmatpush1.bf16.msra.mxu0 %v268
    %4044 = vmatprep.subr.bf16.mxu0 %v273
    %4045 = vmatpush1.bf16.msra.mxu0 %v272
    %4046 = vmatprep.subr.bf16.mxu0 0
    %4047 = vmatpush1.bf16.msra.mxu0 0
    %4048 = vmatprep.subr.bf16.mxu0 0
    %4049 = vmatpush1.bf16.msra.mxu0 0
    %4050 = vmatprep.subr.bf16.mxu0 0
    %4051 = vmatpush1.bf16.msra.mxu0 0
    %4052 = vmatprep.subr.bf16.mxu0 0
    %4053 = vmatpush1.bf16.msra.mxu0 0
    %4054 = vmatprep.subr.bf16.mxu0 0
    %4055 = vmatpush1.bf16.msra.mxu0 0
    %4056 = vmatprep.subr.bf16.mxu0 0
    %4057 = vmatpush1.bf16.msra.mxu0 0
    %4058 = vmatprep.subr.bf16.mxu0 0
    %4059 = vmatpush1.bf16.msra.mxu0 0
    %4060 = vmatprep.subr.bf16.mxu0 0
    %4061 = vmatpush1.bf16.msra.mxu0 0
    %4062 = vmatprep.mubr.bf16.mxu0 0
    %4063 = vmatmul.mubr.bf16.gmra.mrb[0].mxu0 %v4029
    %v4064 = vpop.f32.mrb[0].mxu0
    %v4065 = vadd.f32 %v131, %v4064
    %v4066 = vpop.f32.mrb[0].mxu0
    %v4067 = vadd.f32 %v135, %v4066
    %v4068 = vpop.f32.mrb[0].mxu0
    %v4069 = vadd.f32 %v131, %v4068
    %v4070 = vpop.f32.mrb[0].mxu0
    %v4071 = vadd.f32 %v135, %v4070
    %4072 = vdwg.mxu0
    %4073 = vmatprep.subr.bf16.mxu0 %v247
    %4074 = vmatpush1.bf16.msra.mxu0 %v246
    %4075 = vmatprep.subr.bf16.mxu0 %v251
    %4076 = vmatpush1.bf16.msra.mxu0 %v250
    %4077 = vmatprep.subr.bf16.mxu0 %v255
    %4078 = vmatpush1.bf16.msra.mxu0 %v254
    %4079 = vmatprep.subr.bf16.mxu0 %v259
    %4080 = vmatpush1.bf16.msra.mxu0 %v258
    %4081 = vmatprep.subr.bf16.mxu0 %v263
    %4082 = vmatpush1.bf16.msra.mxu0 %v262
    %4083 = vmatprep.subr.bf16.mxu0 %v267
    %4084 = vmatpush1.bf16.msra.mxu0 %v266
    %4085 = vmatprep.subr.bf16.mxu0 %v271
    %4086 = vmatpush1.bf16.msra.mxu0 %v270
    %4087 = vmatprep.subr.bf16.mxu0 %v275
    %4088 = vmatpush1.bf16.msra.mxu0 %v274
    %4089 = vmatprep.subr.bf16.mxu0 0
    %4090 = vmatpush1.bf16.msra.mxu0 0
    %4091 = vmatprep.subr.bf16.mxu0 0
    %4092 = vmatpush1.bf16.msra.mxu0 0
    %4093 = vmatprep.subr.bf16.mxu0 0
    %4094 = vmatpush1.bf16.msra.mxu0 0
    %4095 = vmatprep.subr.bf16.mxu0 0
    %4096 = vmatpush1.bf16.msra.mxu0 0
    %4097 = vmatprep.subr.bf16.mxu0 0
    %4098 = vmatpush1.bf16.msra.mxu0 0
    %4099 = vmatprep.subr.bf16.mxu0 0
    %4100 = vmatpush1.bf16.msra.mxu0 0
    %4101 = vmatprep.subr.bf16.mxu0 0
    %4102 = vmatpush1.bf16.msra.mxu0 0
    %4103 = vmatprep.subr.bf16.mxu0 0
    %4104 = vmatpush1.bf16.msra.mxu0 0
    %4105 = vmatprep.mubr.bf16.mxu0 0
    %4106 = vmatmul.mubr.bf16.gmra.mrb[0].mxu0 %v4029
    %v4107 = vpop.f32.mrb[0].mxu0
    %v4108 = vadd.f32 %v139, %v4107
    %v4109 = vpop.f32.mrb[0].mxu0
    %v4110 = vadd.f32 %v143, %v4109
    %v4111 = vpop.f32.mrb[0].mxu0
    %v4112 = vadd.f32 %v139, %v4111
    %v4113 = vpop.f32.mrb[0].mxu0
    %v4114 = vadd.f32 %v143, %v4113
    %4115 = vdwg.mxu0
    %v4116 = vmax.f32 %v4065, 0.0
    %v4117 = vmax.f32 %v4067, 0.0
    %v4118 = vmax.f32 %v4108, 0.0
    %v4119 = vmax.f32 %v4110, 0.0
    %v4120 = vmax.f32 %v4069, 0.0
    %v4121 = vmax.f32 %v4071, 0.0
    %v4122 = vmax.f32 %v4112, 0.0
    %v4123 = vmax.f32 %v4114, 0.0
    %v4124 = vpack.c.bf16 %v4120, %v4116
    %v4125 = vpack.c.bf16 %v4121, %v4117
    %v4126 = vpack.c.bf16 %v4122, %v4118
    %v4127 = vpack.c.bf16 %v4123, %v4119
    %4128 = vmatprep.subr.bf16.mxu0 %v621
    %4129 = vmatpush1.bf16.msra.mxu0 %v620
    %4130 = vmatprep.subr.bf16.mxu0 %v625
    %4131 = vmatpush1.bf16.msra.mxu0 %v624
    %4132 = vmatprep.subr.bf16.mxu0 %v629
    %4133 = vmatpush1.bf16.msra.mxu0 %v628
    %4134 = vmatprep.subr.bf16.mxu0 %v633
    %4135 = vmatpush1.bf16.msra.mxu0 %v632
    %4136 = vmatprep.subr.bf16.mxu0 %v637
    %4137 = vmatpush1.bf16.msra.mxu0 %v636
    %4138 = vmatprep.subr.bf16.mxu0 %v641
    %4139 = vmatpush1.bf16.msra.mxu0 %v640
    %4140 = vmatprep.subr.bf16.mxu0 %v645
    %4141 = vmatpush1.bf16.msra.mxu0 %v644
    %4142 = vmatprep.subr.bf16.mxu0 %v649
    %4143 = vmatpush1.bf16.msra.mxu0 %v648
    %4144 = vmatprep.subr.bf16.mxu0 0
    %4145 = vmatpush1.bf16.msra.mxu0 0
    %4146 = vmatprep.subr.bf16.mxu0 0
    %4147 = vmatpush1.bf16.msra.mxu0 0
    %4148 = vmatprep.subr.bf16.mxu0 0
    %4149 = vmatpush1.bf16.msra.mxu0 0
    %4150 = vmatprep.subr.bf16.mxu0 0
    %4151 = vmatpush1.bf16.msra.mxu0 0
    %4152 = vmatprep.subr.bf16.mxu0 0
    %4153 = vmatpush1.bf16.msra.mxu0 0
    %4154 = vmatprep.subr.bf16.mxu0 0
    %4155 = vmatpush1.bf16.msra.mxu0 0
    %4156 = vmatprep.subr.bf16.mxu0 0
    %4157 = vmatpush1.bf16.msra.mxu0 0
    %4158 = vmatprep.subr.bf16.mxu0 0
    %4159 = vmatpush1.bf16.msra.mxu0 0
    %4160 = vmatprep.mubr.bf16.mxu0 0
    %4161 = vmatmul.mubr.bf16.gmra.mrb[0].mxu0 %v4029
    %v4162 = vpop.f32.mrb[0].mxu0
    %v4163 = vadd.f32 %v507, %v4162
    %v4164 = vpop.f32.mrb[0].mxu0
    %v4165 = vadd.f32 %v511, %v4164
    %v4166 = vpop.f32.mrb[0].mxu0
    %v4167 = vadd.f32 %v507, %v4166
    %v4168 = vpop.f32.mrb[0].mxu0
    %v4169 = vadd.f32 %v511, %v4168
    %4170 = vdwg.mxu0
    %4171 = vmatprep.subr.bf16.mxu0 %v623
    %4172 = vmatpush1.bf16.msra.mxu0 %v622
    %4173 = vmatprep.subr.bf16.mxu0 %v627
    %4174 = vmatpush1.bf16.msra.mxu0 %v626
    %4175 = vmatprep.subr.bf16.mxu0 %v631
    %4176 = vmatpush1.bf16.msra.mxu0 %v630
    %4177 = vmatprep.subr.bf16.mxu0 %v635
    %4178 = vmatpush1.bf16.msra.mxu0 %v634
    %4179 = vmatprep.subr.bf16.mxu0 %v639
    %4180 = vmatpush1.bf16.msra.mxu0 %v638
    %4181 = vmatprep.subr.bf16.mxu0 %v643
    %4182 = vmatpush1.bf16.msra.mxu0 %v642
    %4183 = vmatprep.subr.bf16.mxu0 %v647
    %4184 = vmatpush1.bf16.msra.mxu0 %v646
    %4185 = vmatprep.subr.bf16.mxu0 %v651
    %4186 = vmatpush1.bf16.msra.mxu0 %v650
    %4187 = vmatprep.subr.bf16.mxu0 0
    %4188 = vmatpush1.bf16.msra.mxu0 0
    %4189 = vmatprep.subr.bf16.mxu0 0
    %4190 = vmatpush1.bf16.msra.mxu0 0
    %4191 = vmatprep.subr.bf16.mxu0 0
    %4192 = vmatpush1.bf16.msra.mxu0 0
    %4193 = vmatprep.subr.bf16.mxu0 0
    %4194 = vmatpush1.bf16.msra.mxu0 0
    %4195 = vmatprep.subr.bf16.mxu0 0
    %4196 = vmatpush1.bf16.msra.mxu0 0
    %4197 = vmatprep.subr.bf16.mxu0 0
    %4198 = vmatpush1.bf16.msra.mxu0 0
    %4199 = vmatprep.subr.bf16.mxu0 0
    %4200 = vmatpush1.bf16.msra.mxu0 0
    %4201 = vmatprep.subr.bf16.mxu0 0
    %4202 = vmatpush1.bf16.msra.mxu0 0
    %4203 = vmatprep.mubr.bf16.mxu0 0
    %4204 = vmatmul.mubr.bf16.gmra.mrb[0].mxu0 %v4029
    %v4205 = vpop.f32.mrb[0].mxu0
    %v4206 = vadd.f32 %v515, %v4205
    %v4207 = vpop.f32.mrb[0].mxu0
    %v4208 = vadd.f32 %v519, %v4207
    %v4209 = vpop.f32.mrb[0].mxu0
    %v4210 = vadd.f32 %v515, %v4209
    %v4211 = vpop.f32.mrb[0].mxu0
    %v4212 = vadd.f32 %v519, %v4211
    %4213 = vdwg.mxu0
    %v4214 = vmax.f32 %v4163, 0.0
    %v4215 = vmax.f32 %v4165, 0.0
    %v4216 = vmax.f32 %v4206, 0.0
    %v4217 = vmax.f32 %v4208, 0.0
    %v4218 = vmax.f32 %v4167, 0.0
    %v4219 = vmax.f32 %v4169, 0.0
    %v4220 = vmax.f32 %v4210, 0.0
    %v4221 = vmax.f32 %v4212, 0.0
    %v4222 = vpack.c.bf16 %v4218, %v4214
    %v4223 = vpack.c.bf16 %v4219, %v4215
    %v4224 = vpack.c.bf16 %v4220, %v4216
    %v4225 = vpack.c.bf16 %v4221, %v4217
    %4226 = vmatprep.subr.bf16.mxu0 0
    %4227 = vmatpush1.bf16.msra.mxu0 %v974
    %4228 = vmatprep.subr.bf16.mxu0 0
    %4229 = vmatpush1.bf16.msra.mxu0 %v975
    %4230 = vmatprep.subr.bf16.mxu0 0
    %4231 = vmatpush1.bf16.msra.mxu0 %v976
    %4232 = vmatprep.subr.bf16.mxu0 0
    %4233 = vmatpush1.bf16.msra.mxu0 %v977
    %4234 = vmatprep.subr.bf16.mxu0 0
    %4235 = vmatpush1.bf16.msra.mxu0 %v978
    %4236 = vmatprep.subr.bf16.mxu0 0
    %4237 = vmatpush1.bf16.msra.mxu0 %v979
    %4238 = vmatprep.subr.bf16.mxu0 0
    %4239 = vmatpush1.bf16.msra.mxu0 %v980
    %4240 = vmatprep.subr.bf16.mxu0 0
    %4241 = vmatpush1.bf16.msra.mxu0 %v981
    %4242 = vmatprep.subr.bf16.mxu0 0
    %4243 = vmatpush1.bf16.msra.mxu0 %v982
    %4244 = vmatprep.subr.bf16.mxu0 0
    %4245 = vmatpush1.bf16.msra.mxu0 %v983
    %4246 = vmatprep.subr.bf16.mxu0 0
    %4247 = vmatpush1.bf16.msra.mxu0 %v984
    %4248 = vmatprep.subr.bf16.mxu0 0
    %4249 = vmatpush1.bf16.msra.mxu0 %v985
    %4250 = vmatprep.subr.bf16.mxu0 0
    %4251 = vmatpush1.bf16.msra.mxu0 %v986
    %4252 = vmatprep.subr.bf16.mxu0 0
    %4253 = vmatpush1.bf16.msra.mxu0 %v987
    %4254 = vmatprep.subr.bf16.mxu0 0
    %4255 = vmatpush1.bf16.msra.mxu0 %v988
    %4256 = vmatprep.subr.bf16.mxu0 0
    %4257 = vmatpush1.bf16.msra.mxu0 %v989
    %4258 = vmatprep.mubr.bf16.mxu0 %v4223
    %4259 = vmatmul.mubr.bf16.gmra.mrb[0].mxu0 %v4222
    %v4260 = vpop.f32.mrb[0].mxu0
    %v4261 = vadd.f32 0.0, %v4260
    %v4262 = vpop.f32.mrb[0].mxu0
    %v4263 = vpop.f32.mrb[0].mxu0
    %v4264 = vadd.f32 0.0, %v4263
    %v4265 = vpop.f32.mrb[0].mxu0
    %4266 = vdwg.mxu0
    %4267 = vmatprep.subr.bf16.mxu0 0
    %4268 = vmatpush1.bf16.msra.mxu0 %v990
    %4269 = vmatprep.subr.bf16.mxu0 0
    %4270 = vmatpush1.bf16.msra.mxu0 %v991
    %4271 = vmatprep.subr.bf16.mxu0 0
    %4272 = vmatpush1.bf16.msra.mxu0 %v992
    %4273 = vmatprep.subr.bf16.mxu0 0
    %4274 = vmatpush1.bf16.msra.mxu0 %v993
    %4275 = vmatprep.subr.bf16.mxu0 0
    %4276 = vmatpush1.bf16.msra.mxu0 %v994
    %4277 = vmatprep.subr.bf16.mxu0 0
    %4278 = vmatpush1.bf16.msra.mxu0 %v995
    %4279 = vmatprep.subr.bf16.mxu0 0
    %4280 = vmatpush1.bf16.msra.mxu0 %v996
    %4281 = vmatprep.subr.bf16.mxu0 0
    %4282 = vmatpush1.bf16.msra.mxu0 %v997
    %4283 = vmatprep.subr.bf16.mxu0 0
    %4284 = vmatpush1.bf16.msra.mxu0 %v998
    %4285 = vmatprep.subr.bf16.mxu0 0
    %4286 = vmatpush1.bf16.msra.mxu0 %v999
    %4287 = vmatprep.subr.bf16.mxu0 0
    %4288 = vmatpush1.bf16.msra.mxu0 %v1000
    %4289 = vmatprep.subr.bf16.mxu0 0
    %4290 = vmatpush1.bf16.msra.mxu0 %v1001
    %4291 = vmatprep.subr.bf16.mxu0 0
    %4292 = vmatpush1.bf16.msra.mxu0 %v1002
    %4293 = vmatprep.subr.bf16.mxu0 0
    %4294 = vmatpush1.bf16.msra.mxu0 %v1003
    %4295 = vmatprep.subr.bf16.mxu0 0
    %4296 = vmatpush1.bf16.msra.mxu0 %v1004
    %4297 = vmatprep.subr.bf16.mxu0 0
    %4298 = vmatpush1.bf16.msra.mxu0 %v1005
    %4299 = vmatprep.mubr.bf16.mxu0 %v4225
    %4300 = vmatmul.mubr.bf16.gmra.mrb[0].mxu0 %v4224
    %v4301 = vpop.f32.mrb[0].mxu0
    %v4302 = vadd.f32 %v4261, %v4301
    %v4303 = vpop.f32.mrb[0].mxu0
    %v4304 = vpop.f32.mrb[0].mxu0
    %v4305 = vadd.f32 %v4264, %v4304
    %v4306 = vpop.f32.mrb[0].mxu0
    %4307 = vdwg.mxu0
    %4308 = vmatprep.subr.bf16.mxu0 0
    %4309 = vmatpush1.bf16.msra.mxu0 %v1248
    %4310 = vmatprep.subr.bf16.mxu0 0
    %4311 = vmatpush1.bf16.msra.mxu0 %v1249
    %4312 = vmatprep.subr.bf16.mxu0 0
    %4313 = vmatpush1.bf16.msra.mxu0 %v1250
    %4314 = vmatprep.subr.bf16.mxu0 0
    %4315 = vmatpush1.bf16.msra.mxu0 %v1251
    %4316 = vmatprep.subr.bf16.mxu0 0
    %4317 = vmatpush1.bf16.msra.mxu0 %v1252
    %4318 = vmatprep.subr.bf16.mxu0 0
    %4319 = vmatpush1.bf16.msra.mxu0 %v1253
    %4320 = vmatprep.subr.bf16.mxu0 0
    %4321 = vmatpush1.bf16.msra.mxu0 %v1254
    %4322 = vmatprep.subr.bf16.mxu0 0
    %4323 = vmatpush1.bf16.msra.mxu0 %v1255
    %4324 = vmatprep.subr.bf16.mxu0 0
    %4325 = vmatpush1.bf16.msra.mxu0 %v1256
    %4326 = vmatprep.subr.bf16.mxu0 0
    %4327 = vmatpush1.bf16.msra.mxu0 %v1257
    %4328 = vmatprep.subr.bf16.mxu0 0
    %4329 = vmatpush1.bf16.msra.mxu0 %v1258
    %4330 = vmatprep.subr.bf16.mxu0 0
    %4331 = vmatpush1.bf16.msra.mxu0 %v1259
    %4332 = vmatprep.subr.bf16.mxu0 0
    %4333 = vmatpush1.bf16.msra.mxu0 %v1260
    %4334 = vmatprep.subr.bf16.mxu0 0
    %4335 = vmatpush1.bf16.msra.mxu0 %v1261
    %4336 = vmatprep.subr.bf16.mxu0 0
    %4337 = vmatpush1.bf16.msra.mxu0 %v1262
    %4338 = vmatprep.subr.bf16.mxu0 0
    %4339 = vmatpush1.bf16.msra.mxu0 %v1263
    %4340 = vmatprep.mubr.bf16.mxu0 %v4125
    %4341 = vmatmul.mubr.bf16.gmra.mrb[0].mxu0 %v4124
    %v4342 = vpop.f32.mrb[0].mxu0
    %v4343 = vadd.f32 %v4302, %v4342
    %v4344 = vpop.f32.mrb[0].mxu0
    %v4345 = vpop.f32.mrb[0].mxu0
    %v4346 = vadd.f32 %v4305, %v4345
    %v4347 = vpop.f32.mrb[0].mxu0
    %4348 = vdwg.mxu0
    %4349 = vmatprep.subr.bf16.mxu0 0
    %4350 = vmatpush1.bf16.msra.mxu0 %v1264
    %4351 = vmatprep.subr.bf16.mxu0 0
    %4352 = vmatpush1.bf16.msra.mxu0 %v1265
    %4353 = vmatprep.subr.bf16.mxu0 0
    %4354 = vmatpush1.bf16.msra.mxu0 %v1266
    %4355 = vmatprep.subr.bf16.mxu0 0
    %4356 = vmatpush1.bf16.msra.mxu0 %v1267
    %4357 = vmatprep.subr.bf16.mxu0 0
    %4358 = vmatpush1.bf16.msra.mxu0 %v1268
    %4359 = vmatprep.subr.bf16.mxu0 0
    %4360 = vmatpush1.bf16.msra.mxu0 %v1269
    %4361 = vmatprep.subr.bf16.mxu0 0
    %4362 = vmatpush1.bf16.msra.mxu0 %v1270
    %4363 = vmatprep.subr.bf16.mxu0 0
    %4364 = vmatpush1.bf16.msra.mxu0 %v1271
    %4365 = vmatprep.subr.bf16.mxu0 0
    %4366 = vmatpush1.bf16.msra.mxu0 %v1272
    %4367 = vmatprep.subr.bf16.mxu0 0
    %4368 = vmatpush1.bf16.msra.mxu0 %v1273
    %4369 = vmatprep.subr.bf16.mxu0 0
    %4370 = vmatpush1.bf16.msra.mxu0 %v1274
    %4371 = vmatprep.subr.bf16.mxu0 0
    %4372 = vmatpush1.bf16.msra.mxu0 %v1275
    %4373 = vmatprep.subr.bf16.mxu0 0
    %4374 = vmatpush1.bf16.msra.mxu0 %v1276
    %4375 = vmatprep.subr.bf16.mxu0 0
    %4376 = vmatpush1.bf16.msra.mxu0 %v1277
    %4377 = vmatprep.subr.bf16.mxu0 0
    %4378 = vmatpush1.bf16.msra.mxu0 %v1278
    %4379 = vmatprep.subr.bf16.mxu0 0
    %4380 = vmatpush1.bf16.msra.mxu0 %v1279
    %4381 = vmatprep.mubr.bf16.mxu0 %v4127
    %4382 = vmatmul.mubr.bf16.gmra.mrb[0].mxu0 %v4126
    %v4383 = vpop.f32.mrb[0].mxu0
    %v4384 = vadd.f32 %v4343, %v4383
    %v4385 = vpop.f32.mrb[0].mxu0
    %v4386 = vpop.f32.mrb[0].mxu0
    %v4387 = vadd.f32 %v4346, %v4386
    %v4388 = vpop.f32.mrb[0].mxu0
    %4389 = vdwg.mxu0
    %4390 = vmatprep.subr.bf16.mxu0 %v1545
    %4391 = vmatpush1.bf16.msra.mxu0 %v1544
    %4392 = vmatprep.subr.bf16.mxu0 %v1549
    %4393 = vmatpush1.bf16.msra.mxu0 %v1548
    %4394 = vmatprep.subr.bf16.mxu0 %v1553
    %4395 = vmatpush1.bf16.msra.mxu0 %v1552
    %4396 = vmatprep.subr.bf16.mxu0 %v1557
    %4397 = vmatpush1.bf16.msra.mxu0 %v1556
    %4398 = vmatprep.subr.bf16.mxu0 %v1561
    %4399 = vmatpush1.bf16.msra.mxu0 %v1560
    %4400 = vmatprep.subr.bf16.mxu0 %v1565
    %4401 = vmatpush1.bf16.msra.mxu0 %v1564
    %4402 = vmatprep.subr.bf16.mxu0 %v1569
    %4403 = vmatpush1.bf16.msra.mxu0 %v1568
    %4404 = vmatprep.subr.bf16.mxu0 %v1573
    %4405 = vmatpush1.bf16.msra.mxu0 %v1572
    %4406 = vmatprep.subr.bf16.mxu0 0
    %4407 = vmatpush1.bf16.msra.mxu0 0
    %4408 = vmatprep.subr.bf16.mxu0 0
    %4409 = vmatpush1.bf16.msra.mxu0 0
    %4410 = vmatprep.subr.bf16.mxu0 0
    %4411 = vmatpush1.bf16.msra.mxu0 0
    %4412 = vmatprep.subr.bf16.mxu0 0
    %4413 = vmatpush1.bf16.msra.mxu0 0
    %4414 = vmatprep.subr.bf16.mxu0 0
    %4415 = vmatpush1.bf16.msra.mxu0 0
    %4416 = vmatprep.subr.bf16.mxu0 0
    %4417 = vmatpush1.bf16.msra.mxu0 0
    %4418 = vmatprep.subr.bf16.mxu0 0
    %4419 = vmatpush1.bf16.msra.mxu0 0
    %4420 = vmatprep.subr.bf16.mxu0 0
    %4421 = vmatpush1.bf16.msra.mxu0 0
    %4422 = vmatprep.mubr.bf16.mxu0 0
    %4423 = vmatmul.mubr.bf16.gmra.mrb[0].mxu0 %v4029
    %v4424 = vpop.f32.mrb[0].mxu0
    %v4425 = vadd.f32 %v1431, %v4424
    %v4426 = vpop.f32.mrb[0].mxu0
    %v4427 = vadd.f32 %v1435, %v4426
    %v4428 = vpop.f32.mrb[0].mxu0
    %v4429 = vadd.f32 %v1431, %v4428
    %v4430 = vpop.f32.mrb[0].mxu0
    %v4431 = vadd.f32 %v1435, %v4430
    %4432 = vdwg.mxu0
    %4433 = vmatprep.subr.bf16.mxu0 %v1547
    %4434 = vmatpush1.bf16.msra.mxu0 %v1546
    %4435 = vmatprep.subr.bf16.mxu0 %v1551
    %4436 = vmatpush1.bf16.msra.mxu0 %v1550
    %4437 = vmatprep.subr.bf16.mxu0 %v1555
    %4438 = vmatpush1.bf16.msra.mxu0 %v1554
    %4439 = vmatprep.subr.bf16.mxu0 %v1559
    %4440 = vmatpush1.bf16.msra.mxu0 %v1558
    %4441 = vmatprep.subr.bf16.mxu0 %v1563
    %4442 = vmatpush1.bf16.msra.mxu0 %v1562
    %4443 = vmatprep.subr.bf16.mxu0 %v1567
    %4444 = vmatpush1.bf16.msra.mxu0 %v1566
    %4445 = vmatprep.subr.bf16.mxu0 %v1571
    %4446 = vmatpush1.bf16.msra.mxu0 %v1570
    %4447 = vmatprep.subr.bf16.mxu0 %v1575
    %4448 = vmatpush1.bf16.msra.mxu0 %v1574
    %4449 = vmatprep.subr.bf16.mxu0 0
    %4450 = vmatpush1.bf16.msra.mxu0 0
    %4451 = vmatprep.subr.bf16.mxu0 0
    %4452 = vmatpush1.bf16.msra.mxu0 0
    %4453 = vmatprep.subr.bf16.mxu0 0
    %4454 = vmatpush1.bf16.msra.mxu0 0
    %4455 = vmatprep.subr.bf16.mxu0 0
    %4456 = vmatpush1.bf16.msra.mxu0 0
    %4457 = vmatprep.subr.bf16.mxu0 0
    %4458 = vmatpush1.bf16.msra.mxu0 0
    %4459 = vmatprep.subr.bf16.mxu0 0
    %4460 = vmatpush1.bf16.msra.mxu0 0
    %4461 = vmatprep.subr.bf16.mxu0 0
    %4462 = vmatpush1.bf16.msra.mxu0 0
    %4463 = vmatprep.subr.bf16.mxu0 0
    %4464 = vmatpush1.bf16.msra.mxu0 0
    %4465 = vmatprep.mubr.bf16.mxu0 0
    %4466 = vmatmul.mubr.bf16.gmra.mrb[0].mxu0 %v4029
    %v4467 = vpop.f32.mrb[0].mxu0
    %v4468 = vadd.f32 %v1439, %v4467
    %v4469 = vpop.f32.mrb[0].mxu0
    %v4470 = vadd.f32 %v1443, %v4469
    %v4471 = vpop.f32.mrb[0].mxu0
    %v4472 = vadd.f32 %v1439, %v4471
    %v4473 = vpop.f32.mrb[0].mxu0
    %v4474 = vadd.f32 %v1443, %v4473
    %4475 = vdwg.mxu0
    %v4476 = vmax.f32 %v4425, 0.0
    %v4477 = vmax.f32 %v4427, 0.0
    %v4478 = vmax.f32 %v4468, 0.0
    %v4479 = vmax.f32 %v4470, 0.0
    %v4480 = vmax.f32 %v4429, 0.0
    %v4481 = vmax.f32 %v4431, 0.0
    %v4482 = vmax.f32 %v4472, 0.0
    %v4483 = vmax.f32 %v4474, 0.0
    %v4484 = vpack.c.bf16 %v4480, %v4476
    %v4485 = vpack.c.bf16 %v4481, %v4477
    %v4486 = vpack.c.bf16 %v4482, %v4478
    %v4487 = vpack.c.bf16 %v4483, %v4479
    %4488 = vmatprep.subr.bf16.mxu0 0
    %4489 = vmatpush1.bf16.msra.mxu0 %v1898
    %4490 = vmatprep.subr.bf16.mxu0 0
    %4491 = vmatpush1.bf16.msra.mxu0 %v1899
    %4492 = vmatprep.subr.bf16.mxu0 0
    %4493 = vmatpush1.bf16.msra.mxu0 %v1900
    %4494 = vmatprep.subr.bf16.mxu0 0
    %4495 = vmatpush1.bf16.msra.mxu0 %v1901
    %4496 = vmatprep.subr.bf16.mxu0 0
    %4497 = vmatpush1.bf16.msra.mxu0 %v1902
    %4498 = vmatprep.subr.bf16.mxu0 0
    %4499 = vmatpush1.bf16.msra.mxu0 %v1903
    %4500 = vmatprep.subr.bf16.mxu0 0
    %4501 = vmatpush1.bf16.msra.mxu0 %v1904
    %4502 = vmatprep.subr.bf16.mxu0 0
    %4503 = vmatpush1.bf16.msra.mxu0 %v1905
    %4504 = vmatprep.subr.bf16.mxu0 0
    %4505 = vmatpush1.bf16.msra.mxu0 %v1906
    %4506 = vmatprep.subr.bf16.mxu0 0
    %4507 = vmatpush1.bf16.msra.mxu0 %v1907
    %4508 = vmatprep.subr.bf16.mxu0 0
    %4509 = vmatpush1.bf16.msra.mxu0 %v1908
    %4510 = vmatprep.subr.bf16.mxu0 0
    %4511 = vmatpush1.bf16.msra.mxu0 %v1909
    %4512 = vmatprep.subr.bf16.mxu0 0
    %4513 = vmatpush1.bf16.msra.mxu0 %v1910
    %4514 = vmatprep.subr.bf16.mxu0 0
    %4515 = vmatpush1.bf16.msra.mxu0 %v1911
    %4516 = vmatprep.subr.bf16.mxu0 0
    %4517 = vmatpush1.bf16.msra.mxu0 %v1912
    %4518 = vmatprep.subr.bf16.mxu0 0
    %4519 = vmatpush1.bf16.msra.mxu0 %v1913
    %4520 = vmatprep.mubr.bf16.mxu0 %v4485
    %4521 = vmatmul.mubr.bf16.gmra.mrb[0].mxu0 %v4484
    %v4522 = vpop.f32.mrb[0].mxu0
    %v4523 = vadd.f32 0.0, %v4522
    %v4524 = vpop.f32.mrb[0].mxu0
    %v4525 = vpop.f32.mrb[0].mxu0
    %v4526 = vadd.f32 0.0, %v4525
    %v4527 = vpop.f32.mrb[0].mxu0
    %4528 = vdwg.mxu0
    %4529 = vmatprep.subr.bf16.mxu0 0
    %4530 = vmatpush1.bf16.msra.mxu0 %v1914
    %4531 = vmatprep.subr.bf16.mxu0 0
    %4532 = vmatpush1.bf16.msra.mxu0 %v1915
    %4533 = vmatprep.subr.bf16.mxu0 0
    %4534 = vmatpush1.bf16.msra.mxu0 %v1916
    %4535 = vmatprep.subr.bf16.mxu0 0
    %4536 = vmatpush1.bf16.msra.mxu0 %v1917
    %4537 = vmatprep.subr.bf16.mxu0 0
    %4538 = vmatpush1.bf16.msra.mxu0 %v1918
    %4539 = vmatprep.subr.bf16.mxu0 0
    %4540 = vmatpush1.bf16.msra.mxu0 %v1919
    %4541 = vmatprep.subr.bf16.mxu0 0
    %4542 = vmatpush1.bf16.msra.mxu0 %v1920
    %4543 = vmatprep.subr.bf16.mxu0 0
    %4544 = vmatpush1.bf16.msra.mxu0 %v1921
    %4545 = vmatprep.subr.bf16.mxu0 0
    %4546 = vmatpush1.bf16.msra.mxu0 %v1922
    %4547 = vmatprep.subr.bf16.mxu0 0
    %4548 = vmatpush1.bf16.msra.mxu0 %v1923
    %4549 = vmatprep.subr.bf16.mxu0 0
    %4550 = vmatpush1.bf16.msra.mxu0 %v1924
    %4551 = vmatprep.subr.bf16.mxu0 0
    %4552 = vmatpush1.bf16.msra.mxu0 %v1925
    %4553 = vmatprep.subr.bf16.mxu0 0
    %4554 = vmatpush1.bf16.msra.mxu0 %v1926
    %4555 = vmatprep.subr.bf16.mxu0 0
    %4556 = vmatpush1.bf16.msra.mxu0 %v1927
    %4557 = vmatprep.subr.bf16.mxu0 0
    %4558 = vmatpush1.bf16.msra.mxu0 %v1928
    %4559 = vmatprep.subr.bf16.mxu0 0
    %4560 = vmatpush1.bf16.msra.mxu0 %v1929
    %4561 = vmatprep.mubr.bf16.mxu0 %v4487
    %4562 = vmatmul.mubr.bf16.gmra.mrb[0].mxu0 %v4486
    %v4563 = vpop.f32.mrb[0].mxu0
    %v4564 = vadd.f32 %v4523, %v4563
    %v4565 = vpop.f32.mrb[0].mxu0
    %v4566 = vpop.f32.mrb[0].mxu0
    %v4567 = vadd.f32 %v4526, %v4566
    %v4568 = vpop.f32.mrb[0].mxu0
    %4569 = vdwg.mxu0
    %v4570 = vadd.f32 %v4384, %v4564
    %v4571 = vadd.f32 %v4387, %v4567
    %4572 = vmatprep.subr.bf16.mxu0 %v2197
    %4573 = vmatpush1.bf16.msra.mxu0 %v2196
    %4574 = vmatprep.subr.bf16.mxu0 %v2201
    %4575 = vmatpush1.bf16.msra.mxu0 %v2200
    %4576 = vmatprep.subr.bf16.mxu0 %v2205
    %4577 = vmatpush1.bf16.msra.mxu0 %v2204
    %4578 = vmatprep.subr.bf16.mxu0 %v2209
    %4579 = vmatpush1.bf16.msra.mxu0 %v2208
    %4580 = vmatprep.subr.bf16.mxu0 %v2213
    %4581 = vmatpush1.bf16.msra.mxu0 %v2212
    %4582 = vmatprep.subr.bf16.mxu0 %v2217
    %4583 = vmatpush1.bf16.msra.mxu0 %v2216
    %4584 = vmatprep.subr.bf16.mxu0 %v2221
    %4585 = vmatpush1.bf16.msra.mxu0 %v2220
    %4586 = vmatprep.subr.bf16.mxu0 %v2225
    %4587 = vmatpush1.bf16.msra.mxu0 %v2224
    %4588 = vmatprep.subr.bf16.mxu0 0
    %4589 = vmatpush1.bf16.msra.mxu0 0
    %4590 = vmatprep.subr.bf16.mxu0 0
    %4591 = vmatpush1.bf16.msra.mxu0 0
    %4592 = vmatprep.subr.bf16.mxu0 0
    %4593 = vmatpush1.bf16.msra.mxu0 0
    %4594 = vmatprep.subr.bf16.mxu0 0
    %4595 = vmatpush1.bf16.msra.mxu0 0
    %4596 = vmatprep.subr.bf16.mxu0 0
    %4597 = vmatpush1.bf16.msra.mxu0 0
    %4598 = vmatprep.subr.bf16.mxu0 0
    %4599 = vmatpush1.bf16.msra.mxu0 0
    %4600 = vmatprep.subr.bf16.mxu0 0
    %4601 = vmatpush1.bf16.msra.mxu0 0
    %4602 = vmatprep.subr.bf16.mxu0 0
    %4603 = vmatpush1.bf16.msra.mxu0 0
    %4604 = vmatprep.mubr.bf16.mxu0 0
    %4605 = vmatmul.mubr.bf16.gmra.mrb[0].mxu0 %v4029
    %v4606 = vpop.f32.mrb[0].mxu0
    %v4607 = vadd.f32 %v2083, %v4606
    %v4608 = vpop.f32.mrb[0].mxu0
    %v4609 = vadd.f32 %v2087, %v4608
    %v4610 = vpop.f32.mrb[0].mxu0
    %v4611 = vadd.f32 %v2083, %v4610
    %v4612 = vpop.f32.mrb[0].mxu0
    %v4613 = vadd.f32 %v2087, %v4612
    %4614 = vdwg.mxu0
    %4615 = vmatprep.subr.bf16.mxu0 %v2199
    %4616 = vmatpush1.bf16.msra.mxu0 %v2198
    %4617 = vmatprep.subr.bf16.mxu0 %v2203
    %4618 = vmatpush1.bf16.msra.mxu0 %v2202
    %4619 = vmatprep.subr.bf16.mxu0 %v2207
    %4620 = vmatpush1.bf16.msra.mxu0 %v2206
    %4621 = vmatprep.subr.bf16.mxu0 %v2211
    %4622 = vmatpush1.bf16.msra.mxu0 %v2210
    %4623 = vmatprep.subr.bf16.mxu0 %v2215
    %4624 = vmatpush1.bf16.msra.mxu0 %v2214
    %4625 = vmatprep.subr.bf16.mxu0 %v2219
    %4626 = vmatpush1.bf16.msra.mxu0 %v2218
    %4627 = vmatprep.subr.bf16.mxu0 %v2223
    %4628 = vmatpush1.bf16.msra.mxu0 %v2222
    %4629 = vmatprep.subr.bf16.mxu0 %v2227
    %4630 = vmatpush1.bf16.msra.mxu0 %v2226
    %4631 = vmatprep.subr.bf16.mxu0 0
    %4632 = vmatpush1.bf16.msra.mxu0 0
    %4633 = vmatprep.subr.bf16.mxu0 0
    %4634 = vmatpush1.bf16.msra.mxu0 0
    %4635 = vmatprep.subr.bf16.mxu0 0
    %4636 = vmatpush1.bf16.msra.mxu0 0
    %4637 = vmatprep.subr.bf16.mxu0 0
    %4638 = vmatpush1.bf16.msra.mxu0 0
    %4639 = vmatprep.subr.bf16.mxu0 0
    %4640 = vmatpush1.bf16.msra.mxu0 0
    %4641 = vmatprep.subr.bf16.mxu0 0
    %4642 = vmatpush1.bf16.msra.mxu0 0
    %4643 = vmatprep.subr.bf16.mxu0 0
    %4644 = vmatpush1.bf16.msra.mxu0 0
    %4645 = vmatprep.subr.bf16.mxu0 0
    %4646 = vmatpush1.bf16.msra.mxu0 0
    %4647 = vmatprep.mubr.bf16.mxu0 0
    %4648 = vmatmul.mubr.bf16.gmra.mrb[0].mxu0 %v4029
    %v4649 = vpop.f32.mrb[0].mxu0
    %v4650 = vadd.f32 %v2091, %v4649
    %v4651 = vpop.f32.mrb[0].mxu0
    %v4652 = vadd.f32 %v2095, %v4651
    %v4653 = vpop.f32.mrb[0].mxu0
    %v4654 = vadd.f32 %v2091, %v4653
    %v4655 = vpop.f32.mrb[0].mxu0
    %v4656 = vadd.f32 %v2095, %v4655
    %4657 = vdwg.mxu0
    %v4658 = vmax.f32 %v4607, 0.0
    %v4659 = vmax.f32 %v4609, 0.0
    %v4660 = vmax.f32 %v4650, 0.0
    %v4661 = vmax.f32 %v4652, 0.0
    %v4662 = vmax.f32 %v4611, 0.0
    %v4663 = vmax.f32 %v4613, 0.0
    %v4664 = vmax.f32 %v4654, 0.0
    %v4665 = vmax.f32 %v4656, 0.0
    %v4666 = vpack.c.bf16 %v4662, %v4658
    %v4667 = vpack.c.bf16 %v4663, %v4659
    %v4668 = vpack.c.bf16 %v4664, %v4660
    %v4669 = vpack.c.bf16 %v4665, %v4661
    %4670 = vmatprep.subr.bf16.mxu0 0
    %4671 = vmatpush1.bf16.msra.mxu0 %v2550
    %4672 = vmatprep.subr.bf16.mxu0 0
    %4673 = vmatpush1.bf16.msra.mxu0 %v2551
    %4674 = vmatprep.subr.bf16.mxu0 0
    %4675 = vmatpush1.bf16.msra.mxu0 %v2552
    %4676 = vmatprep.subr.bf16.mxu0 0
    %4677 = vmatpush1.bf16.msra.mxu0 %v2553
    %4678 = vmatprep.subr.bf16.mxu0 0
    %4679 = vmatpush1.bf16.msra.mxu0 %v2554
    %4680 = vmatprep.subr.bf16.mxu0 0
    %4681 = vmatpush1.bf16.msra.mxu0 %v2555
    %4682 = vmatprep.subr.bf16.mxu0 0
    %4683 = vmatpush1.bf16.msra.mxu0 %v2556
    %4684 = vmatprep.subr.bf16.mxu0 0
    %4685 = vmatpush1.bf16.msra.mxu0 %v2557
    %4686 = vmatprep.subr.bf16.mxu0 0
    %4687 = vmatpush1.bf16.msra.mxu0 %v2558
    %4688 = vmatprep.subr.bf16.mxu0 0
    %4689 = vmatpush1.bf16.msra.mxu0 %v2559
    %4690 = vmatprep.subr.bf16.mxu0 0
    %4691 = vmatpush1.bf16.msra.mxu0 %v2560
    %4692 = vmatprep.subr.bf16.mxu0 0
    %4693 = vmatpush1.bf16.msra.mxu0 %v2561
    %4694 = vmatprep.subr.bf16.mxu0 0
    %4695 = vmatpush1.bf16.msra.mxu0 %v2562
    %4696 = vmatprep.subr.bf16.mxu0 0
    %4697 = vmatpush1.bf16.msra.mxu0 %v2563
    %4698 = vmatprep.subr.bf16.mxu0 0
    %4699 = vmatpush1.bf16.msra.mxu0 %v2564
    %4700 = vmatprep.subr.bf16.mxu0 0
    %4701 = vmatpush1.bf16.msra.mxu0 %v2565
    %4702 = vmatprep.mubr.bf16.mxu0 %v4667
    %4703 = vmatmul.mubr.bf16.gmra.mrb[0].mxu0 %v4666
    %v4704 = vpop.f32.mrb[0].mxu0
    %v4705 = vadd.f32 0.0, %v4704
    %v4706 = vpop.f32.mrb[0].mxu0
    %v4707 = vpop.f32.mrb[0].mxu0
    %v4708 = vadd.f32 0.0, %v4707
    %v4709 = vpop.f32.mrb[0].mxu0
    %4710 = vdwg.mxu0
    %4711 = vmatprep.subr.bf16.mxu0 0
    %4712 = vmatpush1.bf16.msra.mxu0 %v2566
    %4713 = vmatprep.subr.bf16.mxu0 0
    %4714 = vmatpush1.bf16.msra.mxu0 %v2567
    %4715 = vmatprep.subr.bf16.mxu0 0
    %4716 = vmatpush1.bf16.msra.mxu0 %v2568
    %4717 = vmatprep.subr.bf16.mxu0 0
    %4718 = vmatpush1.bf16.msra.mxu0 %v2569
    %4719 = vmatprep.subr.bf16.mxu0 0
    %4720 = vmatpush1.bf16.msra.mxu0 %v2570
    %4721 = vmatprep.subr.bf16.mxu0 0
    %4722 = vmatpush1.bf16.msra.mxu0 %v2571
    %4723 = vmatprep.subr.bf16.mxu0 0
    %4724 = vmatpush1.bf16.msra.mxu0 %v2572
    %4725 = vmatprep.subr.bf16.mxu0 0
    %4726 = vmatpush1.bf16.msra.mxu0 %v2573
    %4727 = vmatprep.subr.bf16.mxu0 0
    %4728 = vmatpush1.bf16.msra.mxu0 %v2574
    %4729 = vmatprep.subr.bf16.mxu0 0
    %4730 = vmatpush1.bf16.msra.mxu0 %v2575
    %4731 = vmatprep.subr.bf16.mxu0 0
    %4732 = vmatpush1.bf16.msra.mxu0 %v2576
    %4733 = vmatprep.subr.bf16.mxu0 0
    %4734 = vmatpush1.bf16.msra.mxu0 %v2577
    %4735 = vmatprep.subr.bf16.mxu0 0
    %4736 = vmatpush1.bf16.msra.mxu0 %v2578
    %4737 = vmatprep.subr.bf16.mxu0 0
    %4738 = vmatpush1.bf16.msra.mxu0 %v2579
    %4739 = vmatprep.subr.bf16.mxu0 0
    %4740 = vmatpush1.bf16.msra.mxu0 %v2580
    %4741 = vmatprep.subr.bf16.mxu0 0
    %4742 = vmatpush1.bf16.msra.mxu0 %v2581
    %4743 = vmatprep.mubr.bf16.mxu0 %v4669
    %4744 = vmatmul.mubr.bf16.gmra.mrb[0].mxu0 %v4668
    %v4745 = vpop.f32.mrb[0].mxu0
    %v4746 = vadd.f32 %v4705, %v4745
    %v4747 = vpop.f32.mrb[0].mxu0
    %v4748 = vpop.f32.mrb[0].mxu0
    %v4749 = vadd.f32 %v4708, %v4748
    %v4750 = vpop.f32.mrb[0].mxu0
    %4751 = vdwg.mxu0
    %v4752 = vadd.f32 %v4570, %v4746
    %v4753 = vadd.f32 %v4571, %v4749
    %v4754 = vadd.f32 %v4752, %v2701
    %v4755 = vadd.f32 %v4753, %v2701
    %v4756 = vadd.f32 %v4027, %v4754
    %v4757 = vadd.f32 %v4028, %v4755
    %4758 = vadd.xlane.f32.xlu0 %v4756
    %v4759 = vpop.xlane.xlu0 %4758
    %4760 = vadd.xlane.f32.xlu0 %v4757
    %v4761 = vpop.xlane.xlu0 %4760
    %v4762 = vmul.f32 %v4759, %v3998
    %v4763 = vmul.f32 %v4761, %v3998
    %v4764 = vsub.f32 %v4756, %v4762
    %v4765 = vsub.f32 %v4757, %v4763
    %v4766 = vmul.f32 %v4764, %v4764
    %v4767 = vmul.f32 %v4765, %v4765
    %4768 = vadd.xlane.f32.xlu0 %v4766
    %v4769 = vpop.xlane.xlu0 %4768
    %4770 = vadd.xlane.f32.xlu0 %v4767
    %v4771 = vpop.xlane.xlu0 %4770
    %v4772 = vmul.f32 %v4769, %v3998
    %v4773 = vmul.f32 %v4771, %v3998
    %v4774 = vadd.f32 %v4772, 1e-05
    %v4775 = vadd.f32 %v4773, 1e-05
    %v4776 = vrsqrt.pop %v4774
    %v4777 = vrsqrt.pop %v4775
    %v4778 = vmul.f32 %v4764, %v4776
    %v4779 = vmul.f32 %v4765, %v4777
    %v4780 = vlaneseq
    %v4781 = vshrl.u32 %v4780, 7
    %v4782 = vsub.s32 0, %v4781
    %v4783 = vrot.slane %v88, %v4782
    %v4784 = vmul.f32 %v4778, %v4783
    %v4785 = vmul.f32 %v4779, %v4783
    %v4786 = vlaneseq
    %v4787 = vshrl.u32 %v4786, 7
    %v4788 = vsub.s32 0, %v4787
    %v4789 = vrot.slane %v89, %v4788
    %v4790 = vadd.f32 %v4784, %v4789
    %v4791 = vadd.f32 %v4785, %v4789
    %4792 = vst [vmem:[%s7] sm:$0xff] %v4790
    %4793 = vst [vmem:[%s7 + $0x8] sm:$0xff] %v4791
    // Predicated region
    $region46: #{transformer_layer.1} parent=1 // pred_check
      _
    $region47: #{transformer_layer.1} parent=1 // pred_check_branch
      %4795 = sbr.rel (0) target = $region49
    $region48: #{transformer_layer.1} parent=1 // pred_region
      _
    $region49: #{transformer_layer.1} parent=1 // pred_fallthru
      _
    // Predicated region
    $region50: #{transformer_layer.1} parent=1 // pred_check
      _
    $region51: #{transformer_layer.1} parent=1 // pred_check_branch
      %4797 = sbr.rel (0) target = $region53
    $region52: #{transformer_layer.1} parent=1 // pred_region
      _
    $region53: #{transformer_layer.1} parent=1 // pred_fallthru
      _
    %4798 = vsyncpa [#allocation3], 1
    %4799 = vsyncpa [#allocation5], 1
    %4800 = vsyncpa [#allocation8], 1

</llo_original>
